<compile_context>
chip_gen: v5e
topology: v5e:2x2
jax: 0.10.0
libtpu: 0.0.40
codegen_flags: <defaults>
</compile_context>

<pallas_src>
import jax
import jax.numpy as jnp
import numpy as np
from jax.experimental import pallas as pl
from jax.experimental.pallas import tpu as pltpu


# ----------------------------------------------------------------------------
# Fused kernel: conv1 + conv2 + flatten + linear
# ----------------------------------------------------------------------------
def _convnet3_kernel(x_ref, w2_ref, w3_ref, b3_ref,   # VMEM inputs
                     w1_ref, b1_ref, b2_ref,          # SMEM scalar tables
                     out_ref):                        # VMEM output (N, 128)
    n_batch = out_ref.shape[0]
    H = x_ref.shape[0] // n_batch          # 28
    W0 = x_ref.shape[1]                    # 50
    C1 = w1_ref.shape[0]                   # 3   conv1 out channels
    KW1 = w1_ref.shape[1]                  # 13
    W1 = W0 - KW1 + 1                      # 38
    C2 = w2_ref.shape[1]                   # 3   conv2 out channels
    KW2 = w2_ref.shape[0] // C1            # 7
    W2 = W1 - KW2 + 1                      # 32

    # ---------------- conv1: Conv2d(1, 3, (1, 13)) on the VPU ----------------
    # x rows are (n, h); the 1-D conv along W is 13 shifted MACs per out channel,
    # with the 3*13 scalar weights read from SMEM.
    x = x_ref[...]                                        # (N*28, 50) f32
    shifted = [x[:, kw:kw + W1] for kw in range(KW1)]     # hoisted lane-shifted views
    h1 = []                                               # per channel: (N*28, 38)
    for c in range(C1):
        acc = shifted[0] * w1_ref[c, 0]
        for kw in range(1, KW1):
            acc = acc + shifted[kw] * w1_ref[c, kw]
        h1.append(acc + b1_ref[c])

    # Hoist VMEM weight loads out of the batch loop (no reliance on CSE).
    w2_blocks = [w2_ref[i] for i in range(C1 * KW2)]      # each (C2, 28) = [co, kh]
    w3_blocks = [w3_ref[c] for c in range(C2)]            # each (32, 128)
    b3row = b3_ref[...]                                   # (1, 128)

    # ------- conv2 (28x7, Cin=3) + flatten + Linear(96, 2), per batch row -------
    for n in range(n_batch):
        # conv2: out2[co, wo] = sum_{ci,kh,kw} w2[co,ci,kh,kw] * h1[ci][n, kh, wo+kw]
        acc2 = jnp.zeros((C2, W2), jnp.float32)           # (3, 32) = [co, wo]
        for ci in range(C1):
            h1_nc = h1[ci][n * H:(n + 1) * H, :]          # (28, 38) = [kh, w1]
            for kw in range(KW2):
                acc2 = acc2 + jnp.dot(
                    w2_blocks[ci * KW2 + kw],             # (3, 28)
                    h1_nc[:, kw:kw + W2],                 # (28, 32)  in-register "im2col"
                    preferred_element_type=jnp.float32)

        # flatten (x.view(-1, C*W) with H_out == 1) + linear, padded to 128 lanes
        row = b3row                                       # (1, 128)
        for co in range(C2):
            feat_c = acc2[co:co + 1, :] + b2_ref[co]      # (1, 32)
            row = row + jnp.dot(feat_c, w3_blocks[co],    # (32, 128)
                                preferred_element_type=jnp.float32)
        out_ref[n:n + 1, :] = row                         # lane-dense 128-wide store


# ----------------------------------------------------------------------------
# One-time parameter packing into kernel-friendly layouts
# ----------------------------------------------------------------------------
def prepare_params(p):
    w1 = p["w1"].reshape(3, 13).astype(jnp.float32)                 # (Cout, KW)
    b1 = p["b1"].astype(jnp.float32)                                # (3,)
    # w2p[ci*7 + kw, co, kh] = w2[co, ci, kh, kw]
    w2p = jnp.transpose(p["w2"], (1, 3, 0, 2)).reshape(3 * 7, 3, 28).astype(jnp.float32)
    b2 = p["b2"].astype(jnp.float32)                                # (3,)
    # w3p[c, wo, o] = w3[o, c*32 + wo], zero-padded from 2 to 128 output lanes
    w3p = jnp.transpose(p["w3"].reshape(2, 3, 32), (1, 2, 0))       # (3, 32, 2)
    w3p = jnp.pad(w3p, ((0, 0), (0, 0), (0, 126))).astype(jnp.float32)
    b3row = jnp.pad(p["b3"].reshape(1, 2), ((0, 0), (0, 126))).astype(jnp.float32)
    return {"w1": w1, "b1": b1, "w2p": w2p, "b2": b2, "w3p": w3p, "b3row": b3row}


# ----------------------------------------------------------------------------
# Jitted forward: reshape -> single fused pallas_call -> slice
# ----------------------------------------------------------------------------
@jax.jit
def convnet3_forward(x, packed):
    n = x.shape[0]
    # (N, 1, 28, 50) -> (N*28, 50): contiguous in NCHW, free under XLA.
    x2d = x.reshape(n * x.shape[2], x.shape[3]).astype(jnp.float32)
    out_pad = pl.pallas_call(
        _convnet3_kernel,
        out_shape=jax.ShapeDtypeStruct((n, 128), jnp.float32),
        in_specs=[
            pl.BlockSpec(memory_space=pltpu.MemorySpace.VMEM),   # x2d
            pl.BlockSpec(memory_space=pltpu.MemorySpace.VMEM),   # w2p (21, 3, 28)
            pl.BlockSpec(memory_space=pltpu.MemorySpace.VMEM),   # w3p (3, 32, 128)
            pl.BlockSpec(memory_space=pltpu.MemorySpace.VMEM),   # b3row (1, 128)
            pl.BlockSpec(memory_space=pltpu.MemorySpace.SMEM),   # w1 (3, 13) scalars
            pl.BlockSpec(memory_space=pltpu.MemorySpace.SMEM),   # b1 (3,)
            pl.BlockSpec(memory_space=pltpu.MemorySpace.SMEM),   # b2 (3,)
        ],
        out_specs=pl.BlockSpec(memory_space=pltpu.MemorySpace.VMEM),
    )(x2d, packed["w2p"], packed["w3p"], packed["b3row"],
      packed["w1"], packed["b1"], packed["b2"])
    return out_pad[:, :2]


# ----------------------------------------------------------------------------
# Deterministic PyTorch-style init (uniform(-1/sqrt(fan_in), 1/sqrt(fan_in)))
# ----------------------------------------------------------------------------
def init_params(key):
    ks = jax.random.split(key, 6)

    def u(k, shape, fan_in):
        bound = 1.0 / np.sqrt(fan_in)
        return jax.random.uniform(k, shape, jnp.float32, -bound, bound)

    return {
        "w1": u(ks[0], (3, 1, 1, 13), 1 * 1 * 13),
        "b1": u(ks[1], (3,), 1 * 1 * 13),
        "w2": u(ks[2], (3, 3, 28, 7), 3 * 28 * 7),
        "b2": u(ks[3], (3,), 3 * 28 * 7),
        "w3": u(ks[4], (2, 96), 96),
        "b3": u(ks[5], (2,), 96),
    }


# ----------------------------------------------------------------------------
# Pure-JAX reference (correctness check only)
# ----------------------------------------------------------------------------
def reference_forward(x, p):
    dn = ("NCHW", "OIHW", "NCHW")
    h = jax.lax.conv_general_dilated(x, p["w1"], (1, 1), "VALID", dimension_numbers=dn)
    h = h + p["b1"][None, :, None, None]
    h = jax.lax.conv_general_dilated(h, p["w2"], (1, 1), "VALID", dimension_numbers=dn)
    h = h + p["b2"][None, :, None, None]
    # x.view(-1, C*W): H_out == 1, so this is a contiguous (N, 96) reshape.
    feat = h.reshape(h.shape[0], h.shape[1] * h.shape[3])
    return feat @ p["w3"].T + p["b3"]


if __name__ == "__main__":
    key = jax.random.PRNGKey(0)
    kx, kp = jax.random.split(key)

    # Shape implied by the module: conv2 kernel height 28 => H=28; Linear(96) => W=50.
    x = jax.random.normal(kx, (2, 1, 28, 50), jnp.float32)
    params = init_params(kp)
    packed = prepare_params(params)

    out = convnet3_forward(x, packed)
    out = jax.block_until_ready(out)
    assert out.shape == (2, 2), out.shape

    ref = reference_forward(x, params)
    np.testing.assert_allclose(np.asarray(out), np.asarray(ref), rtol=2e-2, atol=2e-2)

    print("KERNEL_OK")
</pallas_src>

<mosaic_0001>
module attributes {stable_mosaic.version = 11 : i64} {
  func.func @_convnet3_kernel(%arg0: memref<56x50xf32, #tpu.memory_space<vmem>>, %arg1: memref<21x3x28xf32, #tpu.memory_space<vmem>>, %arg2: memref<3x32x128xf32, #tpu.memory_space<vmem>>, %arg3: memref<1x128xf32, #tpu.memory_space<vmem>>, %arg4: memref<3x13xf32, #tpu.memory_space<smem>>, %arg5: memref<3xf32, #tpu.memory_space<smem>>, %arg6: memref<3xf32, #tpu.memory_space<smem>>, %arg7: memref<2x128xf32, #tpu.memory_space<vmem>>) attributes {dimension_semantics = [], scalar_prefetch = 0 : i64, scratch_operands = 0 : i64, tpu.core_type = #tpu.core_type<tc>} {
    %c0 = arith.constant 0 : index
    %c0_0 = arith.constant 0 : index
    %0 = vector.load %arg0[%c0, %c0_0] : memref<56x50xf32, #tpu.memory_space<vmem>>, vector<56x50xf32>
    %1 = vector.extract_strided_slice %0 {offsets = [0, 0], sizes = [56, 38], strides = [1, 1]} : vector<56x50xf32> to vector<56x38xf32>
    %2 = vector.extract_strided_slice %0 {offsets = [0, 1], sizes = [56, 38], strides = [1, 1]} : vector<56x50xf32> to vector<56x38xf32>
    %3 = vector.extract_strided_slice %0 {offsets = [0, 2], sizes = [56, 38], strides = [1, 1]} : vector<56x50xf32> to vector<56x38xf32>
    %4 = vector.extract_strided_slice %0 {offsets = [0, 3], sizes = [56, 38], strides = [1, 1]} : vector<56x50xf32> to vector<56x38xf32>
    %5 = vector.extract_strided_slice %0 {offsets = [0, 4], sizes = [56, 38], strides = [1, 1]} : vector<56x50xf32> to vector<56x38xf32>
    %6 = vector.extract_strided_slice %0 {offsets = [0, 5], sizes = [56, 38], strides = [1, 1]} : vector<56x50xf32> to vector<56x38xf32>
    %7 = vector.extract_strided_slice %0 {offsets = [0, 6], sizes = [56, 38], strides = [1, 1]} : vector<56x50xf32> to vector<56x38xf32>
    %8 = vector.extract_strided_slice %0 {offsets = [0, 7], sizes = [56, 38], strides = [1, 1]} : vector<56x50xf32> to vector<56x38xf32>
    %9 = vector.extract_strided_slice %0 {offsets = [0, 8], sizes = [56, 38], strides = [1, 1]} : vector<56x50xf32> to vector<56x38xf32>
    %10 = vector.extract_strided_slice %0 {offsets = [0, 9], sizes = [56, 38], strides = [1, 1]} : vector<56x50xf32> to vector<56x38xf32>
    %11 = vector.extract_strided_slice %0 {offsets = [0, 10], sizes = [56, 38], strides = [1, 1]} : vector<56x50xf32> to vector<56x38xf32>
    %12 = vector.extract_strided_slice %0 {offsets = [0, 11], sizes = [56, 38], strides = [1, 1]} : vector<56x50xf32> to vector<56x38xf32>
    %13 = vector.extract_strided_slice %0 {offsets = [0, 12], sizes = [56, 38], strides = [1, 1]} : vector<56x50xf32> to vector<56x38xf32>
    %c0_1 = arith.constant 0 : index
    %c0_2 = arith.constant 0 : index
    %14 = memref.load %arg4[%c0_1, %c0_2] : memref<3x13xf32, #tpu.memory_space<smem>>
    %15 = vector.broadcast %14 : f32 to vector<56x38xf32>
    %16 = arith.mulf %1, %15 : vector<56x38xf32>
    %c0_3 = arith.constant 0 : index
    %c1 = arith.constant 1 : index
    %17 = memref.load %arg4[%c0_3, %c1] : memref<3x13xf32, #tpu.memory_space<smem>>
    %18 = vector.broadcast %17 : f32 to vector<56x38xf32>
    %19 = arith.mulf %2, %18 : vector<56x38xf32>
    %20 = arith.addf %16, %19 : vector<56x38xf32>
    %c0_4 = arith.constant 0 : index
    %c2 = arith.constant 2 : index
    %21 = memref.load %arg4[%c0_4, %c2] : memref<3x13xf32, #tpu.memory_space<smem>>
    %22 = vector.broadcast %21 : f32 to vector<56x38xf32>
    %23 = arith.mulf %3, %22 : vector<56x38xf32>
    %24 = arith.addf %20, %23 : vector<56x38xf32>
    %c0_5 = arith.constant 0 : index
    %c3 = arith.constant 3 : index
    %25 = memref.load %arg4[%c0_5, %c3] : memref<3x13xf32, #tpu.memory_space<smem>>
    %26 = vector.broadcast %25 : f32 to vector<56x38xf32>
    %27 = arith.mulf %4, %26 : vector<56x38xf32>
    %28 = arith.addf %24, %27 : vector<56x38xf32>
    %c0_6 = arith.constant 0 : index
    %c4 = arith.constant 4 : index
    %29 = memref.load %arg4[%c0_6, %c4] : memref<3x13xf32, #tpu.memory_space<smem>>
    %30 = vector.broadcast %29 : f32 to vector<56x38xf32>
    %31 = arith.mulf %5, %30 : vector<56x38xf32>
    %32 = arith.addf %28, %31 : vector<56x38xf32>
    %c0_7 = arith.constant 0 : index
    %c5 = arith.constant 5 : index
    %33 = memref.load %arg4[%c0_7, %c5] : memref<3x13xf32, #tpu.memory_space<smem>>
    %34 = vector.broadcast %33 : f32 to vector<56x38xf32>
    %35 = arith.mulf %6, %34 : vector<56x38xf32>
    %36 = arith.addf %32, %35 : vector<56x38xf32>
    %c0_8 = arith.constant 0 : index
    %c6 = arith.constant 6 : index
    %37 = memref.load %arg4[%c0_8, %c6] : memref<3x13xf32, #tpu.memory_space<smem>>
    %38 = vector.broadcast %37 : f32 to vector<56x38xf32>
    %39 = arith.mulf %7, %38 : vector<56x38xf32>
    %40 = arith.addf %36, %39 : vector<56x38xf32>
    %c0_9 = arith.constant 0 : index
    %c7 = arith.constant 7 : index
    %41 = memref.load %arg4[%c0_9, %c7] : memref<3x13xf32, #tpu.memory_space<smem>>
    %42 = vector.broadcast %41 : f32 to vector<56x38xf32>
    %43 = arith.mulf %8, %42 : vector<56x38xf32>
    %44 = arith.addf %40, %43 : vector<56x38xf32>
    %c0_10 = arith.constant 0 : index
    %c8 = arith.constant 8 : index
    %45 = memref.load %arg4[%c0_10, %c8] : memref<3x13xf32, #tpu.memory_space<smem>>
    %46 = vector.broadcast %45 : f32 to vector<56x38xf32>
    %47 = arith.mulf %9, %46 : vector<56x38xf32>
    %48 = arith.addf %44, %47 : vector<56x38xf32>
    %c0_11 = arith.constant 0 : index
    %c9 = arith.constant 9 : index
    %49 = memref.load %arg4[%c0_11, %c9] : memref<3x13xf32, #tpu.memory_space<smem>>
    %50 = vector.broadcast %49 : f32 to vector<56x38xf32>
    %51 = arith.mulf %10, %50 : vector<56x38xf32>
    %52 = arith.addf %48, %51 : vector<56x38xf32>
    %c0_12 = arith.constant 0 : index
    %c10 = arith.constant 10 : index
    %53 = memref.load %arg4[%c0_12, %c10] : memref<3x13xf32, #tpu.memory_space<smem>>
    %54 = vector.broadcast %53 : f32 to vector<56x38xf32>
    %55 = arith.mulf %11, %54 : vector<56x38xf32>
    %56 = arith.addf %52, %55 : vector<56x38xf32>
    %c0_13 = arith.constant 0 : index
    %c11 = arith.constant 11 : index
    %57 = memref.load %arg4[%c0_13, %c11] : memref<3x13xf32, #tpu.memory_space<smem>>
    %58 = vector.broadcast %57 : f32 to vector<56x38xf32>
    %59 = arith.mulf %12, %58 : vector<56x38xf32>
    %60 = arith.addf %56, %59 : vector<56x38xf32>
    %c0_14 = arith.constant 0 : index
    %c12 = arith.constant 12 : index
    %61 = memref.load %arg4[%c0_14, %c12] : memref<3x13xf32, #tpu.memory_space<smem>>
    %62 = vector.broadcast %61 : f32 to vector<56x38xf32>
    %63 = arith.mulf %13, %62 : vector<56x38xf32>
    %64 = arith.addf %60, %63 : vector<56x38xf32>
    %c0_15 = arith.constant 0 : index
    %65 = memref.load %arg5[%c0_15] : memref<3xf32, #tpu.memory_space<smem>>
    %66 = vector.broadcast %65 : f32 to vector<56x38xf32>
    %67 = arith.addf %64, %66 : vector<56x38xf32>
    %c1_16 = arith.constant 1 : index
    %c0_17 = arith.constant 0 : index
    %68 = memref.load %arg4[%c1_16, %c0_17] : memref<3x13xf32, #tpu.memory_space<smem>>
    %69 = vector.broadcast %68 : f32 to vector<56x38xf32>
    %70 = arith.mulf %1, %69 : vector<56x38xf32>
    %c1_18 = arith.constant 1 : index
    %c1_19 = arith.constant 1 : index
    %71 = memref.load %arg4[%c1_18, %c1_19] : memref<3x13xf32, #tpu.memory_space<smem>>
    %72 = vector.broadcast %71 : f32 to vector<56x38xf32>
    %73 = arith.mulf %2, %72 : vector<56x38xf32>
    %74 = arith.addf %70, %73 : vector<56x38xf32>
    %c1_20 = arith.constant 1 : index
    %c2_21 = arith.constant 2 : index
    %75 = memref.load %arg4[%c1_20, %c2_21] : memref<3x13xf32, #tpu.memory_space<smem>>
    %76 = vector.broadcast %75 : f32 to vector<56x38xf32>
    %77 = arith.mulf %3, %76 : vector<56x38xf32>
    %78 = arith.addf %74, %77 : vector<56x38xf32>
    %c1_22 = arith.constant 1 : index
    %c3_23 = arith.constant 3 : index
    %79 = memref.load %arg4[%c1_22, %c3_23] : memref<3x13xf32, #tpu.memory_space<smem>>
    %80 = vector.broadcast %79 : f32 to vector<56x38xf32>
    %81 = arith.mulf %4, %80 : vector<56x38xf32>
    %82 = arith.addf %78, %81 : vector<56x38xf32>
    %c1_24 = arith.constant 1 : index
    %c4_25 = arith.constant 4 : index
    %83 = memref.load %arg4[%c1_24, %c4_25] : memref<3x13xf32, #tpu.memory_space<smem>>
    %84 = vector.broadcast %83 : f32 to vector<56x38xf32>
    %85 = arith.mulf %5, %84 : vector<56x38xf32>
    %86 = arith.addf %82, %85 : vector<56x38xf32>
    %c1_26 = arith.constant 1 : index
    %c5_27 = arith.constant 5 : index
    %87 = memref.load %arg4[%c1_26, %c5_27] : memref<3x13xf32, #tpu.memory_space<smem>>
    %88 = vector.broadcast %87 : f32 to vector<56x38xf32>
    %89 = arith.mulf %6, %88 : vector<56x38xf32>
    %90 = arith.addf %86, %89 : vector<56x38xf32>
    %c1_28 = arith.constant 1 : index
    %c6_29 = arith.constant 6 : index
    %91 = memref.load %arg4[%c1_28, %c6_29] : memref<3x13xf32, #tpu.memory_space<smem>>
    %92 = vector.broadcast %91 : f32 to vector<56x38xf32>
    %93 = arith.mulf %7, %92 : vector<56x38xf32>
    %94 = arith.addf %90, %93 : vector<56x38xf32>
    %c1_30 = arith.constant 1 : index
    %c7_31 = arith.constant 7 : index
    %95 = memref.load %arg4[%c1_30, %c7_31] : memref<3x13xf32, #tpu.memory_space<smem>>
    %96 = vector.broadcast %95 : f32 to vector<56x38xf32>
    %97 = arith.mulf %8, %96 : vector<56x38xf32>
    %98 = arith.addf %94, %97 : vector<56x38xf32>
    %c1_32 = arith.constant 1 : index
    %c8_33 = arith.constant 8 : index
    %99 = memref.load %arg4[%c1_32, %c8_33] : memref<3x13xf32, #tpu.memory_space<smem>>
    %100 = vector.broadcast %99 : f32 to vector<56x38xf32>
    %101 = arith.mulf %9, %100 : vector<56x38xf32>
    %102 = arith.addf %98, %101 : vector<56x38xf32>
    %c1_34 = arith.constant 1 : index
    %c9_35 = arith.constant 9 : index
    %103 = memref.load %arg4[%c1_34, %c9_35] : memref<3x13xf32, #tpu.memory_space<smem>>
    %104 = vector.broadcast %103 : f32 to vector<56x38xf32>
    %105 = arith.mulf %10, %104 : vector<56x38xf32>
    %106 = arith.addf %102, %105 : vector<56x38xf32>
    %c1_36 = arith.constant 1 : index
    %c10_37 = arith.constant 10 : index
    %107 = memref.load %arg4[%c1_36, %c10_37] : memref<3x13xf32, #tpu.memory_space<smem>>
    %108 = vector.broadcast %107 : f32 to vector<56x38xf32>
    %109 = arith.mulf %11, %108 : vector<56x38xf32>
    %110 = arith.addf %106, %109 : vector<56x38xf32>
    %c1_38 = arith.constant 1 : index
    %c11_39 = arith.constant 11 : index
    %111 = memref.load %arg4[%c1_38, %c11_39] : memref<3x13xf32, #tpu.memory_space<smem>>
    %112 = vector.broadcast %111 : f32 to vector<56x38xf32>
    %113 = arith.mulf %12, %112 : vector<56x38xf32>
    %114 = arith.addf %110, %113 : vector<56x38xf32>
    %c1_40 = arith.constant 1 : index
    %c12_41 = arith.constant 12 : index
    %115 = memref.load %arg4[%c1_40, %c12_41] : memref<3x13xf32, #tpu.memory_space<smem>>
    %116 = vector.broadcast %115 : f32 to vector<56x38xf32>
    %117 = arith.mulf %13, %116 : vector<56x38xf32>
    %118 = arith.addf %114, %117 : vector<56x38xf32>
    %c1_42 = arith.constant 1 : index
    %119 = memref.load %arg5[%c1_42] : memref<3xf32, #tpu.memory_space<smem>>
    %120 = vector.broadcast %119 : f32 to vector<56x38xf32>
    %121 = arith.addf %118, %120 : vector<56x38xf32>
    %c2_43 = arith.constant 2 : index
    %c0_44 = arith.constant 0 : index
    %122 = memref.load %arg4[%c2_43, %c0_44] : memref<3x13xf32, #tpu.memory_space<smem>>
    %123 = vector.broadcast %122 : f32 to vector<56x38xf32>
    %124 = arith.mulf %1, %123 : vector<56x38xf32>
    %c2_45 = arith.constant 2 : index
    %c1_46 = arith.constant 1 : index
    %125 = memref.load %arg4[%c2_45, %c1_46] : memref<3x13xf32, #tpu.memory_space<smem>>
    %126 = vector.broadcast %125 : f32 to vector<56x38xf32>
    %127 = arith.mulf %2, %126 : vector<56x38xf32>
    %128 = arith.addf %124, %127 : vector<56x38xf32>
    %c2_47 = arith.constant 2 : index
    %c2_48 = arith.constant 2 : index
    %129 = memref.load %arg4[%c2_47, %c2_48] : memref<3x13xf32, #tpu.memory_space<smem>>
    %130 = vector.broadcast %129 : f32 to vector<56x38xf32>
    %131 = arith.mulf %3, %130 : vector<56x38xf32>
    %132 = arith.addf %128, %131 : vector<56x38xf32>
    %c2_49 = arith.constant 2 : index
    %c3_50 = arith.constant 3 : index
    %133 = memref.load %arg4[%c2_49, %c3_50] : memref<3x13xf32, #tpu.memory_space<smem>>
    %134 = vector.broadcast %133 : f32 to vector<56x38xf32>
    %135 = arith.mulf %4, %134 : vector<56x38xf32>
    %136 = arith.addf %132, %135 : vector<56x38xf32>
    %c2_51 = arith.constant 2 : index
    %c4_52 = arith.constant 4 : index
    %137 = memref.load %arg4[%c2_51, %c4_52] : memref<3x13xf32, #tpu.memory_space<smem>>
    %138 = vector.broadcast %137 : f32 to vector<56x38xf32>
    %139 = arith.mulf %5, %138 : vector<56x38xf32>
    %140 = arith.addf %136, %139 : vector<56x38xf32>
    %c2_53 = arith.constant 2 : index
    %c5_54 = arith.constant 5 : index
    %141 = memref.load %arg4[%c2_53, %c5_54] : memref<3x13xf32, #tpu.memory_space<smem>>
    %142 = vector.broadcast %141 : f32 to vector<56x38xf32>
    %143 = arith.mulf %6, %142 : vector<56x38xf32>
    %144 = arith.addf %140, %143 : vector<56x38xf32>
    %c2_55 = arith.constant 2 : index
    %c6_56 = arith.constant 6 : index
    %145 = memref.load %arg4[%c2_55, %c6_56] : memref<3x13xf32, #tpu.memory_space<smem>>
    %146 = vector.broadcast %145 : f32 to vector<56x38xf32>
    %147 = arith.mulf %7, %146 : vector<56x38xf32>
    %148 = arith.addf %144, %147 : vector<56x38xf32>
    %c2_57 = arith.constant 2 : index
    %c7_58 = arith.constant 7 : index
    %149 = memref.load %arg4[%c2_57, %c7_58] : memref<3x13xf32, #tpu.memory_space<smem>>
    %150 = vector.broadcast %149 : f32 to vector<56x38xf32>
    %151 = arith.mulf %8, %150 : vector<56x38xf32>
    %152 = arith.addf %148, %151 : vector<56x38xf32>
    %c2_59 = arith.constant 2 : index
    %c8_60 = arith.constant 8 : index
    %153 = memref.load %arg4[%c2_59, %c8_60] : memref<3x13xf32, #tpu.memory_space<smem>>
    %154 = vector.broadcast %153 : f32 to vector<56x38xf32>
    %155 = arith.mulf %9, %154 : vector<56x38xf32>
    %156 = arith.addf %152, %155 : vector<56x38xf32>
    %c2_61 = arith.constant 2 : index
    %c9_62 = arith.constant 9 : index
    %157 = memref.load %arg4[%c2_61, %c9_62] : memref<3x13xf32, #tpu.memory_space<smem>>
    %158 = vector.broadcast %157 : f32 to vector<56x38xf32>
    %159 = arith.mulf %10, %158 : vector<56x38xf32>
    %160 = arith.addf %156, %159 : vector<56x38xf32>
    %c2_63 = arith.constant 2 : index
    %c10_64 = arith.constant 10 : index
    %161 = memref.load %arg4[%c2_63, %c10_64] : memref<3x13xf32, #tpu.memory_space<smem>>
    %162 = vector.broadcast %161 : f32 to vector<56x38xf32>
    %163 = arith.mulf %11, %162 : vector<56x38xf32>
    %164 = arith.addf %160, %163 : vector<56x38xf32>
    %c2_65 = arith.constant 2 : index
    %c11_66 = arith.constant 11 : index
    %165 = memref.load %arg4[%c2_65, %c11_66] : memref<3x13xf32, #tpu.memory_space<smem>>
    %166 = vector.broadcast %165 : f32 to vector<56x38xf32>
    %167 = arith.mulf %12, %166 : vector<56x38xf32>
    %168 = arith.addf %164, %167 : vector<56x38xf32>
    %c2_67 = arith.constant 2 : index
    %c12_68 = arith.constant 12 : index
    %169 = memref.load %arg4[%c2_67, %c12_68] : memref<3x13xf32, #tpu.memory_space<smem>>
    %170 = vector.broadcast %169 : f32 to vector<56x38xf32>
    %171 = arith.mulf %13, %170 : vector<56x38xf32>
    %172 = arith.addf %168, %171 : vector<56x38xf32>
    %c2_69 = arith.constant 2 : index
    %173 = memref.load %arg5[%c2_69] : memref<3xf32, #tpu.memory_space<smem>>
    %174 = vector.broadcast %173 : f32 to vector<56x38xf32>
    %175 = arith.addf %172, %174 : vector<56x38xf32>
    %c0_70 = arith.constant 0 : index
    %c0_71 = arith.constant 0 : index
    %c0_72 = arith.constant 0 : index
    %176 = vector.load %arg1[%c0_70, %c0_71, %c0_72] : memref<21x3x28xf32, #tpu.memory_space<vmem>>, vector<1x3x28xf32>
    %177 = vector.shape_cast %176 : vector<1x3x28xf32> to vector<3x28xf32>
    %c1_73 = arith.constant 1 : index
    %c0_74 = arith.constant 0 : index
    %c0_75 = arith.constant 0 : index
    %178 = vector.load %arg1[%c1_73, %c0_74, %c0_75] : memref<21x3x28xf32, #tpu.memory_space<vmem>>, vector<1x3x28xf32>
    %179 = vector.shape_cast %178 : vector<1x3x28xf32> to vector<3x28xf32>
    %c2_76 = arith.constant 2 : index
    %c0_77 = arith.constant 0 : index
    %c0_78 = arith.constant 0 : index
    %180 = vector.load %arg1[%c2_76, %c0_77, %c0_78] : memref<21x3x28xf32, #tpu.memory_space<vmem>>, vector<1x3x28xf32>
    %181 = vector.shape_cast %180 : vector<1x3x28xf32> to vector<3x28xf32>
    %c3_79 = arith.constant 3 : index
    %c0_80 = arith.constant 0 : index
    %c0_81 = arith.constant 0 : index
    %182 = vector.load %arg1[%c3_79, %c0_80, %c0_81] : memref<21x3x28xf32, #tpu.memory_space<vmem>>, vector<1x3x28xf32>
    %183 = vector.shape_cast %182 : vector<1x3x28xf32> to vector<3x28xf32>
    %c4_82 = arith.constant 4 : index
    %c0_83 = arith.constant 0 : index
    %c0_84 = arith.constant 0 : index
    %184 = vector.load %arg1[%c4_82, %c0_83, %c0_84] : memref<21x3x28xf32, #tpu.memory_space<vmem>>, vector<1x3x28xf32>
    %185 = vector.shape_cast %184 : vector<1x3x28xf32> to vector<3x28xf32>
    %c5_85 = arith.constant 5 : index
    %c0_86 = arith.constant 0 : index
    %c0_87 = arith.constant 0 : index
    %186 = vector.load %arg1[%c5_85, %c0_86, %c0_87] : memref<21x3x28xf32, #tpu.memory_space<vmem>>, vector<1x3x28xf32>
    %187 = vector.shape_cast %186 : vector<1x3x28xf32> to vector<3x28xf32>
    %c6_88 = arith.constant 6 : index
    %c0_89 = arith.constant 0 : index
    %c0_90 = arith.constant 0 : index
    %188 = vector.load %arg1[%c6_88, %c0_89, %c0_90] : memref<21x3x28xf32, #tpu.memory_space<vmem>>, vector<1x3x28xf32>
    %189 = vector.shape_cast %188 : vector<1x3x28xf32> to vector<3x28xf32>
    %c7_91 = arith.constant 7 : index
    %c0_92 = arith.constant 0 : index
    %c0_93 = arith.constant 0 : index
    %190 = vector.load %arg1[%c7_91, %c0_92, %c0_93] : memref<21x3x28xf32, #tpu.memory_space<vmem>>, vector<1x3x28xf32>
    %191 = vector.shape_cast %190 : vector<1x3x28xf32> to vector<3x28xf32>
    %c8_94 = arith.constant 8 : index
    %c0_95 = arith.constant 0 : index
    %c0_96 = arith.constant 0 : index
    %192 = vector.load %arg1[%c8_94, %c0_95, %c0_96] : memref<21x3x28xf32, #tpu.memory_space<vmem>>, vector<1x3x28xf32>
    %193 = vector.shape_cast %192 : vector<1x3x28xf32> to vector<3x28xf32>
    %c9_97 = arith.constant 9 : index
    %c0_98 = arith.constant 0 : index
    %c0_99 = arith.constant 0 : index
    %194 = vector.load %arg1[%c9_97, %c0_98, %c0_99] : memref<21x3x28xf32, #tpu.memory_space<vmem>>, vector<1x3x28xf32>
    %195 = vector.shape_cast %194 : vector<1x3x28xf32> to vector<3x28xf32>
    %c10_100 = arith.constant 10 : index
    %c0_101 = arith.constant 0 : index
    %c0_102 = arith.constant 0 : index
    %196 = vector.load %arg1[%c10_100, %c0_101, %c0_102] : memref<21x3x28xf32, #tpu.memory_space<vmem>>, vector<1x3x28xf32>
    %197 = vector.shape_cast %196 : vector<1x3x28xf32> to vector<3x28xf32>
    %c11_103 = arith.constant 11 : index
    %c0_104 = arith.constant 0 : index
    %c0_105 = arith.constant 0 : index
    %198 = vector.load %arg1[%c11_103, %c0_104, %c0_105] : memref<21x3x28xf32, #tpu.memory_space<vmem>>, vector<1x3x28xf32>
    %199 = vector.shape_cast %198 : vector<1x3x28xf32> to vector<3x28xf32>
    %c12_106 = arith.constant 12 : index
    %c0_107 = arith.constant 0 : index
    %c0_108 = arith.constant 0 : index
    %200 = vector.load %arg1[%c12_106, %c0_107, %c0_108] : memref<21x3x28xf32, #tpu.memory_space<vmem>>, vector<1x3x28xf32>
    %201 = vector.shape_cast %200 : vector<1x3x28xf32> to vector<3x28xf32>
    %c13 = arith.constant 13 : index
    %c0_109 = arith.constant 0 : index
    %c0_110 = arith.constant 0 : index
    %202 = vector.load %arg1[%c13, %c0_109, %c0_110] : memref<21x3x28xf32, #tpu.memory_space<vmem>>, vector<1x3x28xf32>
    %203 = vector.shape_cast %202 : vector<1x3x28xf32> to vector<3x28xf32>
    %c14 = arith.constant 14 : index
    %c0_111 = arith.constant 0 : index
    %c0_112 = arith.constant 0 : index
    %204 = vector.load %arg1[%c14, %c0_111, %c0_112] : memref<21x3x28xf32, #tpu.memory_space<vmem>>, vector<1x3x28xf32>
    %205 = vector.shape_cast %204 : vector<1x3x28xf32> to vector<3x28xf32>
    %c15 = arith.constant 15 : index
    %c0_113 = arith.constant 0 : index
    %c0_114 = arith.constant 0 : index
    %206 = vector.load %arg1[%c15, %c0_113, %c0_114] : memref<21x3x28xf32, #tpu.memory_space<vmem>>, vector<1x3x28xf32>
    %207 = vector.shape_cast %206 : vector<1x3x28xf32> to vector<3x28xf32>
    %c16 = arith.constant 16 : index
    %c0_115 = arith.constant 0 : index
    %c0_116 = arith.constant 0 : index
    %208 = vector.load %arg1[%c16, %c0_115, %c0_116] : memref<21x3x28xf32, #tpu.memory_space<vmem>>, vector<1x3x28xf32>
    %209 = vector.shape_cast %208 : vector<1x3x28xf32> to vector<3x28xf32>
    %c17 = arith.constant 17 : index
    %c0_117 = arith.constant 0 : index
    %c0_118 = arith.constant 0 : index
    %210 = vector.load %arg1[%c17, %c0_117, %c0_118] : memref<21x3x28xf32, #tpu.memory_space<vmem>>, vector<1x3x28xf32>
    %211 = vector.shape_cast %210 : vector<1x3x28xf32> to vector<3x28xf32>
    %c18 = arith.constant 18 : index
    %c0_119 = arith.constant 0 : index
    %c0_120 = arith.constant 0 : index
    %212 = vector.load %arg1[%c18, %c0_119, %c0_120] : memref<21x3x28xf32, #tpu.memory_space<vmem>>, vector<1x3x28xf32>
    %213 = vector.shape_cast %212 : vector<1x3x28xf32> to vector<3x28xf32>
    %c19 = arith.constant 19 : index
    %c0_121 = arith.constant 0 : index
    %c0_122 = arith.constant 0 : index
    %214 = vector.load %arg1[%c19, %c0_121, %c0_122] : memref<21x3x28xf32, #tpu.memory_space<vmem>>, vector<1x3x28xf32>
    %215 = vector.shape_cast %214 : vector<1x3x28xf32> to vector<3x28xf32>
    %c20 = arith.constant 20 : index
    %c0_123 = arith.constant 0 : index
    %c0_124 = arith.constant 0 : index
    %216 = vector.load %arg1[%c20, %c0_123, %c0_124] : memref<21x3x28xf32, #tpu.memory_space<vmem>>, vector<1x3x28xf32>
    %217 = vector.shape_cast %216 : vector<1x3x28xf32> to vector<3x28xf32>
    %c0_125 = arith.constant 0 : index
    %c0_126 = arith.constant 0 : index
    %c0_127 = arith.constant 0 : index
    %218 = vector.load %arg2[%c0_125, %c0_126, %c0_127] : memref<3x32x128xf32, #tpu.memory_space<vmem>>, vector<1x32x128xf32>
    %219 = vector.shape_cast %218 : vector<1x32x128xf32> to vector<32x128xf32>
    %c1_128 = arith.constant 1 : index
    %c0_129 = arith.constant 0 : index
    %c0_130 = arith.constant 0 : index
    %220 = vector.load %arg2[%c1_128, %c0_129, %c0_130] : memref<3x32x128xf32, #tpu.memory_space<vmem>>, vector<1x32x128xf32>
    %221 = vector.shape_cast %220 : vector<1x32x128xf32> to vector<32x128xf32>
    %c2_131 = arith.constant 2 : index
    %c0_132 = arith.constant 0 : index
    %c0_133 = arith.constant 0 : index
    %222 = vector.load %arg2[%c2_131, %c0_132, %c0_133] : memref<3x32x128xf32, #tpu.memory_space<vmem>>, vector<1x32x128xf32>
    %223 = vector.shape_cast %222 : vector<1x32x128xf32> to vector<32x128xf32>
    %c0_134 = arith.constant 0 : index
    %c0_135 = arith.constant 0 : index
    %224 = vector.load %arg3[%c0_134, %c0_135] : memref<1x128xf32, #tpu.memory_space<vmem>>, vector<1x128xf32>
    %cst = arith.constant 0.000000e+00 : f32
    %225 = vector.broadcast %cst : f32 to vector<3x32xf32>
    %226 = vector.extract_strided_slice %67 {offsets = [0, 0], sizes = [28, 38], strides = [1, 1]} : vector<56x38xf32> to vector<28x38xf32>
    %227 = vector.extract_strided_slice %226 {offsets = [0, 0], sizes = [28, 32], strides = [1, 1]} : vector<28x38xf32> to vector<28x32xf32>
    %cst_136 = arith.constant dense<0.000000e+00> : vector<3x32xf32>
    %228 = tpu.matmul %177, %227, %cst_136 {dimension_numbers = #tpu.dot_dimension_numbers<[1], [0], [0], [1], [0, 0, 1, 1], [], []>} : vector<3x28xf32>, vector<28x32xf32>, vector<3x32xf32> -> vector<3x32xf32>
    %229 = arith.addf %225, %228 : vector<3x32xf32>
    %230 = vector.extract_strided_slice %226 {offsets = [0, 1], sizes = [28, 32], strides = [1, 1]} : vector<28x38xf32> to vector<28x32xf32>
    %cst_137 = arith.constant dense<0.000000e+00> : vector<3x32xf32>
    %231 = tpu.matmul %179, %230, %cst_137 {dimension_numbers = #tpu.dot_dimension_numbers<[1], [0], [0], [1], [0, 0, 1, 1], [], []>} : vector<3x28xf32>, vector<28x32xf32>, vector<3x32xf32> -> vector<3x32xf32>
    %232 = arith.addf %229, %231 : vector<3x32xf32>
    %233 = vector.extract_strided_slice %226 {offsets = [0, 2], sizes = [28, 32], strides = [1, 1]} : vector<28x38xf32> to vector<28x32xf32>
    %cst_138 = arith.constant dense<0.000000e+00> : vector<3x32xf32>
    %234 = tpu.matmul %181, %233, %cst_138 {dimension_numbers = #tpu.dot_dimension_numbers<[1], [0], [0], [1], [0, 0, 1, 1], [], []>} : vector<3x28xf32>, vector<28x32xf32>, vector<3x32xf32> -> vector<3x32xf32>
    %235 = arith.addf %232, %234 : vector<3x32xf32>
    %236 = vector.extract_strided_slice %226 {offsets = [0, 3], sizes = [28, 32], strides = [1, 1]} : vector<28x38xf32> to vector<28x32xf32>
    %cst_139 = arith.constant dense<0.000000e+00> : vector<3x32xf32>
    %237 = tpu.matmul %183, %236, %cst_139 {dimension_numbers = #tpu.dot_dimension_numbers<[1], [0], [0], [1], [0, 0, 1, 1], [], []>} : vector<3x28xf32>, vector<28x32xf32>, vector<3x32xf32> -> vector<3x32xf32>
    %238 = arith.addf %235, %237 : vector<3x32xf32>
    %239 = vector.extract_strided_slice %226 {offsets = [0, 4], sizes = [28, 32], strides = [1, 1]} : vector<28x38xf32> to vector<28x32xf32>
    %cst_140 = arith.constant dense<0.000000e+00> : vector<3x32xf32>
    %240 = tpu.matmul %185, %239, %cst_140 {dimension_numbers = #tpu.dot_dimension_numbers<[1], [0], [0], [1], [0, 0, 1, 1], [], []>} : vector<3x28xf32>, vector<28x32xf32>, vector<3x32xf32> -> vector<3x32xf32>
    %241 = arith.addf %238, %240 : vector<3x32xf32>
    %242 = vector.extract_strided_slice %226 {offsets = [0, 5], sizes = [28, 32], strides = [1, 1]} : vector<28x38xf32> to vector<28x32xf32>
    %cst_141 = arith.constant dense<0.000000e+00> : vector<3x32xf32>
    %243 = tpu.matmul %187, %242, %cst_141 {dimension_numbers = #tpu.dot_dimension_numbers<[1], [0], [0], [1], [0, 0, 1, 1], [], []>} : vector<3x28xf32>, vector<28x32xf32>, vector<3x32xf32> -> vector<3x32xf32>
    %244 = arith.addf %241, %243 : vector<3x32xf32>
    %245 = vector.extract_strided_slice %226 {offsets = [0, 6], sizes = [28, 32], strides = [1, 1]} : vector<28x38xf32> to vector<28x32xf32>
    %cst_142 = arith.constant dense<0.000000e+00> : vector<3x32xf32>
    %246 = tpu.matmul %189, %245, %cst_142 {dimension_numbers = #tpu.dot_dimension_numbers<[1], [0], [0], [1], [0, 0, 1, 1], [], []>} : vector<3x28xf32>, vector<28x32xf32>, vector<3x32xf32> -> vector<3x32xf32>
    %247 = arith.addf %244, %246 : vector<3x32xf32>
    %248 = vector.extract_strided_slice %121 {offsets = [0, 0], sizes = [28, 38], strides = [1, 1]} : vector<56x38xf32> to vector<28x38xf32>
    %249 = vector.extract_strided_slice %248 {offsets = [0, 0], sizes = [28, 32], strides = [1, 1]} : vector<28x38xf32> to vector<28x32xf32>
    %cst_143 = arith.constant dense<0.000000e+00> : vector<3x32xf32>
    %250 = tpu.matmul %191, %249, %cst_143 {dimension_numbers = #tpu.dot_dimension_numbers<[1], [0], [0], [1], [0, 0, 1, 1], [], []>} : vector<3x28xf32>, vector<28x32xf32>, vector<3x32xf32> -> vector<3x32xf32>
    %251 = arith.addf %247, %250 : vector<3x32xf32>
    %252 = vector.extract_strided_slice %248 {offsets = [0, 1], sizes = [28, 32], strides = [1, 1]} : vector<28x38xf32> to vector<28x32xf32>
    %cst_144 = arith.constant dense<0.000000e+00> : vector<3x32xf32>
    %253 = tpu.matmul %193, %252, %cst_144 {dimension_numbers = #tpu.dot_dimension_numbers<[1], [0], [0], [1], [0, 0, 1, 1], [], []>} : vector<3x28xf32>, vector<28x32xf32>, vector<3x32xf32> -> vector<3x32xf32>
    %254 = arith.addf %251, %253 : vector<3x32xf32>
    %255 = vector.extract_strided_slice %248 {offsets = [0, 2], sizes = [28, 32], strides = [1, 1]} : vector<28x38xf32> to vector<28x32xf32>
    %cst_145 = arith.constant dense<0.000000e+00> : vector<3x32xf32>
    %256 = tpu.matmul %195, %255, %cst_145 {dimension_numbers = #tpu.dot_dimension_numbers<[1], [0], [0], [1], [0, 0, 1, 1], [], []>} : vector<3x28xf32>, vector<28x32xf32>, vector<3x32xf32> -> vector<3x32xf32>
    %257 = arith.addf %254, %256 : vector<3x32xf32>
    %258 = vector.extract_strided_slice %248 {offsets = [0, 3], sizes = [28, 32], strides = [1, 1]} : vector<28x38xf32> to vector<28x32xf32>
    %cst_146 = arith.constant dense<0.000000e+00> : vector<3x32xf32>
    %259 = tpu.matmul %197, %258, %cst_146 {dimension_numbers = #tpu.dot_dimension_numbers<[1], [0], [0], [1], [0, 0, 1, 1], [], []>} : vector<3x28xf32>, vector<28x32xf32>, vector<3x32xf32> -> vector<3x32xf32>
    %260 = arith.addf %257, %259 : vector<3x32xf32>
    %261 = vector.extract_strided_slice %248 {offsets = [0, 4], sizes = [28, 32], strides = [1, 1]} : vector<28x38xf32> to vector<28x32xf32>
    %cst_147 = arith.constant dense<0.000000e+00> : vector<3x32xf32>
    %262 = tpu.matmul %199, %261, %cst_147 {dimension_numbers = #tpu.dot_dimension_numbers<[1], [0], [0], [1], [0, 0, 1, 1], [], []>} : vector<3x28xf32>, vector<28x32xf32>, vector<3x32xf32> -> vector<3x32xf32>
    %263 = arith.addf %260, %262 : vector<3x32xf32>
    %264 = vector.extract_strided_slice %248 {offsets = [0, 5], sizes = [28, 32], strides = [1, 1]} : vector<28x38xf32> to vector<28x32xf32>
    %cst_148 = arith.constant dense<0.000000e+00> : vector<3x32xf32>
    %265 = tpu.matmul %201, %264, %cst_148 {dimension_numbers = #tpu.dot_dimension_numbers<[1], [0], [0], [1], [0, 0, 1, 1], [], []>} : vector<3x28xf32>, vector<28x32xf32>, vector<3x32xf32> -> vector<3x32xf32>
    %266 = arith.addf %263, %265 : vector<3x32xf32>
    %267 = vector.extract_strided_slice %248 {offsets = [0, 6], sizes = [28, 32], strides = [1, 1]} : vector<28x38xf32> to vector<28x32xf32>
    %cst_149 = arith.constant dense<0.000000e+00> : vector<3x32xf32>
    %268 = tpu.matmul %203, %267, %cst_149 {dimension_numbers = #tpu.dot_dimension_numbers<[1], [0], [0], [1], [0, 0, 1, 1], [], []>} : vector<3x28xf32>, vector<28x32xf32>, vector<3x32xf32> -> vector<3x32xf32>
    %269 = arith.addf %266, %268 : vector<3x32xf32>
    %270 = vector.extract_strided_slice %175 {offsets = [0, 0], sizes = [28, 38], strides = [1, 1]} : vector<56x38xf32> to vector<28x38xf32>
    %271 = vector.extract_strided_slice %270 {offsets = [0, 0], sizes = [28, 32], strides = [1, 1]} : vector<28x38xf32> to vector<28x32xf32>
    %cst_150 = arith.constant dense<0.000000e+00> : vector<3x32xf32>
    %272 = tpu.matmul %205, %271, %cst_150 {dimension_numbers = #tpu.dot_dimension_numbers<[1], [0], [0], [1], [0, 0, 1, 1], [], []>} : vector<3x28xf32>, vector<28x32xf32>, vector<3x32xf32> -> vector<3x32xf32>
    %273 = arith.addf %269, %272 : vector<3x32xf32>
    %274 = vector.extract_strided_slice %270 {offsets = [0, 1], sizes = [28, 32], strides = [1, 1]} : vector<28x38xf32> to vector<28x32xf32>
    %cst_151 = arith.constant dense<0.000000e+00> : vector<3x32xf32>
    %275 = tpu.matmul %207, %274, %cst_151 {dimension_numbers = #tpu.dot_dimension_numbers<[1], [0], [0], [1], [0, 0, 1, 1], [], []>} : vector<3x28xf32>, vector<28x32xf32>, vector<3x32xf32> -> vector<3x32xf32>
    %276 = arith.addf %273, %275 : vector<3x32xf32>
    %277 = vector.extract_strided_slice %270 {offsets = [0, 2], sizes = [28, 32], strides = [1, 1]} : vector<28x38xf32> to vector<28x32xf32>
    %cst_152 = arith.constant dense<0.000000e+00> : vector<3x32xf32>
    %278 = tpu.matmul %209, %277, %cst_152 {dimension_numbers = #tpu.dot_dimension_numbers<[1], [0], [0], [1], [0, 0, 1, 1], [], []>} : vector<3x28xf32>, vector<28x32xf32>, vector<3x32xf32> -> vector<3x32xf32>
    %279 = arith.addf %276, %278 : vector<3x32xf32>
    %280 = vector.extract_strided_slice %270 {offsets = [0, 3], sizes = [28, 32], strides = [1, 1]} : vector<28x38xf32> to vector<28x32xf32>
    %cst_153 = arith.constant dense<0.000000e+00> : vector<3x32xf32>
    %281 = tpu.matmul %211, %280, %cst_153 {dimension_numbers = #tpu.dot_dimension_numbers<[1], [0], [0], [1], [0, 0, 1, 1], [], []>} : vector<3x28xf32>, vector<28x32xf32>, vector<3x32xf32> -> vector<3x32xf32>
    %282 = arith.addf %279, %281 : vector<3x32xf32>
    %283 = vector.extract_strided_slice %270 {offsets = [0, 4], sizes = [28, 32], strides = [1, 1]} : vector<28x38xf32> to vector<28x32xf32>
    %cst_154 = arith.constant dense<0.000000e+00> : vector<3x32xf32>
    %284 = tpu.matmul %213, %283, %cst_154 {dimension_numbers = #tpu.dot_dimension_numbers<[1], [0], [0], [1], [0, 0, 1, 1], [], []>} : vector<3x28xf32>, vector<28x32xf32>, vector<3x32xf32> -> vector<3x32xf32>
    %285 = arith.addf %282, %284 : vector<3x32xf32>
    %286 = vector.extract_strided_slice %270 {offsets = [0, 5], sizes = [28, 32], strides = [1, 1]} : vector<28x38xf32> to vector<28x32xf32>
    %cst_155 = arith.constant dense<0.000000e+00> : vector<3x32xf32>
    %287 = tpu.matmul %215, %286, %cst_155 {dimension_numbers = #tpu.dot_dimension_numbers<[1], [0], [0], [1], [0, 0, 1, 1], [], []>} : vector<3x28xf32>, vector<28x32xf32>, vector<3x32xf32> -> vector<3x32xf32>
    %288 = arith.addf %285, %287 : vector<3x32xf32>
    %289 = vector.extract_strided_slice %270 {offsets = [0, 6], sizes = [28, 32], strides = [1, 1]} : vector<28x38xf32> to vector<28x32xf32>
    %cst_156 = arith.constant dense<0.000000e+00> : vector<3x32xf32>
    %290 = tpu.matmul %217, %289, %cst_156 {dimension_numbers = #tpu.dot_dimension_numbers<[1], [0], [0], [1], [0, 0, 1, 1], [], []>} : vector<3x28xf32>, vector<28x32xf32>, vector<3x32xf32> -> vector<3x32xf32>
    %291 = arith.addf %288, %290 : vector<3x32xf32>
    %292 = vector.extract_strided_slice %291 {offsets = [0, 0], sizes = [1, 32], strides = [1, 1]} : vector<3x32xf32> to vector<1x32xf32>
    %c0_157 = arith.constant 0 : index
    %293 = memref.load %arg6[%c0_157] : memref<3xf32, #tpu.memory_space<smem>>
    %294 = vector.broadcast %293 : f32 to vector<1x32xf32>
    %295 = arith.addf %292, %294 : vector<1x32xf32>
    %cst_158 = arith.constant dense<0.000000e+00> : vector<1x128xf32>
    %296 = tpu.matmul %295, %219, %cst_158 {dimension_numbers = #tpu.dot_dimension_numbers<[1], [0], [0], [1], [0, 0, 1, 1], [], []>} : vector<1x32xf32>, vector<32x128xf32>, vector<1x128xf32> -> vector<1x128xf32>
    %297 = arith.addf %224, %296 : vector<1x128xf32>
    %298 = vector.extract_strided_slice %291 {offsets = [1, 0], sizes = [1, 32], strides = [1, 1]} : vector<3x32xf32> to vector<1x32xf32>
    %c1_159 = arith.constant 1 : index
    %299 = memref.load %arg6[%c1_159] : memref<3xf32, #tpu.memory_space<smem>>
    %300 = vector.broadcast %299 : f32 to vector<1x32xf32>
    %301 = arith.addf %298, %300 : vector<1x32xf32>
    %cst_160 = arith.constant dense<0.000000e+00> : vector<1x128xf32>
    %302 = tpu.matmul %301, %221, %cst_160 {dimension_numbers = #tpu.dot_dimension_numbers<[1], [0], [0], [1], [0, 0, 1, 1], [], []>} : vector<1x32xf32>, vector<32x128xf32>, vector<1x128xf32> -> vector<1x128xf32>
    %303 = arith.addf %297, %302 : vector<1x128xf32>
    %304 = vector.extract_strided_slice %291 {offsets = [2, 0], sizes = [1, 32], strides = [1, 1]} : vector<3x32xf32> to vector<1x32xf32>
    %c2_161 = arith.constant 2 : index
    %305 = memref.load %arg6[%c2_161] : memref<3xf32, #tpu.memory_space<smem>>
    %306 = vector.broadcast %305 : f32 to vector<1x32xf32>
    %307 = arith.addf %304, %306 : vector<1x32xf32>
    %cst_162 = arith.constant dense<0.000000e+00> : vector<1x128xf32>
    %308 = tpu.matmul %307, %223, %cst_162 {dimension_numbers = #tpu.dot_dimension_numbers<[1], [0], [0], [1], [0, 0, 1, 1], [], []>} : vector<1x32xf32>, vector<32x128xf32>, vector<1x128xf32> -> vector<1x128xf32>
    %309 = arith.addf %303, %308 : vector<1x128xf32>
    %c0_163 = arith.constant 0 : index
    %c0_164 = arith.constant 0 : index
    %310 = vector.load %arg7[%c0_163, %c0_164] : memref<2x128xf32, #tpu.memory_space<vmem>>, vector<1x128xf32>
    tpu.vector_store %arg7[%c0_163, %c0_164], %309 {strides = array<i32>} : memref<2x128xf32, #tpu.memory_space<vmem>>, vector<1x128xf32>,
    %cst_165 = arith.constant 0.000000e+00 : f32
    %311 = vector.broadcast %cst_165 : f32 to vector<3x32xf32>
    %312 = vector.extract_strided_slice %67 {offsets = [28, 0], sizes = [28, 38], strides = [1, 1]} : vector<56x38xf32> to vector<28x38xf32>
    %313 = vector.extract_strided_slice %312 {offsets = [0, 0], sizes = [28, 32], strides = [1, 1]} : vector<28x38xf32> to vector<28x32xf32>
    %cst_166 = arith.constant dense<0.000000e+00> : vector<3x32xf32>
    %314 = tpu.matmul %177, %313, %cst_166 {dimension_numbers = #tpu.dot_dimension_numbers<[1], [0], [0], [1], [0, 0, 1, 1], [], []>} : vector<3x28xf32>, vector<28x32xf32>, vector<3x32xf32> -> vector<3x32xf32>
    %315 = arith.addf %311, %314 : vector<3x32xf32>
    %316 = vector.extract_strided_slice %312 {offsets = [0, 1], sizes = [28, 32], strides = [1, 1]} : vector<28x38xf32> to vector<28x32xf32>
    %cst_167 = arith.constant dense<0.000000e+00> : vector<3x32xf32>
    %317 = tpu.matmul %179, %316, %cst_167 {dimension_numbers = #tpu.dot_dimension_numbers<[1], [0], [0], [1], [0, 0, 1, 1], [], []>} : vector<3x28xf32>, vector<28x32xf32>, vector<3x32xf32> -> vector<3x32xf32>
    %318 = arith.addf %315, %317 : vector<3x32xf32>
    %319 = vector.extract_strided_slice %312 {offsets = [0, 2], sizes = [28, 32], strides = [1, 1]} : vector<28x38xf32> to vector<28x32xf32>
    %cst_168 = arith.constant dense<0.000000e+00> : vector<3x32xf32>
    %320 = tpu.matmul %181, %319, %cst_168 {dimension_numbers = #tpu.dot_dimension_numbers<[1], [0], [0], [1], [0, 0, 1, 1], [], []>} : vector<3x28xf32>, vector<28x32xf32>, vector<3x32xf32> -> vector<3x32xf32>
    %321 = arith.addf %318, %320 : vector<3x32xf32>
    %322 = vector.extract_strided_slice %312 {offsets = [0, 3], sizes = [28, 32], strides = [1, 1]} : vector<28x38xf32> to vector<28x32xf32>
    %cst_169 = arith.constant dense<0.000000e+00> : vector<3x32xf32>
    %323 = tpu.matmul %183, %322, %cst_169 {dimension_numbers = #tpu.dot_dimension_numbers<[1], [0], [0], [1], [0, 0, 1, 1], [], []>} : vector<3x28xf32>, vector<28x32xf32>, vector<3x32xf32> -> vector<3x32xf32>
    %324 = arith.addf %321, %323 : vector<3x32xf32>
    %325 = vector.extract_strided_slice %312 {offsets = [0, 4], sizes = [28, 32], strides = [1, 1]} : vector<28x38xf32> to vector<28x32xf32>
    %cst_170 = arith.constant dense<0.000000e+00> : vector<3x32xf32>
    %326 = tpu.matmul %185, %325, %cst_170 {dimension_numbers = #tpu.dot_dimension_numbers<[1], [0], [0], [1], [0, 0, 1, 1], [], []>} : vector<3x28xf32>, vector<28x32xf32>, vector<3x32xf32> -> vector<3x32xf32>
    %327 = arith.addf %324, %326 : vector<3x32xf32>
    %328 = vector.extract_strided_slice %312 {offsets = [0, 5], sizes = [28, 32], strides = [1, 1]} : vector<28x38xf32> to vector<28x32xf32>
    %cst_171 = arith.constant dense<0.000000e+00> : vector<3x32xf32>
    %329 = tpu.matmul %187, %328, %cst_171 {dimension_numbers = #tpu.dot_dimension_numbers<[1], [0], [0], [1], [0, 0, 1, 1], [], []>} : vector<3x28xf32>, vector<28x32xf32>, vector<3x32xf32> -> vector<3x32xf32>
    %330 = arith.addf %327, %329 : vector<3x32xf32>
    %331 = vector.extract_strided_slice %312 {offsets = [0, 6], sizes = [28, 32], strides = [1, 1]} : vector<28x38xf32> to vector<28x32xf32>
    %cst_172 = arith.constant dense<0.000000e+00> : vector<3x32xf32>
    %332 = tpu.matmul %189, %331, %cst_172 {dimension_numbers = #tpu.dot_dimension_numbers<[1], [0], [0], [1], [0, 0, 1, 1], [], []>} : vector<3x28xf32>, vector<28x32xf32>, vector<3x32xf32> -> vector<3x32xf32>
    %333 = arith.addf %330, %332 : vector<3x32xf32>
    %334 = vector.extract_strided_slice %121 {offsets = [28, 0], sizes = [28, 38], strides = [1, 1]} : vector<56x38xf32> to vector<28x38xf32>
    %335 = vector.extract_strided_slice %334 {offsets = [0, 0], sizes = [28, 32], strides = [1, 1]} : vector<28x38xf32> to vector<28x32xf32>
    %cst_173 = arith.constant dense<0.000000e+00> : vector<3x32xf32>
    %336 = tpu.matmul %191, %335, %cst_173 {dimension_numbers = #tpu.dot_dimension_numbers<[1], [0], [0], [1], [0, 0, 1, 1], [], []>} : vector<3x28xf32>, vector<28x32xf32>, vector<3x32xf32> -> vector<3x32xf32>
    %337 = arith.addf %333, %336 : vector<3x32xf32>
    %338 = vector.extract_strided_slice %334 {offsets = [0, 1], sizes = [28, 32], strides = [1, 1]} : vector<28x38xf32> to vector<28x32xf32>
    %cst_174 = arith.constant dense<0.000000e+00> : vector<3x32xf32>
    %339 = tpu.matmul %193, %338, %cst_174 {dimension_numbers = #tpu.dot_dimension_numbers<[1], [0], [0], [1], [0, 0, 1, 1], [], []>} : vector<3x28xf32>, vector<28x32xf32>, vector<3x32xf32> -> vector<3x32xf32>
    %340 = arith.addf %337, %339 : vector<3x32xf32>
    %341 = vector.extract_strided_slice %334 {offsets = [0, 2], sizes = [28, 32], strides = [1, 1]} : vector<28x38xf32> to vector<28x32xf32>
    %cst_175 = arith.constant dense<0.000000e+00> : vector<3x32xf32>
    %342 = tpu.matmul %195, %341, %cst_175 {dimension_numbers = #tpu.dot_dimension_numbers<[1], [0], [0], [1], [0, 0, 1, 1], [], []>} : vector<3x28xf32>, vector<28x32xf32>, vector<3x32xf32> -> vector<3x32xf32>
    %343 = arith.addf %340, %342 : vector<3x32xf32>
    %344 = vector.extract_strided_slice %334 {offsets = [0, 3], sizes = [28, 32], strides = [1, 1]} : vector<28x38xf32> to vector<28x32xf32>
    %cst_176 = arith.constant dense<0.000000e+00> : vector<3x32xf32>
    %345 = tpu.matmul %197, %344, %cst_176 {dimension_numbers = #tpu.dot_dimension_numbers<[1], [0], [0], [1], [0, 0, 1, 1], [], []>} : vector<3x28xf32>, vector<28x32xf32>, vector<3x32xf32> -> vector<3x32xf32>
    %346 = arith.addf %343, %345 : vector<3x32xf32>
    %347 = vector.extract_strided_slice %334 {offsets = [0, 4], sizes = [28, 32], strides = [1, 1]} : vector<28x38xf32> to vector<28x32xf32>
    %cst_177 = arith.constant dense<0.000000e+00> : vector<3x32xf32>
    %348 = tpu.matmul %199, %347, %cst_177 {dimension_numbers = #tpu.dot_dimension_numbers<[1], [0], [0], [1], [0, 0, 1, 1], [], []>} : vector<3x28xf32>, vector<28x32xf32>, vector<3x32xf32> -> vector<3x32xf32>
    %349 = arith.addf %346, %348 : vector<3x32xf32>
    %350 = vector.extract_strided_slice %334 {offsets = [0, 5], sizes = [28, 32], strides = [1, 1]} : vector<28x38xf32> to vector<28x32xf32>
    %cst_178 = arith.constant dense<0.000000e+00> : vector<3x32xf32>
    %351 = tpu.matmul %201, %350, %cst_178 {dimension_numbers = #tpu.dot_dimension_numbers<[1], [0], [0], [1], [0, 0, 1, 1], [], []>} : vector<3x28xf32>, vector<28x32xf32>, vector<3x32xf32> -> vector<3x32xf32>
    %352 = arith.addf %349, %351 : vector<3x32xf32>
    %353 = vector.extract_strided_slice %334 {offsets = [0, 6], sizes = [28, 32], strides = [1, 1]} : vector<28x38xf32> to vector<28x32xf32>
    %cst_179 = arith.constant dense<0.000000e+00> : vector<3x32xf32>
    %354 = tpu.matmul %203, %353, %cst_179 {dimension_numbers = #tpu.dot_dimension_numbers<[1], [0], [0], [1], [0, 0, 1, 1], [], []>} : vector<3x28xf32>, vector<28x32xf32>, vector<3x32xf32> -> vector<3x32xf32>
    %355 = arith.addf %352, %354 : vector<3x32xf32>
    %356 = vector.extract_strided_slice %175 {offsets = [28, 0], sizes = [28, 38], strides = [1, 1]} : vector<56x38xf32> to vector<28x38xf32>
    %357 = vector.extract_strided_slice %356 {offsets = [0, 0], sizes = [28, 32], strides = [1, 1]} : vector<28x38xf32> to vector<28x32xf32>
    %cst_180 = arith.constant dense<0.000000e+00> : vector<3x32xf32>
    %358 = tpu.matmul %205, %357, %cst_180 {dimension_numbers = #tpu.dot_dimension_numbers<[1], [0], [0], [1], [0, 0, 1, 1], [], []>} : vector<3x28xf32>, vector<28x32xf32>, vector<3x32xf32> -> vector<3x32xf32>
    %359 = arith.addf %355, %358 : vector<3x32xf32>
    %360 = vector.extract_strided_slice %356 {offsets = [0, 1], sizes = [28, 32], strides = [1, 1]} : vector<28x38xf32> to vector<28x32xf32>
    %cst_181 = arith.constant dense<0.000000e+00> : vector<3x32xf32>
    %361 = tpu.matmul %207, %360, %cst_181 {dimension_numbers = #tpu.dot_dimension_numbers<[1], [0], [0], [1], [0, 0, 1, 1], [], []>} : vector<3x28xf32>, vector<28x32xf32>, vector<3x32xf32> -> vector<3x32xf32>
    %362 = arith.addf %359, %361 : vector<3x32xf32>
    %363 = vector.extract_strided_slice %356 {offsets = [0, 2], sizes = [28, 32], strides = [1, 1]} : vector<28x38xf32> to vector<28x32xf32>
    %cst_182 = arith.constant dense<0.000000e+00> : vector<3x32xf32>
    %364 = tpu.matmul %209, %363, %cst_182 {dimension_numbers = #tpu.dot_dimension_numbers<[1], [0], [0], [1], [0, 0, 1, 1], [], []>} : vector<3x28xf32>, vector<28x32xf32>, vector<3x32xf32> -> vector<3x32xf32>
    %365 = arith.addf %362, %364 : vector<3x32xf32>
    %366 = vector.extract_strided_slice %356 {offsets = [0, 3], sizes = [28, 32], strides = [1, 1]} : vector<28x38xf32> to vector<28x32xf32>
    %cst_183 = arith.constant dense<0.000000e+00> : vector<3x32xf32>
    %367 = tpu.matmul %211, %366, %cst_183 {dimension_numbers = #tpu.dot_dimension_numbers<[1], [0], [0], [1], [0, 0, 1, 1], [], []>} : vector<3x28xf32>, vector<28x32xf32>, vector<3x32xf32> -> vector<3x32xf32>
    %368 = arith.addf %365, %367 : vector<3x32xf32>
    %369 = vector.extract_strided_slice %356 {offsets = [0, 4], sizes = [28, 32], strides = [1, 1]} : vector<28x38xf32> to vector<28x32xf32>
    %cst_184 = arith.constant dense<0.000000e+00> : vector<3x32xf32>
    %370 = tpu.matmul %213, %369, %cst_184 {dimension_numbers = #tpu.dot_dimension_numbers<[1], [0], [0], [1], [0, 0, 1, 1], [], []>} : vector<3x28xf32>, vector<28x32xf32>, vector<3x32xf32> -> vector<3x32xf32>
    %371 = arith.addf %368, %370 : vector<3x32xf32>
    %372 = vector.extract_strided_slice %356 {offsets = [0, 5], sizes = [28, 32], strides = [1, 1]} : vector<28x38xf32> to vector<28x32xf32>
    %cst_185 = arith.constant dense<0.000000e+00> : vector<3x32xf32>
    %373 = tpu.matmul %215, %372, %cst_185 {dimension_numbers = #tpu.dot_dimension_numbers<[1], [0], [0], [1], [0, 0, 1, 1], [], []>} : vector<3x28xf32>, vector<28x32xf32>, vector<3x32xf32> -> vector<3x32xf32>
    %374 = arith.addf %371, %373 : vector<3x32xf32>
    %375 = vector.extract_strided_slice %356 {offsets = [0, 6], sizes = [28, 32], strides = [1, 1]} : vector<28x38xf32> to vector<28x32xf32>
    %cst_186 = arith.constant dense<0.000000e+00> : vector<3x32xf32>
    %376 = tpu.matmul %217, %375, %cst_186 {dimension_numbers = #tpu.dot_dimension_numbers<[1], [0], [0], [1], [0, 0, 1, 1], [], []>} : vector<3x28xf32>, vector<28x32xf32>, vector<3x32xf32> -> vector<3x32xf32>
    %377 = arith.addf %374, %376 : vector<3x32xf32>
    %378 = vector.extract_strided_slice %377 {offsets = [0, 0], sizes = [1, 32], strides = [1, 1]} : vector<3x32xf32> to vector<1x32xf32>
    %c0_187 = arith.constant 0 : index
    %379 = memref.load %arg6[%c0_187] : memref<3xf32, #tpu.memory_space<smem>>
    %380 = vector.broadcast %379 : f32 to vector<1x32xf32>
    %381 = arith.addf %378, %380 : vector<1x32xf32>
    %cst_188 = arith.constant dense<0.000000e+00> : vector<1x128xf32>
    %382 = tpu.matmul %381, %219, %cst_188 {dimension_numbers = #tpu.dot_dimension_numbers<[1], [0], [0], [1], [0, 0, 1, 1], [], []>} : vector<1x32xf32>, vector<32x128xf32>, vector<1x128xf32> -> vector<1x128xf32>
    %383 = arith.addf %224, %382 : vector<1x128xf32>
    %384 = vector.extract_strided_slice %377 {offsets = [1, 0], sizes = [1, 32], strides = [1, 1]} : vector<3x32xf32> to vector<1x32xf32>
    %c1_189 = arith.constant 1 : index
    %385 = memref.load %arg6[%c1_189] : memref<3xf32, #tpu.memory_space<smem>>
    %386 = vector.broadcast %385 : f32 to vector<1x32xf32>
    %387 = arith.addf %384, %386 : vector<1x32xf32>
    %cst_190 = arith.constant dense<0.000000e+00> : vector<1x128xf32>
    %388 = tpu.matmul %387, %221, %cst_190 {dimension_numbers = #tpu.dot_dimension_numbers<[1], [0], [0], [1], [0, 0, 1, 1], [], []>} : vector<1x32xf32>, vector<32x128xf32>, vector<1x128xf32> -> vector<1x128xf32>
    %389 = arith.addf %383, %388 : vector<1x128xf32>
    %390 = vector.extract_strided_slice %377 {offsets = [2, 0], sizes = [1, 32], strides = [1, 1]} : vector<3x32xf32> to vector<1x32xf32>
    %c2_191 = arith.constant 2 : index
    %391 = memref.load %arg6[%c2_191] : memref<3xf32, #tpu.memory_space<smem>>
    %392 = vector.broadcast %391 : f32 to vector<1x32xf32>
    %393 = arith.addf %390, %392 : vector<1x32xf32>
    %cst_192 = arith.constant dense<0.000000e+00> : vector<1x128xf32>
    %394 = tpu.matmul %393, %223, %cst_192 {dimension_numbers = #tpu.dot_dimension_numbers<[1], [0], [0], [1], [0, 0, 1, 1], [], []>} : vector<1x32xf32>, vector<32x128xf32>, vector<1x128xf32> -> vector<1x128xf32>
    %395 = arith.addf %389, %394 : vector<1x128xf32>
    %c1_193 = arith.constant 1 : index
    %c0_194 = arith.constant 0 : index
    %396 = vector.load %arg7[%c1_193, %c0_194] : memref<2x128xf32, #tpu.memory_space<vmem>>, vector<1x128xf32>
    tpu.vector_store %arg7[%c1_193, %c0_194], %395 {strides = array<i32>} : memref<2x128xf32, #tpu.memory_space<vmem>>, vector<1x128xf32>,
    return
  }
}

</mosaic_0001>

<llo_original>
// kernel: convnet3_forward.1
$region0: #{convnet3_forward.1}
  #allocation0 [shape = 'u32[]', space=smem, size = 0x4, offset = 0x4, fixed_abs, tag = 'smem constant byte address 0x4 - core index']
  #allocation1 [shape = 'u32[72,128]{1,0:T(1,128)}', space=vmem, size = 0x9000, scoped, tag = 'internal scratch']
  %s0 = inlined_call_operand.vmem [shape: f32[56,50], index: 0, kind: input, shape index: {}]
  %s1 = inlined_call_operand.vmem [shape: f32[21,3,28], index: 1, kind: input, shape index: {}]
  %s2 = inlined_call_operand.vmem [shape: f32[3,32,128], index: 2, kind: input, shape index: {}]
  %s3 = inlined_call_operand.vmem [shape: f32[1,128], index: 3, kind: input, shape index: {}]
  %s4 = inlined_call_operand.vmem [shape: f32[3,13], index: 4, kind: input, shape index: {}]
  %s5 = inlined_call_operand.vmem [shape: f32[3], index: 5, kind: input, shape index: {}]
  %s6 = inlined_call_operand.vmem [shape: f32[3], index: 6, kind: input, shape index: {}]
  %s7 = inlined_call_operand.hbm [shape: f32[2,128], index: 7, kind: output, shape index: {}]
  %s8 = sld [smem:[#allocation0]]
  $region50: #{convnet3_forward.1} parent=0
    _
  %s10 = ssub.s32 1, %s8
  %s11 = scalar_select 0, %s10, %s8
  $region1: #{convnet3_forward.1} parent=0
    #allocation2 [shape = 'u8[2048]{0}', space=smem, size = 0x800, scoped, tag = 'input window, operand 4, single buffered']
    #allocation3 [shape = 's32[1]{0}', space=sflag, size = 0x4, scoped, tag = 'scoped memory for convnet3_forward.1']
    #allocation4 [shape = 's32[1]{0}', space=sflag, size = 0x4, scoped, tag = 'scoped memory for convnet3_forward.1']
    #allocation5 [shape = 'u8[512]{0}', space=smem, size = 0x200, scoped, tag = 'input window, operand 5, single buffered']
    #allocation6 [shape = 's32[1]{0}', space=sflag, size = 0x4, scoped, tag = 'scoped memory for convnet3_forward.1']
    #allocation7 [shape = 'u8[512]{0}', space=smem, size = 0x200, scoped, tag = 'input window, operand 6, single buffered']
    #allocation8 [shape = 'u8[1024]{0}', space=vmem, size = 0x400, scoped, tag = 'output window, operand 0, single buffered']
    %12 = vsyncpa [#allocation4], 0
    %13 = vsyncpa [#allocation6], 0
    %14 = vsyncpa [#allocation3], 0
    // Predicated region
    $region2: #{convnet3_forward.1} parent=1 // pred_check
      _
    $region3: #{convnet3_forward.1} parent=1 // pred_check_branch
      %16 = sbr.rel (0) target = $region5
    $region4: #{convnet3_forward.1} parent=1 // pred_region
      _
    $region5: #{convnet3_forward.1} parent=1 // pred_fallthru
      _
    // Predicated region
    $region6: #{convnet3_forward.1} parent=1 // pred_check
      _
    $region7: #{convnet3_forward.1} parent=1 // pred_check_branch
      %18 = sbr.rel (0) target = $region9
    $region8: #{convnet3_forward.1} parent=1 // pred_region
      _
    $region9: #{convnet3_forward.1} parent=1 // pred_fallthru
      _
    // Predicated region
    $region10: #{convnet3_forward.1} parent=1 // pred_check
      _
    $region11: #{convnet3_forward.1} parent=1 // pred_check_branch
      %20 = sbr.rel (0) target = $region13
    $region12: #{convnet3_forward.1} parent=1 // pred_region
      _
    $region13: #{convnet3_forward.1} parent=1 // pred_fallthru
      _
    // Predicated region
    $region14: #{convnet3_forward.1} parent=1 // pred_check
      _
    $region15: #{convnet3_forward.1} parent=1 // pred_check_branch
      %22 = sbr.rel (0) target = $region17
    $region16: #{convnet3_forward.1} parent=1 // pred_region
      _
    $region17: #{convnet3_forward.1} parent=1 // pred_fallthru
      _
    // Predicated region
    $region18: #{convnet3_forward.1} parent=1 // pred_check
      _
    $region19: #{convnet3_forward.1} parent=1 // pred_check_branch
      %24 = sbr.rel (0) target = $region21
    $region20: #{convnet3_forward.1} parent=1 // pred_region
      %26 = vsyncadd [#allocation4], 0
      %s28 = sshll.u32 %s4, 4
      %s29 = int_to_ptr.vmem [resolvable:$true] %s28
      %31 = dma.vmem_to_smem %s29, 64, [#allocation2], [#allocation4]
    $region21: #{convnet3_forward.1} parent=1 // pred_fallthru
      _
    // Predicated region
    $region22: #{convnet3_forward.1} parent=1 // pred_check
      _
    $region23: #{convnet3_forward.1} parent=1 // pred_check_branch
      %33 = sbr.rel (0) target = $region25
    $region24: #{convnet3_forward.1} parent=1 // pred_region
      %35 = vsyncadd [#allocation6], 0
      %s37 = sshll.u32 %s5, 4
      %s38 = int_to_ptr.vmem [resolvable:$true] %s37
      %40 = dma.vmem_to_smem %s38, 16, [#allocation5], [#allocation6]
    $region25: #{convnet3_forward.1} parent=1 // pred_fallthru
      _
    // Predicated region
    $region26: #{convnet3_forward.1} parent=1 // pred_check
      _
    $region27: #{convnet3_forward.1} parent=1 // pred_check_branch
      %42 = sbr.rel (0) target = $region29
    $region28: #{convnet3_forward.1} parent=1 // pred_region
      %44 = vsyncadd [#allocation6], 0
      %s46 = sshll.u32 %s6, 4
      %s47 = int_to_ptr.vmem [resolvable:$true] %s46
      %49 = dma.vmem_to_smem %s47, 16, [#allocation7], [#allocation6]
    $region29: #{convnet3_forward.1} parent=1 // pred_fallthru
      _
    // Predicated region
    $region30: #{convnet3_forward.1} parent=1 // pred_check
      _
    $region31: #{convnet3_forward.1} parent=1 // pred_check_branch
      %51 = sbr.rel (0) target = $region33
    $region32: #{convnet3_forward.1} parent=1 // pred_region
      %53 = dma.done [#allocation4], 64
    $region33: #{convnet3_forward.1} parent=1 // pred_fallthru
      _
    // Predicated region
    $region34: #{convnet3_forward.1} parent=1 // pred_check
      _
    $region35: #{convnet3_forward.1} parent=1 // pred_check_branch
      %55 = sbr.rel (0) target = $region37
    $region36: #{convnet3_forward.1} parent=1 // pred_region
      %57 = dma.done [#allocation6], 16
    $region37: #{convnet3_forward.1} parent=1 // pred_fallthru
      _
    // Predicated region
    $region38: #{convnet3_forward.1} parent=1 // pred_check
      _
    $region39: #{convnet3_forward.1} parent=1 // pred_check_branch
      %59 = sbr.rel (0) target = $region41
    $region40: #{convnet3_forward.1} parent=1 // pred_region
      %61 = dma.done [#allocation6], 16
    $region41: #{convnet3_forward.1} parent=1 // pred_fallthru
      _
    %62 = sfence
    %v63 = vld [vmem:[%s0] sm:$0xff]
    %v64 = vld [vmem:[%s0 + $0x8] sm:$0xff]
    %v65 = vld [vmem:[%s0 + $0x10] sm:$0xff]
    %v66 = vld [vmem:[%s0 + $0x18] sm:$0xff]
    %v67 = vld [vmem:[%s0 + $0x20] sm:$0xff]
    %v68 = vld [vmem:[%s0 + $0x28] sm:$0xff]
    %v69 = vld [vmem:[%s0 + $0x30] sm:$0xff]
    %s70 = sld [smem:[#allocation2]]
    %v71 = vstv %s70
    %v72 = vmul.f32 %v63, %v71
    %v73 = vmul.f32 %v64, %v71
    %v74 = vmul.f32 %v65, %v71
    %v75 = vmul.f32 %v66, %v71
    %v76 = vmul.f32 %v67, %v71
    %v77 = vmul.f32 %v68, %v71
    %v78 = vmul.f32 %v69, %v71
    %s79 = sld [smem:[#allocation2 + $0x1]]
    %v80 = vstv %s79
    %v81 = vmul.f32 %v63, %v80
    %v82 = vmul.f32 %v64, %v80
    %v83 = vmul.f32 %v65, %v80
    %v84 = vmul.f32 %v66, %v80
    %v85 = vmul.f32 %v67, %v80
    %v86 = vmul.f32 %v68, %v80
    %v87 = vmul.f32 %v69, %v80
    %95 = vrot.lane.b32.xlu0 %v81, 127
    %v96 = vpop.permute.xlu0 %95
    %97 = vrot.lane.b32.xlu0 %v82, 127
    %v98 = vpop.permute.xlu0 %97
    %99 = vrot.lane.b32.xlu0 %v83, 127
    %v100 = vpop.permute.xlu0 %99
    %101 = vrot.lane.b32.xlu0 %v84, 127
    %v102 = vpop.permute.xlu0 %101
    %103 = vrot.lane.b32.xlu0 %v85, 127
    %v104 = vpop.permute.xlu0 %103
    %105 = vrot.lane.b32.xlu0 %v86, 127
    %v106 = vpop.permute.xlu0 %105
    %107 = vrot.lane.b32.xlu0 %v87, 127
    %v108 = vpop.permute.xlu0 %107
    %v116 = vadd.f32 %v72, %v96
    %v117 = vadd.f32 %v73, %v98
    %v118 = vadd.f32 %v74, %v100
    %v119 = vadd.f32 %v75, %v102
    %v120 = vadd.f32 %v76, %v104
    %v121 = vadd.f32 %v77, %v106
    %v122 = vadd.f32 %v78, %v108
    %s123 = sld [smem:[#allocation2 + $0x2]]
    %v124 = vstv %s123
    %v125 = vmul.f32 %v63, %v124
    %v126 = vmul.f32 %v64, %v124
    %v127 = vmul.f32 %v65, %v124
    %v128 = vmul.f32 %v66, %v124
    %v129 = vmul.f32 %v67, %v124
    %v130 = vmul.f32 %v68, %v124
    %v131 = vmul.f32 %v69, %v124
    %139 = vrot.lane.b32.xlu0 %v125, 126
    %v140 = vpop.permute.xlu0 %139
    %141 = vrot.lane.b32.xlu0 %v126, 126
    %v142 = vpop.permute.xlu0 %141
    %143 = vrot.lane.b32.xlu0 %v127, 126
    %v144 = vpop.permute.xlu0 %143
    %145 = vrot.lane.b32.xlu0 %v128, 126
    %v146 = vpop.permute.xlu0 %145
    %147 = vrot.lane.b32.xlu0 %v129, 126
    %v148 = vpop.permute.xlu0 %147
    %149 = vrot.lane.b32.xlu0 %v130, 126
    %v150 = vpop.permute.xlu0 %149
    %151 = vrot.lane.b32.xlu0 %v131, 126
    %v152 = vpop.permute.xlu0 %151
    %v160 = vadd.f32 %v116, %v140
    %v161 = vadd.f32 %v117, %v142
    %v162 = vadd.f32 %v118, %v144
    %v163 = vadd.f32 %v119, %v146
    %v164 = vadd.f32 %v120, %v148
    %v165 = vadd.f32 %v121, %v150
    %v166 = vadd.f32 %v122, %v152
    %s167 = sld [smem:[#allocation2 + $0x3]]
    %v168 = vstv %s167
    %v169 = vmul.f32 %v63, %v168
    %v170 = vmul.f32 %v64, %v168
    %v171 = vmul.f32 %v65, %v168
    %v172 = vmul.f32 %v66, %v168
    %v173 = vmul.f32 %v67, %v168
    %v174 = vmul.f32 %v68, %v168
    %v175 = vmul.f32 %v69, %v168
    %183 = vrot.lane.b32.xlu0 %v169, 125
    %v184 = vpop.permute.xlu0 %183
    %185 = vrot.lane.b32.xlu0 %v170, 125
    %v186 = vpop.permute.xlu0 %185
    %187 = vrot.lane.b32.xlu0 %v171, 125
    %v188 = vpop.permute.xlu0 %187
    %189 = vrot.lane.b32.xlu0 %v172, 125
    %v190 = vpop.permute.xlu0 %189
    %191 = vrot.lane.b32.xlu0 %v173, 125
    %v192 = vpop.permute.xlu0 %191
    %193 = vrot.lane.b32.xlu0 %v174, 125
    %v194 = vpop.permute.xlu0 %193
    %195 = vrot.lane.b32.xlu0 %v175, 125
    %v196 = vpop.permute.xlu0 %195
    %v204 = vadd.f32 %v160, %v184
    %v205 = vadd.f32 %v161, %v186
    %v206 = vadd.f32 %v162, %v188
    %v207 = vadd.f32 %v163, %v190
    %v208 = vadd.f32 %v164, %v192
    %v209 = vadd.f32 %v165, %v194
    %v210 = vadd.f32 %v166, %v196
    %s211 = sld [smem:[#allocation2 + $0x4]]
    %v212 = vstv %s211
    %v213 = vmul.f32 %v63, %v212
    %v214 = vmul.f32 %v64, %v212
    %v215 = vmul.f32 %v65, %v212
    %v216 = vmul.f32 %v66, %v212
    %v217 = vmul.f32 %v67, %v212
    %v218 = vmul.f32 %v68, %v212
    %v219 = vmul.f32 %v69, %v212
    %227 = vrot.lane.b32.xlu0 %v213, 124
    %v228 = vpop.permute.xlu0 %227
    %229 = vrot.lane.b32.xlu0 %v214, 124
    %v230 = vpop.permute.xlu0 %229
    %231 = vrot.lane.b32.xlu0 %v215, 124
    %v232 = vpop.permute.xlu0 %231
    %233 = vrot.lane.b32.xlu0 %v216, 124
    %v234 = vpop.permute.xlu0 %233
    %235 = vrot.lane.b32.xlu0 %v217, 124
    %v236 = vpop.permute.xlu0 %235
    %237 = vrot.lane.b32.xlu0 %v218, 124
    %v238 = vpop.permute.xlu0 %237
    %239 = vrot.lane.b32.xlu0 %v219, 124
    %v240 = vpop.permute.xlu0 %239
    %v248 = vadd.f32 %v204, %v228
    %v249 = vadd.f32 %v205, %v230
    %v250 = vadd.f32 %v206, %v232
    %v251 = vadd.f32 %v207, %v234
    %v252 = vadd.f32 %v208, %v236
    %v253 = vadd.f32 %v209, %v238
    %v254 = vadd.f32 %v210, %v240
    %s255 = sld [smem:[#allocation2 + $0x5]]
    %v256 = vstv %s255
    %v257 = vmul.f32 %v63, %v256
    %v258 = vmul.f32 %v64, %v256
    %v259 = vmul.f32 %v65, %v256
    %v260 = vmul.f32 %v66, %v256
    %v261 = vmul.f32 %v67, %v256
    %v262 = vmul.f32 %v68, %v256
    %v263 = vmul.f32 %v69, %v256
    %271 = vrot.lane.b32.xlu0 %v257, 123
    %v272 = vpop.permute.xlu0 %271
    %273 = vrot.lane.b32.xlu0 %v258, 123
    %v274 = vpop.permute.xlu0 %273
    %275 = vrot.lane.b32.xlu0 %v259, 123
    %v276 = vpop.permute.xlu0 %275
    %277 = vrot.lane.b32.xlu0 %v260, 123
    %v278 = vpop.permute.xlu0 %277
    %279 = vrot.lane.b32.xlu0 %v261, 123
    %v280 = vpop.permute.xlu0 %279
    %281 = vrot.lane.b32.xlu0 %v262, 123
    %v282 = vpop.permute.xlu0 %281
    %283 = vrot.lane.b32.xlu0 %v263, 123
    %v284 = vpop.permute.xlu0 %283
    %v292 = vadd.f32 %v248, %v272
    %v293 = vadd.f32 %v249, %v274
    %v294 = vadd.f32 %v250, %v276
    %v295 = vadd.f32 %v251, %v278
    %v296 = vadd.f32 %v252, %v280
    %v297 = vadd.f32 %v253, %v282
    %v298 = vadd.f32 %v254, %v284
    %s299 = sld [smem:[#allocation2 + $0x6]]
    %v300 = vstv %s299
    %v301 = vmul.f32 %v63, %v300
    %v302 = vmul.f32 %v64, %v300
    %v303 = vmul.f32 %v65, %v300
    %v304 = vmul.f32 %v66, %v300
    %v305 = vmul.f32 %v67, %v300
    %v306 = vmul.f32 %v68, %v300
    %v307 = vmul.f32 %v69, %v300
    %315 = vrot.lane.b32.xlu0 %v301, 122
    %v316 = vpop.permute.xlu0 %315
    %317 = vrot.lane.b32.xlu0 %v302, 122
    %v318 = vpop.permute.xlu0 %317
    %319 = vrot.lane.b32.xlu0 %v303, 122
    %v320 = vpop.permute.xlu0 %319
    %321 = vrot.lane.b32.xlu0 %v304, 122
    %v322 = vpop.permute.xlu0 %321
    %323 = vrot.lane.b32.xlu0 %v305, 122
    %v324 = vpop.permute.xlu0 %323
    %325 = vrot.lane.b32.xlu0 %v306, 122
    %v326 = vpop.permute.xlu0 %325
    %327 = vrot.lane.b32.xlu0 %v307, 122
    %v328 = vpop.permute.xlu0 %327
    %v336 = vadd.f32 %v292, %v316
    %v337 = vadd.f32 %v293, %v318
    %v338 = vadd.f32 %v294, %v320
    %v339 = vadd.f32 %v295, %v322
    %v340 = vadd.f32 %v296, %v324
    %v341 = vadd.f32 %v297, %v326
    %v342 = vadd.f32 %v298, %v328
    %s343 = sld [smem:[#allocation2 + $0x7]]
    %v344 = vstv %s343
    %v345 = vmul.f32 %v63, %v344
    %v346 = vmul.f32 %v64, %v344
    %v347 = vmul.f32 %v65, %v344
    %v348 = vmul.f32 %v66, %v344
    %v349 = vmul.f32 %v67, %v344
    %v350 = vmul.f32 %v68, %v344
    %v351 = vmul.f32 %v69, %v344
    %359 = vrot.lane.b32.xlu0 %v345, 121
    %v360 = vpop.permute.xlu0 %359
    %361 = vrot.lane.b32.xlu0 %v346, 121
    %v362 = vpop.permute.xlu0 %361
    %363 = vrot.lane.b32.xlu0 %v347, 121
    %v364 = vpop.permute.xlu0 %363
    %365 = vrot.lane.b32.xlu0 %v348, 121
    %v366 = vpop.permute.xlu0 %365
    %367 = vrot.lane.b32.xlu0 %v349, 121
    %v368 = vpop.permute.xlu0 %367
    %369 = vrot.lane.b32.xlu0 %v350, 121
    %v370 = vpop.permute.xlu0 %369
    %371 = vrot.lane.b32.xlu0 %v351, 121
    %v372 = vpop.permute.xlu0 %371
    %v380 = vadd.f32 %v336, %v360
    %v381 = vadd.f32 %v337, %v362
    %v382 = vadd.f32 %v338, %v364
    %v383 = vadd.f32 %v339, %v366
    %v384 = vadd.f32 %v340, %v368
    %v385 = vadd.f32 %v341, %v370
    %v386 = vadd.f32 %v342, %v372
    %s387 = sld [smem:[#allocation2 + $0x8]]
    %v388 = vstv %s387
    %v389 = vmul.f32 %v63, %v388
    %v390 = vmul.f32 %v64, %v388
    %v391 = vmul.f32 %v65, %v388
    %v392 = vmul.f32 %v66, %v388
    %v393 = vmul.f32 %v67, %v388
    %v394 = vmul.f32 %v68, %v388
    %v395 = vmul.f32 %v69, %v388
    %403 = vrot.lane.b32.xlu0 %v389, 120
    %v404 = vpop.permute.xlu0 %403
    %405 = vrot.lane.b32.xlu0 %v390, 120
    %v406 = vpop.permute.xlu0 %405
    %407 = vrot.lane.b32.xlu0 %v391, 120
    %v408 = vpop.permute.xlu0 %407
    %409 = vrot.lane.b32.xlu0 %v392, 120
    %v410 = vpop.permute.xlu0 %409
    %411 = vrot.lane.b32.xlu0 %v393, 120
    %v412 = vpop.permute.xlu0 %411
    %413 = vrot.lane.b32.xlu0 %v394, 120
    %v414 = vpop.permute.xlu0 %413
    %415 = vrot.lane.b32.xlu0 %v395, 120
    %v416 = vpop.permute.xlu0 %415
    %v424 = vadd.f32 %v380, %v404
    %v425 = vadd.f32 %v381, %v406
    %v426 = vadd.f32 %v382, %v408
    %v427 = vadd.f32 %v383, %v410
    %v428 = vadd.f32 %v384, %v412
    %v429 = vadd.f32 %v385, %v414
    %v430 = vadd.f32 %v386, %v416
    %s431 = sld [smem:[#allocation2 + $0x9]]
    %v432 = vstv %s431
    %v433 = vmul.f32 %v63, %v432
    %v434 = vmul.f32 %v64, %v432
    %v435 = vmul.f32 %v65, %v432
    %v436 = vmul.f32 %v66, %v432
    %v437 = vmul.f32 %v67, %v432
    %v438 = vmul.f32 %v68, %v432
    %v439 = vmul.f32 %v69, %v432
    %447 = vrot.lane.b32.xlu0 %v433, 119
    %v448 = vpop.permute.xlu0 %447
    %449 = vrot.lane.b32.xlu0 %v434, 119
    %v450 = vpop.permute.xlu0 %449
    %451 = vrot.lane.b32.xlu0 %v435, 119
    %v452 = vpop.permute.xlu0 %451
    %453 = vrot.lane.b32.xlu0 %v436, 119
    %v454 = vpop.permute.xlu0 %453
    %455 = vrot.lane.b32.xlu0 %v437, 119
    %v456 = vpop.permute.xlu0 %455
    %457 = vrot.lane.b32.xlu0 %v438, 119
    %v458 = vpop.permute.xlu0 %457
    %459 = vrot.lane.b32.xlu0 %v439, 119
    %v460 = vpop.permute.xlu0 %459
    %v468 = vadd.f32 %v424, %v448
    %v469 = vadd.f32 %v425, %v450
    %v470 = vadd.f32 %v426, %v452
    %v471 = vadd.f32 %v427, %v454
    %v472 = vadd.f32 %v428, %v456
    %v473 = vadd.f32 %v429, %v458
    %v474 = vadd.f32 %v430, %v460
    %s475 = sld [smem:[#allocation2 + $0xa]]
    %v476 = vstv %s475
    %v477 = vmul.f32 %v63, %v476
    %v478 = vmul.f32 %v64, %v476
    %v479 = vmul.f32 %v65, %v476
    %v480 = vmul.f32 %v66, %v476
    %v481 = vmul.f32 %v67, %v476
    %v482 = vmul.f32 %v68, %v476
    %v483 = vmul.f32 %v69, %v476
    %491 = vrot.lane.b32.xlu0 %v477, 118
    %v492 = vpop.permute.xlu0 %491
    %493 = vrot.lane.b32.xlu0 %v478, 118
    %v494 = vpop.permute.xlu0 %493
    %495 = vrot.lane.b32.xlu0 %v479, 118
    %v496 = vpop.permute.xlu0 %495
    %497 = vrot.lane.b32.xlu0 %v480, 118
    %v498 = vpop.permute.xlu0 %497
    %499 = vrot.lane.b32.xlu0 %v481, 118
    %v500 = vpop.permute.xlu0 %499
    %501 = vrot.lane.b32.xlu0 %v482, 118
    %v502 = vpop.permute.xlu0 %501
    %503 = vrot.lane.b32.xlu0 %v483, 118
    %v504 = vpop.permute.xlu0 %503
    %v512 = vadd.f32 %v468, %v492
    %v513 = vadd.f32 %v469, %v494
    %v514 = vadd.f32 %v470, %v496
    %v515 = vadd.f32 %v471, %v498
    %v516 = vadd.f32 %v472, %v500
    %v517 = vadd.f32 %v473, %v502
    %v518 = vadd.f32 %v474, %v504
    %s519 = sld [smem:[#allocation2 + $0xb]]
    %v520 = vstv %s519
    %v521 = vmul.f32 %v63, %v520
    %v522 = vmul.f32 %v64, %v520
    %v523 = vmul.f32 %v65, %v520
    %v524 = vmul.f32 %v66, %v520
    %v525 = vmul.f32 %v67, %v520
    %v526 = vmul.f32 %v68, %v520
    %v527 = vmul.f32 %v69, %v520
    %535 = vrot.lane.b32.xlu0 %v521, 117
    %v536 = vpop.permute.xlu0 %535
    %537 = vrot.lane.b32.xlu0 %v522, 117
    %v538 = vpop.permute.xlu0 %537
    %539 = vrot.lane.b32.xlu0 %v523, 117
    %v540 = vpop.permute.xlu0 %539
    %541 = vrot.lane.b32.xlu0 %v524, 117
    %v542 = vpop.permute.xlu0 %541
    %543 = vrot.lane.b32.xlu0 %v525, 117
    %v544 = vpop.permute.xlu0 %543
    %545 = vrot.lane.b32.xlu0 %v526, 117
    %v546 = vpop.permute.xlu0 %545
    %547 = vrot.lane.b32.xlu0 %v527, 117
    %v548 = vpop.permute.xlu0 %547
    %v556 = vadd.f32 %v512, %v536
    %v557 = vadd.f32 %v513, %v538
    %v558 = vadd.f32 %v514, %v540
    %v559 = vadd.f32 %v515, %v542
    %v560 = vadd.f32 %v516, %v544
    %v561 = vadd.f32 %v517, %v546
    %v562 = vadd.f32 %v518, %v548
    %s563 = sld [smem:[#allocation2 + $0xc]]
    %v564 = vstv %s563
    %v565 = vmul.f32 %v63, %v564
    %v566 = vmul.f32 %v64, %v564
    %v567 = vmul.f32 %v65, %v564
    %v568 = vmul.f32 %v66, %v564
    %v569 = vmul.f32 %v67, %v564
    %v570 = vmul.f32 %v68, %v564
    %v571 = vmul.f32 %v69, %v564
    %579 = vrot.lane.b32.xlu0 %v565, 116
    %v580 = vpop.permute.xlu0 %579
    %581 = vrot.lane.b32.xlu0 %v566, 116
    %v582 = vpop.permute.xlu0 %581
    %583 = vrot.lane.b32.xlu0 %v567, 116
    %v584 = vpop.permute.xlu0 %583
    %585 = vrot.lane.b32.xlu0 %v568, 116
    %v586 = vpop.permute.xlu0 %585
    %587 = vrot.lane.b32.xlu0 %v569, 116
    %v588 = vpop.permute.xlu0 %587
    %589 = vrot.lane.b32.xlu0 %v570, 116
    %v590 = vpop.permute.xlu0 %589
    %591 = vrot.lane.b32.xlu0 %v571, 116
    %v592 = vpop.permute.xlu0 %591
    %v600 = vadd.f32 %v556, %v580
    %v601 = vadd.f32 %v557, %v582
    %v602 = vadd.f32 %v558, %v584
    %v603 = vadd.f32 %v559, %v586
    %v604 = vadd.f32 %v560, %v588
    %v605 = vadd.f32 %v561, %v590
    %v606 = vadd.f32 %v562, %v592
    %s607 = sld [smem:[#allocation5]]
    %v608 = vstv %s607
    %v609 = vadd.f32 %v600, %v608
    %v610 = vadd.f32 %v601, %v608
    %v611 = vadd.f32 %v602, %v608
    %v612 = vadd.f32 %v603, %v608
    %v613 = vadd.f32 %v604, %v608
    %v614 = vadd.f32 %v605, %v608
    %v615 = vadd.f32 %v606, %v608
    %s616 = sld [smem:[#allocation2 + $0x80]]
    %v617 = vstv %s616
    %v618 = vmul.f32 %v63, %v617
    %v619 = vmul.f32 %v64, %v617
    %v620 = vmul.f32 %v65, %v617
    %v621 = vmul.f32 %v66, %v617
    %v622 = vmul.f32 %v67, %v617
    %v623 = vmul.f32 %v68, %v617
    %v624 = vmul.f32 %v69, %v617
    %s625 = sld [smem:[#allocation2 + $0x81]]
    %v626 = vstv %s625
    %v627 = vmul.f32 %v63, %v626
    %v628 = vmul.f32 %v64, %v626
    %v629 = vmul.f32 %v65, %v626
    %v630 = vmul.f32 %v66, %v626
    %v631 = vmul.f32 %v67, %v626
    %v632 = vmul.f32 %v68, %v626
    %v633 = vmul.f32 %v69, %v626
    %641 = vrot.lane.b32.xlu0 %v627, 127
    %v642 = vpop.permute.xlu0 %641
    %643 = vrot.lane.b32.xlu0 %v628, 127
    %v644 = vpop.permute.xlu0 %643
    %645 = vrot.lane.b32.xlu0 %v629, 127
    %v646 = vpop.permute.xlu0 %645
    %647 = vrot.lane.b32.xlu0 %v630, 127
    %v648 = vpop.permute.xlu0 %647
    %649 = vrot.lane.b32.xlu0 %v631, 127
    %v650 = vpop.permute.xlu0 %649
    %651 = vrot.lane.b32.xlu0 %v632, 127
    %v652 = vpop.permute.xlu0 %651
    %653 = vrot.lane.b32.xlu0 %v633, 127
    %v654 = vpop.permute.xlu0 %653
    %v662 = vadd.f32 %v618, %v642
    %v663 = vadd.f32 %v619, %v644
    %v664 = vadd.f32 %v620, %v646
    %v665 = vadd.f32 %v621, %v648
    %v666 = vadd.f32 %v622, %v650
    %v667 = vadd.f32 %v623, %v652
    %v668 = vadd.f32 %v624, %v654
    %s669 = sld [smem:[#allocation2 + $0x82]]
    %v670 = vstv %s669
    %v671 = vmul.f32 %v63, %v670
    %v672 = vmul.f32 %v64, %v670
    %v673 = vmul.f32 %v65, %v670
    %v674 = vmul.f32 %v66, %v670
    %v675 = vmul.f32 %v67, %v670
    %v676 = vmul.f32 %v68, %v670
    %v677 = vmul.f32 %v69, %v670
    %685 = vrot.lane.b32.xlu0 %v671, 126
    %v686 = vpop.permute.xlu0 %685
    %687 = vrot.lane.b32.xlu0 %v672, 126
    %v688 = vpop.permute.xlu0 %687
    %689 = vrot.lane.b32.xlu0 %v673, 126
    %v690 = vpop.permute.xlu0 %689
    %691 = vrot.lane.b32.xlu0 %v674, 126
    %v692 = vpop.permute.xlu0 %691
    %693 = vrot.lane.b32.xlu0 %v675, 126
    %v694 = vpop.permute.xlu0 %693
    %695 = vrot.lane.b32.xlu0 %v676, 126
    %v696 = vpop.permute.xlu0 %695
    %697 = vrot.lane.b32.xlu0 %v677, 126
    %v698 = vpop.permute.xlu0 %697
    %v706 = vadd.f32 %v662, %v686
    %v707 = vadd.f32 %v663, %v688
    %v708 = vadd.f32 %v664, %v690
    %v709 = vadd.f32 %v665, %v692
    %v710 = vadd.f32 %v666, %v694
    %v711 = vadd.f32 %v667, %v696
    %v712 = vadd.f32 %v668, %v698
    %s713 = sld [smem:[#allocation2 + $0x83]]
    %v714 = vstv %s713
    %v715 = vmul.f32 %v63, %v714
    %v716 = vmul.f32 %v64, %v714
    %v717 = vmul.f32 %v65, %v714
    %v718 = vmul.f32 %v66, %v714
    %v719 = vmul.f32 %v67, %v714
    %v720 = vmul.f32 %v68, %v714
    %v721 = vmul.f32 %v69, %v714
    %729 = vrot.lane.b32.xlu0 %v715, 125
    %v730 = vpop.permute.xlu0 %729
    %731 = vrot.lane.b32.xlu0 %v716, 125
    %v732 = vpop.permute.xlu0 %731
    %733 = vrot.lane.b32.xlu0 %v717, 125
    %v734 = vpop.permute.xlu0 %733
    %735 = vrot.lane.b32.xlu0 %v718, 125
    %v736 = vpop.permute.xlu0 %735
    %737 = vrot.lane.b32.xlu0 %v719, 125
    %v738 = vpop.permute.xlu0 %737
    %739 = vrot.lane.b32.xlu0 %v720, 125
    %v740 = vpop.permute.xlu0 %739
    %741 = vrot.lane.b32.xlu0 %v721, 125
    %v742 = vpop.permute.xlu0 %741
    %v750 = vadd.f32 %v706, %v730
    %v751 = vadd.f32 %v707, %v732
    %v752 = vadd.f32 %v708, %v734
    %v753 = vadd.f32 %v709, %v736
    %v754 = vadd.f32 %v710, %v738
    %v755 = vadd.f32 %v711, %v740
    %v756 = vadd.f32 %v712, %v742
    %s757 = sld [smem:[#allocation2 + $0x84]]
    %v758 = vstv %s757
    %v759 = vmul.f32 %v63, %v758
    %v760 = vmul.f32 %v64, %v758
    %v761 = vmul.f32 %v65, %v758
    %v762 = vmul.f32 %v66, %v758
    %v763 = vmul.f32 %v67, %v758
    %v764 = vmul.f32 %v68, %v758
    %v765 = vmul.f32 %v69, %v758
    %773 = vrot.lane.b32.xlu0 %v759, 124
    %v774 = vpop.permute.xlu0 %773
    %775 = vrot.lane.b32.xlu0 %v760, 124
    %v776 = vpop.permute.xlu0 %775
    %777 = vrot.lane.b32.xlu0 %v761, 124
    %v778 = vpop.permute.xlu0 %777
    %779 = vrot.lane.b32.xlu0 %v762, 124
    %v780 = vpop.permute.xlu0 %779
    %781 = vrot.lane.b32.xlu0 %v763, 124
    %v782 = vpop.permute.xlu0 %781
    %783 = vrot.lane.b32.xlu0 %v764, 124
    %v784 = vpop.permute.xlu0 %783
    %785 = vrot.lane.b32.xlu0 %v765, 124
    %v786 = vpop.permute.xlu0 %785
    %v794 = vadd.f32 %v750, %v774
    %v795 = vadd.f32 %v751, %v776
    %v796 = vadd.f32 %v752, %v778
    %v797 = vadd.f32 %v753, %v780
    %v798 = vadd.f32 %v754, %v782
    %v799 = vadd.f32 %v755, %v784
    %v800 = vadd.f32 %v756, %v786
    %s801 = sld [smem:[#allocation2 + $0x85]]
    %v802 = vstv %s801
    %v803 = vmul.f32 %v63, %v802
    %v804 = vmul.f32 %v64, %v802
    %v805 = vmul.f32 %v65, %v802
    %v806 = vmul.f32 %v66, %v802
    %v807 = vmul.f32 %v67, %v802
    %v808 = vmul.f32 %v68, %v802
    %v809 = vmul.f32 %v69, %v802
    %817 = vrot.lane.b32.xlu0 %v803, 123
    %v818 = vpop.permute.xlu0 %817
    %819 = vrot.lane.b32.xlu0 %v804, 123
    %v820 = vpop.permute.xlu0 %819
    %821 = vrot.lane.b32.xlu0 %v805, 123
    %v822 = vpop.permute.xlu0 %821
    %823 = vrot.lane.b32.xlu0 %v806, 123
    %v824 = vpop.permute.xlu0 %823
    %825 = vrot.lane.b32.xlu0 %v807, 123
    %v826 = vpop.permute.xlu0 %825
    %827 = vrot.lane.b32.xlu0 %v808, 123
    %v828 = vpop.permute.xlu0 %827
    %829 = vrot.lane.b32.xlu0 %v809, 123
    %v830 = vpop.permute.xlu0 %829
    %v838 = vadd.f32 %v794, %v818
    %v839 = vadd.f32 %v795, %v820
    %v840 = vadd.f32 %v796, %v822
    %v841 = vadd.f32 %v797, %v824
    %v842 = vadd.f32 %v798, %v826
    %v843 = vadd.f32 %v799, %v828
    %v844 = vadd.f32 %v800, %v830
    %s845 = sld [smem:[#allocation2 + $0x86]]
    %v846 = vstv %s845
    %v847 = vmul.f32 %v63, %v846
    %v848 = vmul.f32 %v64, %v846
    %v849 = vmul.f32 %v65, %v846
    %v850 = vmul.f32 %v66, %v846
    %v851 = vmul.f32 %v67, %v846
    %v852 = vmul.f32 %v68, %v846
    %v853 = vmul.f32 %v69, %v846
    %861 = vrot.lane.b32.xlu0 %v847, 122
    %v862 = vpop.permute.xlu0 %861
    %863 = vrot.lane.b32.xlu0 %v848, 122
    %v864 = vpop.permute.xlu0 %863
    %865 = vrot.lane.b32.xlu0 %v849, 122
    %v866 = vpop.permute.xlu0 %865
    %867 = vrot.lane.b32.xlu0 %v850, 122
    %v868 = vpop.permute.xlu0 %867
    %869 = vrot.lane.b32.xlu0 %v851, 122
    %v870 = vpop.permute.xlu0 %869
    %871 = vrot.lane.b32.xlu0 %v852, 122
    %v872 = vpop.permute.xlu0 %871
    %873 = vrot.lane.b32.xlu0 %v853, 122
    %v874 = vpop.permute.xlu0 %873
    %v882 = vadd.f32 %v838, %v862
    %v883 = vadd.f32 %v839, %v864
    %v884 = vadd.f32 %v840, %v866
    %v885 = vadd.f32 %v841, %v868
    %v886 = vadd.f32 %v842, %v870
    %v887 = vadd.f32 %v843, %v872
    %v888 = vadd.f32 %v844, %v874
    %s889 = sld [smem:[#allocation2 + $0x87]]
    %v890 = vstv %s889
    %v891 = vmul.f32 %v63, %v890
    %v892 = vmul.f32 %v64, %v890
    %v893 = vmul.f32 %v65, %v890
    %v894 = vmul.f32 %v66, %v890
    %v895 = vmul.f32 %v67, %v890
    %v896 = vmul.f32 %v68, %v890
    %v897 = vmul.f32 %v69, %v890
    %905 = vrot.lane.b32.xlu0 %v891, 121
    %v906 = vpop.permute.xlu0 %905
    %907 = vrot.lane.b32.xlu0 %v892, 121
    %v908 = vpop.permute.xlu0 %907
    %909 = vrot.lane.b32.xlu0 %v893, 121
    %v910 = vpop.permute.xlu0 %909
    %911 = vrot.lane.b32.xlu0 %v894, 121
    %v912 = vpop.permute.xlu0 %911
    %913 = vrot.lane.b32.xlu0 %v895, 121
    %v914 = vpop.permute.xlu0 %913
    %915 = vrot.lane.b32.xlu0 %v896, 121
    %v916 = vpop.permute.xlu0 %915
    %917 = vrot.lane.b32.xlu0 %v897, 121
    %v918 = vpop.permute.xlu0 %917
    %v926 = vadd.f32 %v882, %v906
    %v927 = vadd.f32 %v883, %v908
    %v928 = vadd.f32 %v884, %v910
    %v929 = vadd.f32 %v885, %v912
    %v930 = vadd.f32 %v886, %v914
    %v931 = vadd.f32 %v887, %v916
    %v932 = vadd.f32 %v888, %v918
    %s933 = sld [smem:[#allocation2 + $0x88]]
    %v934 = vstv %s933
    %v935 = vmul.f32 %v63, %v934
    %v936 = vmul.f32 %v64, %v934
    %v937 = vmul.f32 %v65, %v934
    %v938 = vmul.f32 %v66, %v934
    %v939 = vmul.f32 %v67, %v934
    %v940 = vmul.f32 %v68, %v934
    %v941 = vmul.f32 %v69, %v934
    %949 = vrot.lane.b32.xlu0 %v935, 120
    %v950 = vpop.permute.xlu0 %949
    %951 = vrot.lane.b32.xlu0 %v936, 120
    %v952 = vpop.permute.xlu0 %951
    %953 = vrot.lane.b32.xlu0 %v937, 120
    %v954 = vpop.permute.xlu0 %953
    %955 = vrot.lane.b32.xlu0 %v938, 120
    %v956 = vpop.permute.xlu0 %955
    %957 = vrot.lane.b32.xlu0 %v939, 120
    %v958 = vpop.permute.xlu0 %957
    %959 = vrot.lane.b32.xlu0 %v940, 120
    %v960 = vpop.permute.xlu0 %959
    %961 = vrot.lane.b32.xlu0 %v941, 120
    %v962 = vpop.permute.xlu0 %961
    %v970 = vadd.f32 %v926, %v950
    %v971 = vadd.f32 %v927, %v952
    %v972 = vadd.f32 %v928, %v954
    %v973 = vadd.f32 %v929, %v956
    %v974 = vadd.f32 %v930, %v958
    %v975 = vadd.f32 %v931, %v960
    %v976 = vadd.f32 %v932, %v962
    %s977 = sld [smem:[#allocation2 + $0x89]]
    %v978 = vstv %s977
    %v979 = vmul.f32 %v63, %v978
    %v980 = vmul.f32 %v64, %v978
    %v981 = vmul.f32 %v65, %v978
    %v982 = vmul.f32 %v66, %v978
    %v983 = vmul.f32 %v67, %v978
    %v984 = vmul.f32 %v68, %v978
    %v985 = vmul.f32 %v69, %v978
    %993 = vrot.lane.b32.xlu0 %v979, 119
    %v994 = vpop.permute.xlu0 %993
    %995 = vrot.lane.b32.xlu0 %v980, 119
    %v996 = vpop.permute.xlu0 %995
    %997 = vrot.lane.b32.xlu0 %v981, 119
    %v998 = vpop.permute.xlu0 %997
    %999 = vrot.lane.b32.xlu0 %v982, 119
    %v1000 = vpop.permute.xlu0 %999
    %1001 = vrot.lane.b32.xlu0 %v983, 119
    %v1002 = vpop.permute.xlu0 %1001
    %1003 = vrot.lane.b32.xlu0 %v984, 119
    %v1004 = vpop.permute.xlu0 %1003
    %1005 = vrot.lane.b32.xlu0 %v985, 119
    %v1006 = vpop.permute.xlu0 %1005
    %v1014 = vadd.f32 %v970, %v994
    %v1015 = vadd.f32 %v971, %v996
    %v1016 = vadd.f32 %v972, %v998
    %v1017 = vadd.f32 %v973, %v1000
    %v1018 = vadd.f32 %v974, %v1002
    %v1019 = vadd.f32 %v975, %v1004
    %v1020 = vadd.f32 %v976, %v1006
    %s1021 = sld [smem:[#allocation2 + $0x8a]]
    %v1022 = vstv %s1021
    %v1023 = vmul.f32 %v63, %v1022
    %v1024 = vmul.f32 %v64, %v1022
    %v1025 = vmul.f32 %v65, %v1022
    %v1026 = vmul.f32 %v66, %v1022
    %v1027 = vmul.f32 %v67, %v1022
    %v1028 = vmul.f32 %v68, %v1022
    %v1029 = vmul.f32 %v69, %v1022
    %1037 = vrot.lane.b32.xlu0 %v1023, 118
    %v1038 = vpop.permute.xlu0 %1037
    %1039 = vrot.lane.b32.xlu0 %v1024, 118
    %v1040 = vpop.permute.xlu0 %1039
    %1041 = vrot.lane.b32.xlu0 %v1025, 118
    %v1042 = vpop.permute.xlu0 %1041
    %1043 = vrot.lane.b32.xlu0 %v1026, 118
    %v1044 = vpop.permute.xlu0 %1043
    %1045 = vrot.lane.b32.xlu0 %v1027, 118
    %v1046 = vpop.permute.xlu0 %1045
    %1047 = vrot.lane.b32.xlu0 %v1028, 118
    %v1048 = vpop.permute.xlu0 %1047
    %1049 = vrot.lane.b32.xlu0 %v1029, 118
    %v1050 = vpop.permute.xlu0 %1049
    %v1058 = vadd.f32 %v1014, %v1038
    %v1059 = vadd.f32 %v1015, %v1040
    %v1060 = vadd.f32 %v1016, %v1042
    %v1061 = vadd.f32 %v1017, %v1044
    %v1062 = vadd.f32 %v1018, %v1046
    %v1063 = vadd.f32 %v1019, %v1048
    %v1064 = vadd.f32 %v1020, %v1050
    %s1065 = sld [smem:[#allocation2 + $0x8b]]
    %v1066 = vstv %s1065
    %v1067 = vmul.f32 %v63, %v1066
    %v1068 = vmul.f32 %v64, %v1066
    %v1069 = vmul.f32 %v65, %v1066
    %v1070 = vmul.f32 %v66, %v1066
    %v1071 = vmul.f32 %v67, %v1066
    %v1072 = vmul.f32 %v68, %v1066
    %v1073 = vmul.f32 %v69, %v1066
    %1081 = vrot.lane.b32.xlu0 %v1067, 117
    %v1082 = vpop.permute.xlu0 %1081
    %1083 = vrot.lane.b32.xlu0 %v1068, 117
    %v1084 = vpop.permute.xlu0 %1083
    %1085 = vrot.lane.b32.xlu0 %v1069, 117
    %v1086 = vpop.permute.xlu0 %1085
    %1087 = vrot.lane.b32.xlu0 %v1070, 117
    %v1088 = vpop.permute.xlu0 %1087
    %1089 = vrot.lane.b32.xlu0 %v1071, 117
    %v1090 = vpop.permute.xlu0 %1089
    %1091 = vrot.lane.b32.xlu0 %v1072, 117
    %v1092 = vpop.permute.xlu0 %1091
    %1093 = vrot.lane.b32.xlu0 %v1073, 117
    %v1094 = vpop.permute.xlu0 %1093
    %v1102 = vadd.f32 %v1058, %v1082
    %v1103 = vadd.f32 %v1059, %v1084
    %v1104 = vadd.f32 %v1060, %v1086
    %v1105 = vadd.f32 %v1061, %v1088
    %v1106 = vadd.f32 %v1062, %v1090
    %v1107 = vadd.f32 %v1063, %v1092
    %v1108 = vadd.f32 %v1064, %v1094
    %s1109 = sld [smem:[#allocation2 + $0x8c]]
    %v1110 = vstv %s1109
    %v1111 = vmul.f32 %v63, %v1110
    %v1112 = vmul.f32 %v64, %v1110
    %v1113 = vmul.f32 %v65, %v1110
    %v1114 = vmul.f32 %v66, %v1110
    %v1115 = vmul.f32 %v67, %v1110
    %v1116 = vmul.f32 %v68, %v1110
    %v1117 = vmul.f32 %v69, %v1110
    %1125 = vrot.lane.b32.xlu0 %v1111, 116
    %v1126 = vpop.permute.xlu0 %1125
    %1127 = vrot.lane.b32.xlu0 %v1112, 116
    %v1128 = vpop.permute.xlu0 %1127
    %1129 = vrot.lane.b32.xlu0 %v1113, 116
    %v1130 = vpop.permute.xlu0 %1129
    %1131 = vrot.lane.b32.xlu0 %v1114, 116
    %v1132 = vpop.permute.xlu0 %1131
    %1133 = vrot.lane.b32.xlu0 %v1115, 116
    %v1134 = vpop.permute.xlu0 %1133
    %1135 = vrot.lane.b32.xlu0 %v1116, 116
    %v1136 = vpop.permute.xlu0 %1135
    %1137 = vrot.lane.b32.xlu0 %v1117, 116
    %v1138 = vpop.permute.xlu0 %1137
    %v1146 = vadd.f32 %v1102, %v1126
    %v1147 = vadd.f32 %v1103, %v1128
    %v1148 = vadd.f32 %v1104, %v1130
    %v1149 = vadd.f32 %v1105, %v1132
    %v1150 = vadd.f32 %v1106, %v1134
    %v1151 = vadd.f32 %v1107, %v1136
    %v1152 = vadd.f32 %v1108, %v1138
    %s1153 = sld [smem:[#allocation5 + $0x1]]
    %v1154 = vstv %s1153
    %v1155 = vadd.f32 %v1146, %v1154
    %v1156 = vadd.f32 %v1147, %v1154
    %v1157 = vadd.f32 %v1148, %v1154
    %v1158 = vadd.f32 %v1149, %v1154
    %v1159 = vadd.f32 %v1150, %v1154
    %v1160 = vadd.f32 %v1151, %v1154
    %v1161 = vadd.f32 %v1152, %v1154
    %s1162 = sld [smem:[#allocation2 + $0x100]]
    %v1163 = vstv %s1162
    %v1164 = vmul.f32 %v63, %v1163
    %v1165 = vmul.f32 %v64, %v1163
    %v1166 = vmul.f32 %v65, %v1163
    %v1167 = vmul.f32 %v66, %v1163
    %v1168 = vmul.f32 %v67, %v1163
    %v1169 = vmul.f32 %v68, %v1163
    %v1170 = vmul.f32 %v69, %v1163
    %s1171 = sld [smem:[#allocation2 + $0x101]]
    %v1172 = vstv %s1171
    %v1173 = vmul.f32 %v63, %v1172
    %v1174 = vmul.f32 %v64, %v1172
    %v1175 = vmul.f32 %v65, %v1172
    %v1176 = vmul.f32 %v66, %v1172
    %v1177 = vmul.f32 %v67, %v1172
    %v1178 = vmul.f32 %v68, %v1172
    %v1179 = vmul.f32 %v69, %v1172
    %1187 = vrot.lane.b32.xlu0 %v1173, 127
    %v1188 = vpop.permute.xlu0 %1187
    %1189 = vrot.lane.b32.xlu0 %v1174, 127
    %v1190 = vpop.permute.xlu0 %1189
    %1191 = vrot.lane.b32.xlu0 %v1175, 127
    %v1192 = vpop.permute.xlu0 %1191
    %1193 = vrot.lane.b32.xlu0 %v1176, 127
    %v1194 = vpop.permute.xlu0 %1193
    %1195 = vrot.lane.b32.xlu0 %v1177, 127
    %v1196 = vpop.permute.xlu0 %1195
    %1197 = vrot.lane.b32.xlu0 %v1178, 127
    %v1198 = vpop.permute.xlu0 %1197
    %1199 = vrot.lane.b32.xlu0 %v1179, 127
    %v1200 = vpop.permute.xlu0 %1199
    %v1208 = vadd.f32 %v1164, %v1188
    %v1209 = vadd.f32 %v1165, %v1190
    %v1210 = vadd.f32 %v1166, %v1192
    %v1211 = vadd.f32 %v1167, %v1194
    %v1212 = vadd.f32 %v1168, %v1196
    %v1213 = vadd.f32 %v1169, %v1198
    %v1214 = vadd.f32 %v1170, %v1200
    %s1215 = sld [smem:[#allocation2 + $0x102]]
    %v1216 = vstv %s1215
    %v1217 = vmul.f32 %v63, %v1216
    %v1218 = vmul.f32 %v64, %v1216
    %v1219 = vmul.f32 %v65, %v1216
    %v1220 = vmul.f32 %v66, %v1216
    %v1221 = vmul.f32 %v67, %v1216
    %v1222 = vmul.f32 %v68, %v1216
    %v1223 = vmul.f32 %v69, %v1216
    %1231 = vrot.lane.b32.xlu0 %v1217, 126
    %v1232 = vpop.permute.xlu0 %1231
    %1233 = vrot.lane.b32.xlu0 %v1218, 126
    %v1234 = vpop.permute.xlu0 %1233
    %1235 = vrot.lane.b32.xlu0 %v1219, 126
    %v1236 = vpop.permute.xlu0 %1235
    %1237 = vrot.lane.b32.xlu0 %v1220, 126
    %v1238 = vpop.permute.xlu0 %1237
    %1239 = vrot.lane.b32.xlu0 %v1221, 126
    %v1240 = vpop.permute.xlu0 %1239
    %1241 = vrot.lane.b32.xlu0 %v1222, 126
    %v1242 = vpop.permute.xlu0 %1241
    %1243 = vrot.lane.b32.xlu0 %v1223, 126
    %v1244 = vpop.permute.xlu0 %1243
    %v1252 = vadd.f32 %v1208, %v1232
    %v1253 = vadd.f32 %v1209, %v1234
    %v1254 = vadd.f32 %v1210, %v1236
    %v1255 = vadd.f32 %v1211, %v1238
    %v1256 = vadd.f32 %v1212, %v1240
    %v1257 = vadd.f32 %v1213, %v1242
    %v1258 = vadd.f32 %v1214, %v1244
    %s1259 = sld [smem:[#allocation2 + $0x103]]
    %v1260 = vstv %s1259
    %v1261 = vmul.f32 %v63, %v1260
    %v1262 = vmul.f32 %v64, %v1260
    %v1263 = vmul.f32 %v65, %v1260
    %v1264 = vmul.f32 %v66, %v1260
    %v1265 = vmul.f32 %v67, %v1260
    %v1266 = vmul.f32 %v68, %v1260
    %v1267 = vmul.f32 %v69, %v1260
    %1275 = vrot.lane.b32.xlu0 %v1261, 125
    %v1276 = vpop.permute.xlu0 %1275
    %1277 = vrot.lane.b32.xlu0 %v1262, 125
    %v1278 = vpop.permute.xlu0 %1277
    %1279 = vrot.lane.b32.xlu0 %v1263, 125
    %v1280 = vpop.permute.xlu0 %1279
    %1281 = vrot.lane.b32.xlu0 %v1264, 125
    %v1282 = vpop.permute.xlu0 %1281
    %1283 = vrot.lane.b32.xlu0 %v1265, 125
    %v1284 = vpop.permute.xlu0 %1283
    %1285 = vrot.lane.b32.xlu0 %v1266, 125
    %v1286 = vpop.permute.xlu0 %1285
    %1287 = vrot.lane.b32.xlu0 %v1267, 125
    %v1288 = vpop.permute.xlu0 %1287
    %v1296 = vadd.f32 %v1252, %v1276
    %v1297 = vadd.f32 %v1253, %v1278
    %v1298 = vadd.f32 %v1254, %v1280
    %v1299 = vadd.f32 %v1255, %v1282
    %v1300 = vadd.f32 %v1256, %v1284
    %v1301 = vadd.f32 %v1257, %v1286
    %v1302 = vadd.f32 %v1258, %v1288
    %s1303 = sld [smem:[#allocation2 + $0x104]]
    %v1304 = vstv %s1303
    %v1305 = vmul.f32 %v63, %v1304
    %v1306 = vmul.f32 %v64, %v1304
    %v1307 = vmul.f32 %v65, %v1304
    %v1308 = vmul.f32 %v66, %v1304
    %v1309 = vmul.f32 %v67, %v1304
    %v1310 = vmul.f32 %v68, %v1304
    %v1311 = vmul.f32 %v69, %v1304
    %1319 = vrot.lane.b32.xlu0 %v1305, 124
    %v1320 = vpop.permute.xlu0 %1319
    %1321 = vrot.lane.b32.xlu0 %v1306, 124
    %v1322 = vpop.permute.xlu0 %1321
    %1323 = vrot.lane.b32.xlu0 %v1307, 124
    %v1324 = vpop.permute.xlu0 %1323
    %1325 = vrot.lane.b32.xlu0 %v1308, 124
    %v1326 = vpop.permute.xlu0 %1325
    %1327 = vrot.lane.b32.xlu0 %v1309, 124
    %v1328 = vpop.permute.xlu0 %1327
    %1329 = vrot.lane.b32.xlu0 %v1310, 124
    %v1330 = vpop.permute.xlu0 %1329
    %1331 = vrot.lane.b32.xlu0 %v1311, 124
    %v1332 = vpop.permute.xlu0 %1331
    %v1340 = vadd.f32 %v1296, %v1320
    %v1341 = vadd.f32 %v1297, %v1322
    %v1342 = vadd.f32 %v1298, %v1324
    %v1343 = vadd.f32 %v1299, %v1326
    %v1344 = vadd.f32 %v1300, %v1328
    %v1345 = vadd.f32 %v1301, %v1330
    %v1346 = vadd.f32 %v1302, %v1332
    %s1347 = sld [smem:[#allocation2 + $0x105]]
    %v1348 = vstv %s1347
    %v1349 = vmul.f32 %v63, %v1348
    %v1350 = vmul.f32 %v64, %v1348
    %v1351 = vmul.f32 %v65, %v1348
    %v1352 = vmul.f32 %v66, %v1348
    %v1353 = vmul.f32 %v67, %v1348
    %v1354 = vmul.f32 %v68, %v1348
    %v1355 = vmul.f32 %v69, %v1348
    %1363 = vrot.lane.b32.xlu0 %v1349, 123
    %v1364 = vpop.permute.xlu0 %1363
    %1365 = vrot.lane.b32.xlu0 %v1350, 123
    %v1366 = vpop.permute.xlu0 %1365
    %1367 = vrot.lane.b32.xlu0 %v1351, 123
    %v1368 = vpop.permute.xlu0 %1367
    %1369 = vrot.lane.b32.xlu0 %v1352, 123
    %v1370 = vpop.permute.xlu0 %1369
    %1371 = vrot.lane.b32.xlu0 %v1353, 123
    %v1372 = vpop.permute.xlu0 %1371
    %1373 = vrot.lane.b32.xlu0 %v1354, 123
    %v1374 = vpop.permute.xlu0 %1373
    %1375 = vrot.lane.b32.xlu0 %v1355, 123
    %v1376 = vpop.permute.xlu0 %1375
    %v1384 = vadd.f32 %v1340, %v1364
    %v1385 = vadd.f32 %v1341, %v1366
    %v1386 = vadd.f32 %v1342, %v1368
    %v1387 = vadd.f32 %v1343, %v1370
    %v1388 = vadd.f32 %v1344, %v1372
    %v1389 = vadd.f32 %v1345, %v1374
    %v1390 = vadd.f32 %v1346, %v1376
    %s1391 = sld [smem:[#allocation2 + $0x106]]
    %v1392 = vstv %s1391
    %v1393 = vmul.f32 %v63, %v1392
    %v1394 = vmul.f32 %v64, %v1392
    %v1395 = vmul.f32 %v65, %v1392
    %v1396 = vmul.f32 %v66, %v1392
    %v1397 = vmul.f32 %v67, %v1392
    %v1398 = vmul.f32 %v68, %v1392
    %v1399 = vmul.f32 %v69, %v1392
    %1407 = vrot.lane.b32.xlu0 %v1393, 122
    %v1408 = vpop.permute.xlu0 %1407
    %1409 = vrot.lane.b32.xlu0 %v1394, 122
    %v1410 = vpop.permute.xlu0 %1409
    %1411 = vrot.lane.b32.xlu0 %v1395, 122
    %v1412 = vpop.permute.xlu0 %1411
    %1413 = vrot.lane.b32.xlu0 %v1396, 122
    %v1414 = vpop.permute.xlu0 %1413
    %1415 = vrot.lane.b32.xlu0 %v1397, 122
    %v1416 = vpop.permute.xlu0 %1415
    %1417 = vrot.lane.b32.xlu0 %v1398, 122
    %v1418 = vpop.permute.xlu0 %1417
    %1419 = vrot.lane.b32.xlu0 %v1399, 122
    %v1420 = vpop.permute.xlu0 %1419
    %v1428 = vadd.f32 %v1384, %v1408
    %v1429 = vadd.f32 %v1385, %v1410
    %v1430 = vadd.f32 %v1386, %v1412
    %v1431 = vadd.f32 %v1387, %v1414
    %v1432 = vadd.f32 %v1388, %v1416
    %v1433 = vadd.f32 %v1389, %v1418
    %v1434 = vadd.f32 %v1390, %v1420
    %s1435 = sld [smem:[#allocation2 + $0x107]]
    %v1436 = vstv %s1435
    %v1437 = vmul.f32 %v63, %v1436
    %v1438 = vmul.f32 %v64, %v1436
    %v1439 = vmul.f32 %v65, %v1436
    %v1440 = vmul.f32 %v66, %v1436
    %v1441 = vmul.f32 %v67, %v1436
    %v1442 = vmul.f32 %v68, %v1436
    %v1443 = vmul.f32 %v69, %v1436
    %1451 = vrot.lane.b32.xlu0 %v1437, 121
    %v1452 = vpop.permute.xlu0 %1451
    %1453 = vrot.lane.b32.xlu0 %v1438, 121
    %v1454 = vpop.permute.xlu0 %1453
    %1455 = vrot.lane.b32.xlu0 %v1439, 121
    %v1456 = vpop.permute.xlu0 %1455
    %1457 = vrot.lane.b32.xlu0 %v1440, 121
    %v1458 = vpop.permute.xlu0 %1457
    %1459 = vrot.lane.b32.xlu0 %v1441, 121
    %v1460 = vpop.permute.xlu0 %1459
    %1461 = vrot.lane.b32.xlu0 %v1442, 121
    %v1462 = vpop.permute.xlu0 %1461
    %1463 = vrot.lane.b32.xlu0 %v1443, 121
    %v1464 = vpop.permute.xlu0 %1463
    %v1472 = vadd.f32 %v1428, %v1452
    %v1473 = vadd.f32 %v1429, %v1454
    %v1474 = vadd.f32 %v1430, %v1456
    %v1475 = vadd.f32 %v1431, %v1458
    %v1476 = vadd.f32 %v1432, %v1460
    %v1477 = vadd.f32 %v1433, %v1462
    %v1478 = vadd.f32 %v1434, %v1464
    %s1479 = sld [smem:[#allocation2 + $0x108]]
    %v1480 = vstv %s1479
    %v1481 = vmul.f32 %v63, %v1480
    %v1482 = vmul.f32 %v64, %v1480
    %v1483 = vmul.f32 %v65, %v1480
    %v1484 = vmul.f32 %v66, %v1480
    %v1485 = vmul.f32 %v67, %v1480
    %v1486 = vmul.f32 %v68, %v1480
    %v1487 = vmul.f32 %v69, %v1480
    %1495 = vrot.lane.b32.xlu0 %v1481, 120
    %v1496 = vpop.permute.xlu0 %1495
    %1497 = vrot.lane.b32.xlu0 %v1482, 120
    %v1498 = vpop.permute.xlu0 %1497
    %1499 = vrot.lane.b32.xlu0 %v1483, 120
    %v1500 = vpop.permute.xlu0 %1499
    %1501 = vrot.lane.b32.xlu0 %v1484, 120
    %v1502 = vpop.permute.xlu0 %1501
    %1503 = vrot.lane.b32.xlu0 %v1485, 120
    %v1504 = vpop.permute.xlu0 %1503
    %1505 = vrot.lane.b32.xlu0 %v1486, 120
    %v1506 = vpop.permute.xlu0 %1505
    %1507 = vrot.lane.b32.xlu0 %v1487, 120
    %v1508 = vpop.permute.xlu0 %1507
    %v1516 = vadd.f32 %v1472, %v1496
    %v1517 = vadd.f32 %v1473, %v1498
    %v1518 = vadd.f32 %v1474, %v1500
    %v1519 = vadd.f32 %v1475, %v1502
    %v1520 = vadd.f32 %v1476, %v1504
    %v1521 = vadd.f32 %v1477, %v1506
    %v1522 = vadd.f32 %v1478, %v1508
    %s1523 = sld [smem:[#allocation2 + $0x109]]
    %v1524 = vstv %s1523
    %v1525 = vmul.f32 %v63, %v1524
    %v1526 = vmul.f32 %v64, %v1524
    %v1527 = vmul.f32 %v65, %v1524
    %v1528 = vmul.f32 %v66, %v1524
    %v1529 = vmul.f32 %v67, %v1524
    %v1530 = vmul.f32 %v68, %v1524
    %v1531 = vmul.f32 %v69, %v1524
    %1539 = vrot.lane.b32.xlu0 %v1525, 119
    %v1540 = vpop.permute.xlu0 %1539
    %1541 = vrot.lane.b32.xlu0 %v1526, 119
    %v1542 = vpop.permute.xlu0 %1541
    %1543 = vrot.lane.b32.xlu0 %v1527, 119
    %v1544 = vpop.permute.xlu0 %1543
    %1545 = vrot.lane.b32.xlu0 %v1528, 119
    %v1546 = vpop.permute.xlu0 %1545
    %1547 = vrot.lane.b32.xlu0 %v1529, 119
    %v1548 = vpop.permute.xlu0 %1547
    %1549 = vrot.lane.b32.xlu0 %v1530, 119
    %v1550 = vpop.permute.xlu0 %1549
    %1551 = vrot.lane.b32.xlu0 %v1531, 119
    %v1552 = vpop.permute.xlu0 %1551
    %v1560 = vadd.f32 %v1516, %v1540
    %v1561 = vadd.f32 %v1517, %v1542
    %v1562 = vadd.f32 %v1518, %v1544
    %v1563 = vadd.f32 %v1519, %v1546
    %v1564 = vadd.f32 %v1520, %v1548
    %v1565 = vadd.f32 %v1521, %v1550
    %v1566 = vadd.f32 %v1522, %v1552
    %s1567 = sld [smem:[#allocation2 + $0x10a]]
    %v1568 = vstv %s1567
    %v1569 = vmul.f32 %v63, %v1568
    %v1570 = vmul.f32 %v64, %v1568
    %v1571 = vmul.f32 %v65, %v1568
    %v1572 = vmul.f32 %v66, %v1568
    %v1573 = vmul.f32 %v67, %v1568
    %v1574 = vmul.f32 %v68, %v1568
    %v1575 = vmul.f32 %v69, %v1568
    %1583 = vrot.lane.b32.xlu0 %v1569, 118
    %v1584 = vpop.permute.xlu0 %1583
    %1585 = vrot.lane.b32.xlu0 %v1570, 118
    %v1586 = vpop.permute.xlu0 %1585
    %1587 = vrot.lane.b32.xlu0 %v1571, 118
    %v1588 = vpop.permute.xlu0 %1587
    %1589 = vrot.lane.b32.xlu0 %v1572, 118
    %v1590 = vpop.permute.xlu0 %1589
    %1591 = vrot.lane.b32.xlu0 %v1573, 118
    %v1592 = vpop.permute.xlu0 %1591
    %1593 = vrot.lane.b32.xlu0 %v1574, 118
    %v1594 = vpop.permute.xlu0 %1593
    %1595 = vrot.lane.b32.xlu0 %v1575, 118
    %v1596 = vpop.permute.xlu0 %1595
    %v1604 = vadd.f32 %v1560, %v1584
    %v1605 = vadd.f32 %v1561, %v1586
    %v1606 = vadd.f32 %v1562, %v1588
    %v1607 = vadd.f32 %v1563, %v1590
    %v1608 = vadd.f32 %v1564, %v1592
    %v1609 = vadd.f32 %v1565, %v1594
    %v1610 = vadd.f32 %v1566, %v1596
    %s1611 = sld [smem:[#allocation2 + $0x10b]]
    %v1612 = vstv %s1611
    %v1613 = vmul.f32 %v63, %v1612
    %v1614 = vmul.f32 %v64, %v1612
    %v1615 = vmul.f32 %v65, %v1612
    %v1616 = vmul.f32 %v66, %v1612
    %v1617 = vmul.f32 %v67, %v1612
    %v1618 = vmul.f32 %v68, %v1612
    %v1619 = vmul.f32 %v69, %v1612
    %1627 = vrot.lane.b32.xlu0 %v1613, 117
    %v1628 = vpop.permute.xlu0 %1627
    %1629 = vrot.lane.b32.xlu0 %v1614, 117
    %v1630 = vpop.permute.xlu0 %1629
    %1631 = vrot.lane.b32.xlu0 %v1615, 117
    %v1632 = vpop.permute.xlu0 %1631
    %1633 = vrot.lane.b32.xlu0 %v1616, 117
    %v1634 = vpop.permute.xlu0 %1633
    %1635 = vrot.lane.b32.xlu0 %v1617, 117
    %v1636 = vpop.permute.xlu0 %1635
    %1637 = vrot.lane.b32.xlu0 %v1618, 117
    %v1638 = vpop.permute.xlu0 %1637
    %1639 = vrot.lane.b32.xlu0 %v1619, 117
    %v1640 = vpop.permute.xlu0 %1639
    %v1648 = vadd.f32 %v1604, %v1628
    %v1649 = vadd.f32 %v1605, %v1630
    %v1650 = vadd.f32 %v1606, %v1632
    %v1651 = vadd.f32 %v1607, %v1634
    %v1652 = vadd.f32 %v1608, %v1636
    %v1653 = vadd.f32 %v1609, %v1638
    %v1654 = vadd.f32 %v1610, %v1640
    %s1655 = sld [smem:[#allocation2 + $0x10c]]
    %v1656 = vstv %s1655
    %v1657 = vmul.f32 %v63, %v1656
    %v1658 = vmul.f32 %v64, %v1656
    %v1659 = vmul.f32 %v65, %v1656
    %v1660 = vmul.f32 %v66, %v1656
    %v1661 = vmul.f32 %v67, %v1656
    %v1662 = vmul.f32 %v68, %v1656
    %v1663 = vmul.f32 %v69, %v1656
    %1671 = vrot.lane.b32.xlu0 %v1657, 116
    %v1672 = vpop.permute.xlu0 %1671
    %1673 = vrot.lane.b32.xlu0 %v1658, 116
    %v1674 = vpop.permute.xlu0 %1673
    %1675 = vrot.lane.b32.xlu0 %v1659, 116
    %v1676 = vpop.permute.xlu0 %1675
    %1677 = vrot.lane.b32.xlu0 %v1660, 116
    %v1678 = vpop.permute.xlu0 %1677
    %1679 = vrot.lane.b32.xlu0 %v1661, 116
    %v1680 = vpop.permute.xlu0 %1679
    %1681 = vrot.lane.b32.xlu0 %v1662, 116
    %v1682 = vpop.permute.xlu0 %1681
    %1683 = vrot.lane.b32.xlu0 %v1663, 116
    %v1684 = vpop.permute.xlu0 %1683
    %v1692 = vadd.f32 %v1648, %v1672
    %v1693 = vadd.f32 %v1649, %v1674
    %v1694 = vadd.f32 %v1650, %v1676
    %v1695 = vadd.f32 %v1651, %v1678
    %v1696 = vadd.f32 %v1652, %v1680
    %v1697 = vadd.f32 %v1653, %v1682
    %v1698 = vadd.f32 %v1654, %v1684
    %s1699 = sld [smem:[#allocation5 + $0x2]]
    %v1700 = vstv %s1699
    %v1701 = vadd.f32 %v1692, %v1700
    %v1702 = vadd.f32 %v1693, %v1700
    %v1703 = vadd.f32 %v1694, %v1700
    %v1704 = vadd.f32 %v1695, %v1700
    %v1705 = vadd.f32 %v1696, %v1700
    %v1706 = vadd.f32 %v1697, %v1700
    %v1707 = vadd.f32 %v1698, %v1700
    %v1708 = vld [vmem:[%s1] sm:$0x7]
    %s1709 = scalar_lea.vmem %s1, 4
    %v1710 = vld [vmem:[%s1709] sm:$0x7]
    %s1711 = scalar_lea.vmem %s1, 8
    %v1712 = vld [vmem:[%s1711] sm:$0x7]
    %s1713 = scalar_lea.vmem %s1, 12
    %v1714 = vld [vmem:[%s1713] sm:$0x7]
    %s1715 = scalar_lea.vmem %s1, 16
    %v1716 = vld [vmem:[%s1715] sm:$0x7]
    %s1717 = scalar_lea.vmem %s1, 20
    %v1718 = vld [vmem:[%s1717] sm:$0x7]
    %s1719 = scalar_lea.vmem %s1, 24
    %v1720 = vld [vmem:[%s1719] sm:$0x7]
    %s1721 = scalar_lea.vmem %s1, 28
    %v1722 = vld [vmem:[%s1721] sm:$0x7]
    %s1723 = scalar_lea.vmem %s1, 32
    %v1724 = vld [vmem:[%s1723] sm:$0x7]
    %s1725 = scalar_lea.vmem %s1, 36
    %v1726 = vld [vmem:[%s1725] sm:$0x7]
    %s1727 = scalar_lea.vmem %s1, 40
    %v1728 = vld [vmem:[%s1727] sm:$0x7]
    %s1729 = scalar_lea.vmem %s1, 44
    %v1730 = vld [vmem:[%s1729] sm:$0x7]
    %s1731 = scalar_lea.vmem %s1, 48
    %v1732 = vld [vmem:[%s1731] sm:$0x7]
    %s1733 = scalar_lea.vmem %s1, 52
    %v1734 = vld [vmem:[%s1733] sm:$0x7]
    %s1735 = scalar_lea.vmem %s1, 56
    %v1736 = vld [vmem:[%s1735] sm:$0x7]
    %s1737 = scalar_lea.vmem %s1, 60
    %v1738 = vld [vmem:[%s1737] sm:$0x7]
    %s1739 = scalar_lea.vmem %s1, 64
    %v1740 = vld [vmem:[%s1739] sm:$0x7]
    %s1741 = scalar_lea.vmem %s1, 68
    %v1742 = vld [vmem:[%s1741] sm:$0x7]
    %s1743 = scalar_lea.vmem %s1, 72
    %v1744 = vld [vmem:[%s1743] sm:$0x7]
    %s1745 = scalar_lea.vmem %s1, 76
    %v1746 = vld [vmem:[%s1745] sm:$0x7]
    %s1747 = scalar_lea.vmem %s1, 80
    %v1748 = vld [vmem:[%s1747] sm:$0x7]
    %v1749 = vld [vmem:[%s2] sm:$0xff]
    %v1750 = vld [vmem:[%s2 + $0x8] sm:$0xff]
    %v1751 = vld [vmem:[%s2 + $0x10] sm:$0xff]
    %v1752 = vld [vmem:[%s2 + $0x18] sm:$0xff]
    %s1753 = scalar_lea.vmem %s2, 32
    %v1754 = vld [vmem:[%s1753] sm:$0xff]
    %v1755 = vld [vmem:[%s1753 + $0x8] sm:$0xff]
    %v1756 = vld [vmem:[%s1753 + $0x10] sm:$0xff]
    %v1757 = vld [vmem:[%s1753 + $0x18] sm:$0xff]
    %s1758 = scalar_lea.vmem %s2, 64
    %v1759 = vld [vmem:[%s1758] sm:$0xff]
    %v1760 = vld [vmem:[%s1758 + $0x8] sm:$0xff]
    %v1761 = vld [vmem:[%s1758 + $0x10] sm:$0xff]
    %v1762 = vld [vmem:[%s1758 + $0x18] sm:$0xff]
    %v1763 = vld [vmem:[%s3] sm:$0x1]
    %1768 = vrot.lane.b32.xlu0 %v609, 127
    %v1769 = vpop.permute.xlu0 %1768
    %1770 = vrot.lane.b32.xlu0 %v610, 127
    %v1771 = vpop.permute.xlu0 %1770
    %1772 = vrot.lane.b32.xlu0 %v611, 127
    %v1773 = vpop.permute.xlu0 %1772
    %1774 = vrot.lane.b32.xlu0 %v612, 127
    %v1775 = vpop.permute.xlu0 %1774
    %vm1779 = vcmask 228352
    %v1781 = vsel %vm1779, %v1710, 0
    %vm1783 = vcmask 1043456
    %v1784 = vsel %vm1783, %v1775, 0
    %1786 = vmatpush.msra.mxu0 0.0
    %1787 = vmatpush.msra.mxu0 0.0
    %1788 = vmatpush.msra.mxu0 0.0
    %1789 = vmatpush.msra.mxu0 0.0
    %1790 = vmatpush.msra.mxu0 0.0
    %1791 = vmatpush.msra.mxu0 0.0
    %1792 = vmatpush.msra.mxu0 0.0
    %1793 = vmatpush.msra.mxu0 0.0
    %1794 = vmatpush.msra.mxu0 0.0
    %1795 = vmatpush.msra.mxu0 0.0
    %1796 = vmatpush.msra.mxu0 0.0
    %1797 = vmatpush.msra.mxu0 0.0
    %1798 = vmatpush.msra.mxu0 %v1784
    %1799 = vmatpush.msra.mxu0 %v1773
    %1800 = vmatpush.msra.mxu0 %v1771
    %1801 = vmatpush.msra.mxu0 %v1769
    %1802 = vmatmul.f32.gmra.mxu0 %v1781
    %v1803 = vpop.f32.mrf.mxu0
    %v1804 = vadd.f32 0.0, %v1803
    %1805 = vdwg.mxu0
    %v1807 = vsel %vm1779, %v1708, 0
    %v1809 = vsel %vm1783, %v612, 0
    %1811 = vmatpush.msra.mxu0 0.0
    %1812 = vmatpush.msra.mxu0 0.0
    %1813 = vmatpush.msra.mxu0 0.0
    %1814 = vmatpush.msra.mxu0 0.0
    %1815 = vmatpush.msra.mxu0 0.0
    %1816 = vmatpush.msra.mxu0 0.0
    %1817 = vmatpush.msra.mxu0 0.0
    %1818 = vmatpush.msra.mxu0 0.0
    %1819 = vmatpush.msra.mxu0 0.0
    %1820 = vmatpush.msra.mxu0 0.0
    %1821 = vmatpush.msra.mxu0 0.0
    %1822 = vmatpush.msra.mxu0 0.0
    %1823 = vmatpush.msra.mxu0 %v1809
    %1824 = vmatpush.msra.mxu0 %v611
    %1825 = vmatpush.msra.mxu0 %v610
    %1826 = vmatpush.msra.mxu0 %v609
    %1827 = vmatmul.f32.gmra.mxu0 %v1807
    %v1828 = vpop.f32.mrf.mxu0
    %v1829 = vadd.f32 %v1804, %v1828
    %1830 = vdwg.mxu0
    %1831 = vrot.lane.b32.xlu0 %v609, 126
    %v1832 = vpop.permute.xlu0 %1831
    %1833 = vrot.lane.b32.xlu0 %v610, 126
    %v1834 = vpop.permute.xlu0 %1833
    %1835 = vrot.lane.b32.xlu0 %v611, 126
    %v1836 = vpop.permute.xlu0 %1835
    %1837 = vrot.lane.b32.xlu0 %v612, 126
    %v1838 = vpop.permute.xlu0 %1837
    %v1843 = vsel %vm1779, %v1712, 0
    %v1845 = vsel %vm1783, %v1838, 0
    %1847 = vmatpush.msra.mxu0 0.0
    %1848 = vmatpush.msra.mxu0 0.0
    %1849 = vmatpush.msra.mxu0 0.0
    %1850 = vmatpush.msra.mxu0 0.0
    %1851 = vmatpush.msra.mxu0 0.0
    %1852 = vmatpush.msra.mxu0 0.0
    %1853 = vmatpush.msra.mxu0 0.0
    %1854 = vmatpush.msra.mxu0 0.0
    %1855 = vmatpush.msra.mxu0 0.0
    %1856 = vmatpush.msra.mxu0 0.0
    %1857 = vmatpush.msra.mxu0 0.0
    %1858 = vmatpush.msra.mxu0 0.0
    %1859 = vmatpush.msra.mxu0 %v1845
    %1860 = vmatpush.msra.mxu0 %v1836
    %1861 = vmatpush.msra.mxu0 %v1834
    %1862 = vmatpush.msra.mxu0 %v1832
    %1863 = vmatmul.f32.gmra.mxu0 %v1843
    %v1864 = vpop.f32.mrf.mxu0
    %v1865 = vadd.f32 0.0, %v1864
    %1866 = vdwg.mxu0
    %v1867 = vadd.f32 %v1829, %v1865
    %1868 = vrot.lane.b32.xlu0 %v609, 125
    %v1869 = vpop.permute.xlu0 %1868
    %1870 = vrot.lane.b32.xlu0 %v610, 125
    %v1871 = vpop.permute.xlu0 %1870
    %1872 = vrot.lane.b32.xlu0 %v611, 125
    %v1873 = vpop.permute.xlu0 %1872
    %1874 = vrot.lane.b32.xlu0 %v612, 125
    %v1875 = vpop.permute.xlu0 %1874
    %v1880 = vsel %vm1779, %v1714, 0
    %v1882 = vsel %vm1783, %v1875, 0
    %1884 = vmatpush.msra.mxu0 0.0
    %1885 = vmatpush.msra.mxu0 0.0
    %1886 = vmatpush.msra.mxu0 0.0
    %1887 = vmatpush.msra.mxu0 0.0
    %1888 = vmatpush.msra.mxu0 0.0
    %1889 = vmatpush.msra.mxu0 0.0
    %1890 = vmatpush.msra.mxu0 0.0
    %1891 = vmatpush.msra.mxu0 0.0
    %1892 = vmatpush.msra.mxu0 0.0
    %1893 = vmatpush.msra.mxu0 0.0
    %1894 = vmatpush.msra.mxu0 0.0
    %1895 = vmatpush.msra.mxu0 0.0
    %1896 = vmatpush.msra.mxu0 %v1882
    %1897 = vmatpush.msra.mxu0 %v1873
    %1898 = vmatpush.msra.mxu0 %v1871
    %1899 = vmatpush.msra.mxu0 %v1869
    %1900 = vmatmul.f32.gmra.mxu0 %v1880
    %v1901 = vpop.f32.mrf.mxu0
    %v1902 = vadd.f32 0.0, %v1901
    %1903 = vdwg.mxu0
    %v1904 = vadd.f32 %v1867, %v1902
    %1905 = vrot.lane.b32.xlu0 %v609, 124
    %v1906 = vpop.permute.xlu0 %1905
    %1907 = vrot.lane.b32.xlu0 %v610, 124
    %v1908 = vpop.permute.xlu0 %1907
    %1909 = vrot.lane.b32.xlu0 %v611, 124
    %v1910 = vpop.permute.xlu0 %1909
    %1911 = vrot.lane.b32.xlu0 %v612, 124
    %v1912 = vpop.permute.xlu0 %1911
    %v1917 = vsel %vm1779, %v1716, 0
    %v1919 = vsel %vm1783, %v1912, 0
    %1921 = vmatpush.msra.mxu0 0.0
    %1922 = vmatpush.msra.mxu0 0.0
    %1923 = vmatpush.msra.mxu0 0.0
    %1924 = vmatpush.msra.mxu0 0.0
    %1925 = vmatpush.msra.mxu0 0.0
    %1926 = vmatpush.msra.mxu0 0.0
    %1927 = vmatpush.msra.mxu0 0.0
    %1928 = vmatpush.msra.mxu0 0.0
    %1929 = vmatpush.msra.mxu0 0.0
    %1930 = vmatpush.msra.mxu0 0.0
    %1931 = vmatpush.msra.mxu0 0.0
    %1932 = vmatpush.msra.mxu0 0.0
    %1933 = vmatpush.msra.mxu0 %v1919
    %1934 = vmatpush.msra.mxu0 %v1910
    %1935 = vmatpush.msra.mxu0 %v1908
    %1936 = vmatpush.msra.mxu0 %v1906
    %1937 = vmatmul.f32.gmra.mxu0 %v1917
    %v1938 = vpop.f32.mrf.mxu0
    %v1939 = vadd.f32 0.0, %v1938
    %1940 = vdwg.mxu0
    %v1941 = vadd.f32 %v1904, %v1939
    %1942 = vrot.lane.b32.xlu0 %v609, 123
    %v1943 = vpop.permute.xlu0 %1942
    %1944 = vrot.lane.b32.xlu0 %v610, 123
    %v1945 = vpop.permute.xlu0 %1944
    %1946 = vrot.lane.b32.xlu0 %v611, 123
    %v1947 = vpop.permute.xlu0 %1946
    %1948 = vrot.lane.b32.xlu0 %v612, 123
    %v1949 = vpop.permute.xlu0 %1948
    %v1954 = vsel %vm1779, %v1718, 0
    %v1956 = vsel %vm1783, %v1949, 0
    %1958 = vmatpush.msra.mxu0 0.0
    %1959 = vmatpush.msra.mxu0 0.0
    %1960 = vmatpush.msra.mxu0 0.0
    %1961 = vmatpush.msra.mxu0 0.0
    %1962 = vmatpush.msra.mxu0 0.0
    %1963 = vmatpush.msra.mxu0 0.0
    %1964 = vmatpush.msra.mxu0 0.0
    %1965 = vmatpush.msra.mxu0 0.0
    %1966 = vmatpush.msra.mxu0 0.0
    %1967 = vmatpush.msra.mxu0 0.0
    %1968 = vmatpush.msra.mxu0 0.0
    %1969 = vmatpush.msra.mxu0 0.0
    %1970 = vmatpush.msra.mxu0 %v1956
    %1971 = vmatpush.msra.mxu0 %v1947
    %1972 = vmatpush.msra.mxu0 %v1945
    %1973 = vmatpush.msra.mxu0 %v1943
    %1974 = vmatmul.f32.gmra.mxu0 %v1954
    %v1975 = vpop.f32.mrf.mxu0
    %v1976 = vadd.f32 0.0, %v1975
    %1977 = vdwg.mxu0
    %v1978 = vadd.f32 %v1941, %v1976
    %1979 = vrot.lane.b32.xlu0 %v609, 122
    %v1980 = vpop.permute.xlu0 %1979
    %1981 = vrot.lane.b32.xlu0 %v610, 122
    %v1982 = vpop.permute.xlu0 %1981
    %1983 = vrot.lane.b32.xlu0 %v611, 122
    %v1984 = vpop.permute.xlu0 %1983
    %1985 = vrot.lane.b32.xlu0 %v612, 122
    %v1986 = vpop.permute.xlu0 %1985
    %v1991 = vsel %vm1779, %v1720, 0
    %v1993 = vsel %vm1783, %v1986, 0
    %1995 = vmatpush.msra.mxu0 0.0
    %1996 = vmatpush.msra.mxu0 0.0
    %1997 = vmatpush.msra.mxu0 0.0
    %1998 = vmatpush.msra.mxu0 0.0
    %1999 = vmatpush.msra.mxu0 0.0
    %2000 = vmatpush.msra.mxu0 0.0
    %2001 = vmatpush.msra.mxu0 0.0
    %2002 = vmatpush.msra.mxu0 0.0
    %2003 = vmatpush.msra.mxu0 0.0
    %2004 = vmatpush.msra.mxu0 0.0
    %2005 = vmatpush.msra.mxu0 0.0
    %2006 = vmatpush.msra.mxu0 0.0
    %2007 = vmatpush.msra.mxu0 %v1993
    %2008 = vmatpush.msra.mxu0 %v1984
    %2009 = vmatpush.msra.mxu0 %v1982
    %2010 = vmatpush.msra.mxu0 %v1980
    %2011 = vmatmul.f32.gmra.mxu0 %v1991
    %v2012 = vpop.f32.mrf.mxu0
    %v2013 = vadd.f32 0.0, %v2012
    %2014 = vdwg.mxu0
    %v2015 = vadd.f32 %v1978, %v2013
    %v2017 = vsel %vm1779, %v1722, 0
    %v2020 = vsel %vm1783, %v1158, 0
    %2022 = vmatpush.msra.mxu0 0.0
    %2023 = vmatpush.msra.mxu0 0.0
    %2024 = vmatpush.msra.mxu0 0.0
    %2025 = vmatpush.msra.mxu0 0.0
    %2026 = vmatpush.msra.mxu0 0.0
    %2027 = vmatpush.msra.mxu0 0.0
    %2028 = vmatpush.msra.mxu0 0.0
    %2029 = vmatpush.msra.mxu0 0.0
    %2030 = vmatpush.msra.mxu0 0.0
    %2031 = vmatpush.msra.mxu0 0.0
    %2032 = vmatpush.msra.mxu0 0.0
    %2033 = vmatpush.msra.mxu0 0.0
    %2034 = vmatpush.msra.mxu0 %v2020
    %2035 = vmatpush.msra.mxu0 %v1157
    %2036 = vmatpush.msra.mxu0 %v1156
    %2037 = vmatpush.msra.mxu0 %v1155
    %2038 = vmatmul.f32.gmra.mxu0 %v2017
    %v2039 = vpop.f32.mrf.mxu0
    %v2040 = vadd.f32 0.0, %v2039
    %2041 = vdwg.mxu0
    %v2042 = vadd.f32 %v2015, %v2040
    %2046 = vrot.lane.b32.xlu0 %v1155, 127
    %v2047 = vpop.permute.xlu0 %2046
    %2048 = vrot.lane.b32.xlu0 %v1156, 127
    %v2049 = vpop.permute.xlu0 %2048
    %2050 = vrot.lane.b32.xlu0 %v1157, 127
    %v2051 = vpop.permute.xlu0 %2050
    %2052 = vrot.lane.b32.xlu0 %v1158, 127
    %v2053 = vpop.permute.xlu0 %2052
    %v2058 = vsel %vm1779, %v1724, 0
    %v2060 = vsel %vm1783, %v2053, 0
    %2062 = vmatpush.msra.mxu0 0.0
    %2063 = vmatpush.msra.mxu0 0.0
    %2064 = vmatpush.msra.mxu0 0.0
    %2065 = vmatpush.msra.mxu0 0.0
    %2066 = vmatpush.msra.mxu0 0.0
    %2067 = vmatpush.msra.mxu0 0.0
    %2068 = vmatpush.msra.mxu0 0.0
    %2069 = vmatpush.msra.mxu0 0.0
    %2070 = vmatpush.msra.mxu0 0.0
    %2071 = vmatpush.msra.mxu0 0.0
    %2072 = vmatpush.msra.mxu0 0.0
    %2073 = vmatpush.msra.mxu0 0.0
    %2074 = vmatpush.msra.mxu0 %v2060
    %2075 = vmatpush.msra.mxu0 %v2051
    %2076 = vmatpush.msra.mxu0 %v2049
    %2077 = vmatpush.msra.mxu0 %v2047
    %2078 = vmatmul.f32.gmra.mxu0 %v2058
    %v2079 = vpop.f32.mrf.mxu0
    %v2080 = vadd.f32 0.0, %v2079
    %2081 = vdwg.mxu0
    %v2082 = vadd.f32 %v2042, %v2080
    %2083 = vrot.lane.b32.xlu0 %v1155, 126
    %v2084 = vpop.permute.xlu0 %2083
    %2085 = vrot.lane.b32.xlu0 %v1156, 126
    %v2086 = vpop.permute.xlu0 %2085
    %2087 = vrot.lane.b32.xlu0 %v1157, 126
    %v2088 = vpop.permute.xlu0 %2087
    %2089 = vrot.lane.b32.xlu0 %v1158, 126
    %v2090 = vpop.permute.xlu0 %2089
    %v2095 = vsel %vm1779, %v1726, 0
    %v2097 = vsel %vm1783, %v2090, 0
    %2099 = vmatpush.msra.mxu0 0.0
    %2100 = vmatpush.msra.mxu0 0.0
    %2101 = vmatpush.msra.mxu0 0.0
    %2102 = vmatpush.msra.mxu0 0.0
    %2103 = vmatpush.msra.mxu0 0.0
    %2104 = vmatpush.msra.mxu0 0.0
    %2105 = vmatpush.msra.mxu0 0.0
    %2106 = vmatpush.msra.mxu0 0.0
    %2107 = vmatpush.msra.mxu0 0.0
    %2108 = vmatpush.msra.mxu0 0.0
    %2109 = vmatpush.msra.mxu0 0.0
    %2110 = vmatpush.msra.mxu0 0.0
    %2111 = vmatpush.msra.mxu0 %v2097
    %2112 = vmatpush.msra.mxu0 %v2088
    %2113 = vmatpush.msra.mxu0 %v2086
    %2114 = vmatpush.msra.mxu0 %v2084
    %2115 = vmatmul.f32.gmra.mxu0 %v2095
    %v2116 = vpop.f32.mrf.mxu0
    %v2117 = vadd.f32 0.0, %v2116
    %2118 = vdwg.mxu0
    %v2119 = vadd.f32 %v2082, %v2117
    %2120 = vrot.lane.b32.xlu0 %v1155, 125
    %v2121 = vpop.permute.xlu0 %2120
    %2122 = vrot.lane.b32.xlu0 %v1156, 125
    %v2123 = vpop.permute.xlu0 %2122
    %2124 = vrot.lane.b32.xlu0 %v1157, 125
    %v2125 = vpop.permute.xlu0 %2124
    %2126 = vrot.lane.b32.xlu0 %v1158, 125
    %v2127 = vpop.permute.xlu0 %2126
    %v2132 = vsel %vm1779, %v1728, 0
    %v2134 = vsel %vm1783, %v2127, 0
    %2136 = vmatpush.msra.mxu0 0.0
    %2137 = vmatpush.msra.mxu0 0.0
    %2138 = vmatpush.msra.mxu0 0.0
    %2139 = vmatpush.msra.mxu0 0.0
    %2140 = vmatpush.msra.mxu0 0.0
    %2141 = vmatpush.msra.mxu0 0.0
    %2142 = vmatpush.msra.mxu0 0.0
    %2143 = vmatpush.msra.mxu0 0.0
    %2144 = vmatpush.msra.mxu0 0.0
    %2145 = vmatpush.msra.mxu0 0.0
    %2146 = vmatpush.msra.mxu0 0.0
    %2147 = vmatpush.msra.mxu0 0.0
    %2148 = vmatpush.msra.mxu0 %v2134
    %2149 = vmatpush.msra.mxu0 %v2125
    %2150 = vmatpush.msra.mxu0 %v2123
    %2151 = vmatpush.msra.mxu0 %v2121
    %2152 = vmatmul.f32.gmra.mxu0 %v2132
    %v2153 = vpop.f32.mrf.mxu0
    %v2154 = vadd.f32 0.0, %v2153
    %2155 = vdwg.mxu0
    %v2156 = vadd.f32 %v2119, %v2154
    %2157 = vrot.lane.b32.xlu0 %v1155, 124
    %v2158 = vpop.permute.xlu0 %2157
    %2159 = vrot.lane.b32.xlu0 %v1156, 124
    %v2160 = vpop.permute.xlu0 %2159
    %2161 = vrot.lane.b32.xlu0 %v1157, 124
    %v2162 = vpop.permute.xlu0 %2161
    %2163 = vrot.lane.b32.xlu0 %v1158, 124
    %v2164 = vpop.permute.xlu0 %2163
    %v2169 = vsel %vm1779, %v1730, 0
    %v2171 = vsel %vm1783, %v2164, 0
    %2173 = vmatpush.msra.mxu0 0.0
    %2174 = vmatpush.msra.mxu0 0.0
    %2175 = vmatpush.msra.mxu0 0.0
    %2176 = vmatpush.msra.mxu0 0.0
    %2177 = vmatpush.msra.mxu0 0.0
    %2178 = vmatpush.msra.mxu0 0.0
    %2179 = vmatpush.msra.mxu0 0.0
    %2180 = vmatpush.msra.mxu0 0.0
    %2181 = vmatpush.msra.mxu0 0.0
    %2182 = vmatpush.msra.mxu0 0.0
    %2183 = vmatpush.msra.mxu0 0.0
    %2184 = vmatpush.msra.mxu0 0.0
    %2185 = vmatpush.msra.mxu0 %v2171
    %2186 = vmatpush.msra.mxu0 %v2162
    %2187 = vmatpush.msra.mxu0 %v2160
    %2188 = vmatpush.msra.mxu0 %v2158
    %2189 = vmatmul.f32.gmra.mxu0 %v2169
    %v2190 = vpop.f32.mrf.mxu0
    %v2191 = vadd.f32 0.0, %v2190
    %2192 = vdwg.mxu0
    %v2193 = vadd.f32 %v2156, %v2191
    %2194 = vrot.lane.b32.xlu0 %v1155, 123
    %v2195 = vpop.permute.xlu0 %2194
    %2196 = vrot.lane.b32.xlu0 %v1156, 123
    %v2197 = vpop.permute.xlu0 %2196
    %2198 = vrot.lane.b32.xlu0 %v1157, 123
    %v2199 = vpop.permute.xlu0 %2198
    %2200 = vrot.lane.b32.xlu0 %v1158, 123
    %v2201 = vpop.permute.xlu0 %2200
    %v2206 = vsel %vm1779, %v1732, 0
    %v2208 = vsel %vm1783, %v2201, 0
    %2210 = vmatpush.msra.mxu0 0.0
    %2211 = vmatpush.msra.mxu0 0.0
    %2212 = vmatpush.msra.mxu0 0.0
    %2213 = vmatpush.msra.mxu0 0.0
    %2214 = vmatpush.msra.mxu0 0.0
    %2215 = vmatpush.msra.mxu0 0.0
    %2216 = vmatpush.msra.mxu0 0.0
    %2217 = vmatpush.msra.mxu0 0.0
    %2218 = vmatpush.msra.mxu0 0.0
    %2219 = vmatpush.msra.mxu0 0.0
    %2220 = vmatpush.msra.mxu0 0.0
    %2221 = vmatpush.msra.mxu0 0.0
    %2222 = vmatpush.msra.mxu0 %v2208
    %2223 = vmatpush.msra.mxu0 %v2199
    %2224 = vmatpush.msra.mxu0 %v2197
    %2225 = vmatpush.msra.mxu0 %v2195
    %2226 = vmatmul.f32.gmra.mxu0 %v2206
    %v2227 = vpop.f32.mrf.mxu0
    %v2228 = vadd.f32 0.0, %v2227
    %2229 = vdwg.mxu0
    %v2230 = vadd.f32 %v2193, %v2228
    %2231 = vrot.lane.b32.xlu0 %v1155, 122
    %v2232 = vpop.permute.xlu0 %2231
    %2233 = vrot.lane.b32.xlu0 %v1156, 122
    %v2234 = vpop.permute.xlu0 %2233
    %2235 = vrot.lane.b32.xlu0 %v1157, 122
    %v2236 = vpop.permute.xlu0 %2235
    %2237 = vrot.lane.b32.xlu0 %v1158, 122
    %v2238 = vpop.permute.xlu0 %2237
    %v2243 = vsel %vm1779, %v1734, 0
    %v2245 = vsel %vm1783, %v2238, 0
    %2247 = vmatpush.msra.mxu0 0.0
    %2248 = vmatpush.msra.mxu0 0.0
    %2249 = vmatpush.msra.mxu0 0.0
    %2250 = vmatpush.msra.mxu0 0.0
    %2251 = vmatpush.msra.mxu0 0.0
    %2252 = vmatpush.msra.mxu0 0.0
    %2253 = vmatpush.msra.mxu0 0.0
    %2254 = vmatpush.msra.mxu0 0.0
    %2255 = vmatpush.msra.mxu0 0.0
    %2256 = vmatpush.msra.mxu0 0.0
    %2257 = vmatpush.msra.mxu0 0.0
    %2258 = vmatpush.msra.mxu0 0.0
    %2259 = vmatpush.msra.mxu0 %v2245
    %2260 = vmatpush.msra.mxu0 %v2236
    %2261 = vmatpush.msra.mxu0 %v2234
    %2262 = vmatpush.msra.mxu0 %v2232
    %2263 = vmatmul.f32.gmra.mxu0 %v2243
    %v2264 = vpop.f32.mrf.mxu0
    %v2265 = vadd.f32 0.0, %v2264
    %2266 = vdwg.mxu0
    %v2267 = vadd.f32 %v2230, %v2265
    %v2269 = vsel %vm1779, %v1736, 0
    %v2272 = vsel %vm1783, %v1704, 0
    %2274 = vmatpush.msra.mxu0 0.0
    %2275 = vmatpush.msra.mxu0 0.0
    %2276 = vmatpush.msra.mxu0 0.0
    %2277 = vmatpush.msra.mxu0 0.0
    %2278 = vmatpush.msra.mxu0 0.0
    %2279 = vmatpush.msra.mxu0 0.0
    %2280 = vmatpush.msra.mxu0 0.0
    %2281 = vmatpush.msra.mxu0 0.0
    %2282 = vmatpush.msra.mxu0 0.0
    %2283 = vmatpush.msra.mxu0 0.0
    %2284 = vmatpush.msra.mxu0 0.0
    %2285 = vmatpush.msra.mxu0 0.0
    %2286 = vmatpush.msra.mxu0 %v2272
    %2287 = vmatpush.msra.mxu0 %v1703
    %2288 = vmatpush.msra.mxu0 %v1702
    %2289 = vmatpush.msra.mxu0 %v1701
    %2290 = vmatmul.f32.gmra.mxu0 %v2269
    %v2291 = vpop.f32.mrf.mxu0
    %v2292 = vadd.f32 0.0, %v2291
    %2293 = vdwg.mxu0
    %v2294 = vadd.f32 %v2267, %v2292
    %2298 = vrot.lane.b32.xlu0 %v1701, 127
    %v2299 = vpop.permute.xlu0 %2298
    %2300 = vrot.lane.b32.xlu0 %v1702, 127
    %v2301 = vpop.permute.xlu0 %2300
    %2302 = vrot.lane.b32.xlu0 %v1703, 127
    %v2303 = vpop.permute.xlu0 %2302
    %2304 = vrot.lane.b32.xlu0 %v1704, 127
    %v2305 = vpop.permute.xlu0 %2304
    %v2310 = vsel %vm1779, %v1738, 0
    %v2312 = vsel %vm1783, %v2305, 0
    %2314 = vmatpush.msra.mxu0 0.0
    %2315 = vmatpush.msra.mxu0 0.0
    %2316 = vmatpush.msra.mxu0 0.0
    %2317 = vmatpush.msra.mxu0 0.0
    %2318 = vmatpush.msra.mxu0 0.0
    %2319 = vmatpush.msra.mxu0 0.0
    %2320 = vmatpush.msra.mxu0 0.0
    %2321 = vmatpush.msra.mxu0 0.0
    %2322 = vmatpush.msra.mxu0 0.0
    %2323 = vmatpush.msra.mxu0 0.0
    %2324 = vmatpush.msra.mxu0 0.0
    %2325 = vmatpush.msra.mxu0 0.0
    %2326 = vmatpush.msra.mxu0 %v2312
    %2327 = vmatpush.msra.mxu0 %v2303
    %2328 = vmatpush.msra.mxu0 %v2301
    %2329 = vmatpush.msra.mxu0 %v2299
    %2330 = vmatmul.f32.gmra.mxu0 %v2310
    %v2331 = vpop.f32.mrf.mxu0
    %v2332 = vadd.f32 0.0, %v2331
    %2333 = vdwg.mxu0
    %v2334 = vadd.f32 %v2294, %v2332
    %2335 = vrot.lane.b32.xlu0 %v1701, 126
    %v2336 = vpop.permute.xlu0 %2335
    %2337 = vrot.lane.b32.xlu0 %v1702, 126
    %v2338 = vpop.permute.xlu0 %2337
    %2339 = vrot.lane.b32.xlu0 %v1703, 126
    %v2340 = vpop.permute.xlu0 %2339
    %2341 = vrot.lane.b32.xlu0 %v1704, 126
    %v2342 = vpop.permute.xlu0 %2341
    %v2347 = vsel %vm1779, %v1740, 0
    %v2349 = vsel %vm1783, %v2342, 0
    %2351 = vmatpush.msra.mxu0 0.0
    %2352 = vmatpush.msra.mxu0 0.0
    %2353 = vmatpush.msra.mxu0 0.0
    %2354 = vmatpush.msra.mxu0 0.0
    %2355 = vmatpush.msra.mxu0 0.0
    %2356 = vmatpush.msra.mxu0 0.0
    %2357 = vmatpush.msra.mxu0 0.0
    %2358 = vmatpush.msra.mxu0 0.0
    %2359 = vmatpush.msra.mxu0 0.0
    %2360 = vmatpush.msra.mxu0 0.0
    %2361 = vmatpush.msra.mxu0 0.0
    %2362 = vmatpush.msra.mxu0 0.0
    %2363 = vmatpush.msra.mxu0 %v2349
    %2364 = vmatpush.msra.mxu0 %v2340
    %2365 = vmatpush.msra.mxu0 %v2338
    %2366 = vmatpush.msra.mxu0 %v2336
    %2367 = vmatmul.f32.gmra.mxu0 %v2347
    %v2368 = vpop.f32.mrf.mxu0
    %v2369 = vadd.f32 0.0, %v2368
    %2370 = vdwg.mxu0
    %v2371 = vadd.f32 %v2334, %v2369
    %2372 = vrot.lane.b32.xlu0 %v1701, 125
    %v2373 = vpop.permute.xlu0 %2372
    %2374 = vrot.lane.b32.xlu0 %v1702, 125
    %v2375 = vpop.permute.xlu0 %2374
    %2376 = vrot.lane.b32.xlu0 %v1703, 125
    %v2377 = vpop.permute.xlu0 %2376
    %2378 = vrot.lane.b32.xlu0 %v1704, 125
    %v2379 = vpop.permute.xlu0 %2378
    %v2384 = vsel %vm1779, %v1742, 0
    %v2386 = vsel %vm1783, %v2379, 0
    %2388 = vmatpush.msra.mxu0 0.0
    %2389 = vmatpush.msra.mxu0 0.0
    %2390 = vmatpush.msra.mxu0 0.0
    %2391 = vmatpush.msra.mxu0 0.0
    %2392 = vmatpush.msra.mxu0 0.0
    %2393 = vmatpush.msra.mxu0 0.0
    %2394 = vmatpush.msra.mxu0 0.0
    %2395 = vmatpush.msra.mxu0 0.0
    %2396 = vmatpush.msra.mxu0 0.0
    %2397 = vmatpush.msra.mxu0 0.0
    %2398 = vmatpush.msra.mxu0 0.0
    %2399 = vmatpush.msra.mxu0 0.0
    %2400 = vmatpush.msra.mxu0 %v2386
    %2401 = vmatpush.msra.mxu0 %v2377
    %2402 = vmatpush.msra.mxu0 %v2375
    %2403 = vmatpush.msra.mxu0 %v2373
    %2404 = vmatmul.f32.gmra.mxu0 %v2384
    %v2405 = vpop.f32.mrf.mxu0
    %v2406 = vadd.f32 0.0, %v2405
    %2407 = vdwg.mxu0
    %v2408 = vadd.f32 %v2371, %v2406
    %2409 = vrot.lane.b32.xlu0 %v1701, 124
    %v2410 = vpop.permute.xlu0 %2409
    %2411 = vrot.lane.b32.xlu0 %v1702, 124
    %v2412 = vpop.permute.xlu0 %2411
    %2413 = vrot.lane.b32.xlu0 %v1703, 124
    %v2414 = vpop.permute.xlu0 %2413
    %2415 = vrot.lane.b32.xlu0 %v1704, 124
    %v2416 = vpop.permute.xlu0 %2415
    %v2421 = vsel %vm1779, %v1744, 0
    %v2423 = vsel %vm1783, %v2416, 0
    %2425 = vmatpush.msra.mxu0 0.0
    %2426 = vmatpush.msra.mxu0 0.0
    %2427 = vmatpush.msra.mxu0 0.0
    %2428 = vmatpush.msra.mxu0 0.0
    %2429 = vmatpush.msra.mxu0 0.0
    %2430 = vmatpush.msra.mxu0 0.0
    %2431 = vmatpush.msra.mxu0 0.0
    %2432 = vmatpush.msra.mxu0 0.0
    %2433 = vmatpush.msra.mxu0 0.0
    %2434 = vmatpush.msra.mxu0 0.0
    %2435 = vmatpush.msra.mxu0 0.0
    %2436 = vmatpush.msra.mxu0 0.0
    %2437 = vmatpush.msra.mxu0 %v2423
    %2438 = vmatpush.msra.mxu0 %v2414
    %2439 = vmatpush.msra.mxu0 %v2412
    %2440 = vmatpush.msra.mxu0 %v2410
    %2441 = vmatmul.f32.gmra.mxu0 %v2421
    %v2442 = vpop.f32.mrf.mxu0
    %v2443 = vadd.f32 0.0, %v2442
    %2444 = vdwg.mxu0
    %v2445 = vadd.f32 %v2408, %v2443
    %2446 = vrot.lane.b32.xlu0 %v1701, 123
    %v2447 = vpop.permute.xlu0 %2446
    %2448 = vrot.lane.b32.xlu0 %v1702, 123
    %v2449 = vpop.permute.xlu0 %2448
    %2450 = vrot.lane.b32.xlu0 %v1703, 123
    %v2451 = vpop.permute.xlu0 %2450
    %2452 = vrot.lane.b32.xlu0 %v1704, 123
    %v2453 = vpop.permute.xlu0 %2452
    %v2458 = vsel %vm1779, %v1746, 0
    %v2460 = vsel %vm1783, %v2453, 0
    %2462 = vmatpush.msra.mxu0 0.0
    %2463 = vmatpush.msra.mxu0 0.0
    %2464 = vmatpush.msra.mxu0 0.0
    %2465 = vmatpush.msra.mxu0 0.0
    %2466 = vmatpush.msra.mxu0 0.0
    %2467 = vmatpush.msra.mxu0 0.0
    %2468 = vmatpush.msra.mxu0 0.0
    %2469 = vmatpush.msra.mxu0 0.0
    %2470 = vmatpush.msra.mxu0 0.0
    %2471 = vmatpush.msra.mxu0 0.0
    %2472 = vmatpush.msra.mxu0 0.0
    %2473 = vmatpush.msra.mxu0 0.0
    %2474 = vmatpush.msra.mxu0 %v2460
    %2475 = vmatpush.msra.mxu0 %v2451
    %2476 = vmatpush.msra.mxu0 %v2449
    %2477 = vmatpush.msra.mxu0 %v2447
    %2478 = vmatmul.f32.gmra.mxu0 %v2458
    %v2479 = vpop.f32.mrf.mxu0
    %v2480 = vadd.f32 0.0, %v2479
    %2481 = vdwg.mxu0
    %v2482 = vadd.f32 %v2445, %v2480
    %2483 = vrot.lane.b32.xlu0 %v1701, 122
    %v2484 = vpop.permute.xlu0 %2483
    %2485 = vrot.lane.b32.xlu0 %v1702, 122
    %v2486 = vpop.permute.xlu0 %2485
    %2487 = vrot.lane.b32.xlu0 %v1703, 122
    %v2488 = vpop.permute.xlu0 %2487
    %2489 = vrot.lane.b32.xlu0 %v1704, 122
    %v2490 = vpop.permute.xlu0 %2489
    %v2495 = vsel %vm1779, %v1748, 0
    %v2497 = vsel %vm1783, %v2490, 0
    %2499 = vmatpush.msra.mxu0 0.0
    %2500 = vmatpush.msra.mxu0 0.0
    %2501 = vmatpush.msra.mxu0 0.0
    %2502 = vmatpush.msra.mxu0 0.0
    %2503 = vmatpush.msra.mxu0 0.0
    %2504 = vmatpush.msra.mxu0 0.0
    %2505 = vmatpush.msra.mxu0 0.0
    %2506 = vmatpush.msra.mxu0 0.0
    %2507 = vmatpush.msra.mxu0 0.0
    %2508 = vmatpush.msra.mxu0 0.0
    %2509 = vmatpush.msra.mxu0 0.0
    %2510 = vmatpush.msra.mxu0 0.0
    %2511 = vmatpush.msra.mxu0 %v2497
    %2512 = vmatpush.msra.mxu0 %v2488
    %2513 = vmatpush.msra.mxu0 %v2486
    %2514 = vmatpush.msra.mxu0 %v2484
    %2515 = vmatmul.f32.gmra.mxu0 %v2495
    %v2516 = vpop.f32.mrf.mxu0
    %v2517 = vadd.f32 0.0, %v2516
    %2518 = vdwg.mxu0
    %v2519 = vadd.f32 %v2482, %v2517
    %s2520 = sld [smem:[#allocation7]]
    %v2521 = vstv %s2520
    %v2522 = vadd.f32 %v2519, %v2521
    %vm2523 = vcmask 261120
    %v2525 = vsel %vm2523, %v2522, 0
    %2527 = vmatpush.msra.mxu0 0.0
    %2528 = vmatpush.msra.mxu0 0.0
    %2529 = vmatpush.msra.mxu0 0.0
    %2530 = vmatpush.msra.mxu0 0.0
    %2531 = vmatpush.msra.mxu0 0.0
    %2532 = vmatpush.msra.mxu0 0.0
    %2533 = vmatpush.msra.mxu0 0.0
    %2534 = vmatpush.msra.mxu0 0.0
    %2535 = vmatpush.msra.mxu0 0.0
    %2536 = vmatpush.msra.mxu0 0.0
    %2537 = vmatpush.msra.mxu0 0.0
    %2538 = vmatpush.msra.mxu0 0.0
    %2539 = vmatpush.msra.mxu0 %v1752
    %2540 = vmatpush.msra.mxu0 %v1751
    %2541 = vmatpush.msra.mxu0 %v1750
    %2542 = vmatpush.msra.mxu0 %v1749
    %2543 = vmatmul.f32.gmra.mxu0 %v2525
    %v2544 = vpop.f32.mrf.mxu0
    %v2545 = vadd.f32 0.0, %v2544
    %2546 = vdwg.mxu0
    %v2547 = vadd.f32 %v1763, %v2545
    %s2548 = sld [smem:[#allocation7 + $0x1]]
    %v2549 = vstv %s2548
    %v2550 = vadd.f32 %v2519, %v2549
    %v2552 = vrot.slane %v2550, 1
    %v2553 = vsel %vm2523, %v2552, 0
    %2555 = vmatpush.msra.mxu0 0.0
    %2556 = vmatpush.msra.mxu0 0.0
    %2557 = vmatpush.msra.mxu0 0.0
    %2558 = vmatpush.msra.mxu0 0.0
    %2559 = vmatpush.msra.mxu0 0.0
    %2560 = vmatpush.msra.mxu0 0.0
    %2561 = vmatpush.msra.mxu0 0.0
    %2562 = vmatpush.msra.mxu0 0.0
    %2563 = vmatpush.msra.mxu0 0.0
    %2564 = vmatpush.msra.mxu0 0.0
    %2565 = vmatpush.msra.mxu0 0.0
    %2566 = vmatpush.msra.mxu0 0.0
    %2567 = vmatpush.msra.mxu0 %v1757
    %2568 = vmatpush.msra.mxu0 %v1756
    %2569 = vmatpush.msra.mxu0 %v1755
    %2570 = vmatpush.msra.mxu0 %v1754
    %2571 = vmatmul.f32.gmra.mxu0 %v2553
    %v2572 = vpop.f32.mrf.mxu0
    %v2573 = vadd.f32 0.0, %v2572
    %2574 = vdwg.mxu0
    %v2575 = vadd.f32 %v2547, %v2573
    %s2576 = sld [smem:[#allocation7 + $0x2]]
    %v2577 = vstv %s2576
    %v2578 = vadd.f32 %v2519, %v2577
    %v2580 = vrot.slane %v2578, 2
    %v2581 = vsel %vm2523, %v2580, 0
    %2583 = vmatpush.msra.mxu0 0.0
    %2584 = vmatpush.msra.mxu0 0.0
    %2585 = vmatpush.msra.mxu0 0.0
    %2586 = vmatpush.msra.mxu0 0.0
    %2587 = vmatpush.msra.mxu0 0.0
    %2588 = vmatpush.msra.mxu0 0.0
    %2589 = vmatpush.msra.mxu0 0.0
    %2590 = vmatpush.msra.mxu0 0.0
    %2591 = vmatpush.msra.mxu0 0.0
    %2592 = vmatpush.msra.mxu0 0.0
    %2593 = vmatpush.msra.mxu0 0.0
    %2594 = vmatpush.msra.mxu0 0.0
    %2595 = vmatpush.msra.mxu0 %v1762
    %2596 = vmatpush.msra.mxu0 %v1761
    %2597 = vmatpush.msra.mxu0 %v1760
    %2598 = vmatpush.msra.mxu0 %v1759
    %2599 = vmatmul.f32.gmra.mxu0 %v2581
    %v2600 = vpop.f32.mrf.mxu0
    %v2601 = vadd.f32 0.0, %v2600
    %2602 = vdwg.mxu0
    %v2603 = vadd.f32 %v2575, %v2601
    %2604 = vst [vmem:[#allocation8] sm:$0x1] %v2603
    %v2608 = vrot.slane %v612, 4
    %v2609 = vrot.slane %v613, 4
    %v2610 = vsel %vm1783, %v2608, %v2609
    %v2611 = vrot.slane %v614, 4
    %v2612 = vsel %vm1783, %v2609, %v2611
    %v2613 = vrot.slane %v615, 4
    %v2614 = vsel %vm1783, %v2611, %v2613
    %2615 = vrot.lane.b32.xlu0 %v2610, 127
    %v2616 = vpop.permute.xlu0 %2615
    %2617 = vrot.lane.b32.xlu0 %v2612, 127
    %v2618 = vpop.permute.xlu0 %2617
    %2619 = vrot.lane.b32.xlu0 %v2614, 127
    %v2620 = vpop.permute.xlu0 %2619
    %2621 = vrot.lane.b32.xlu0 %v2613, 127
    %v2622 = vpop.permute.xlu0 %2621
    %v2626 = vsel %vm1783, %v2622, 0
    %2628 = vmatpush.msra.mxu0 0.0
    %2629 = vmatpush.msra.mxu0 0.0
    %2630 = vmatpush.msra.mxu0 0.0
    %2631 = vmatpush.msra.mxu0 0.0
    %2632 = vmatpush.msra.mxu0 0.0
    %2633 = vmatpush.msra.mxu0 0.0
    %2634 = vmatpush.msra.mxu0 0.0
    %2635 = vmatpush.msra.mxu0 0.0
    %2636 = vmatpush.msra.mxu0 0.0
    %2637 = vmatpush.msra.mxu0 0.0
    %2638 = vmatpush.msra.mxu0 0.0
    %2639 = vmatpush.msra.mxu0 0.0
    %2640 = vmatpush.msra.mxu0 %v2626
    %2641 = vmatpush.msra.mxu0 %v2620
    %2642 = vmatpush.msra.mxu0 %v2618
    %2643 = vmatpush.msra.mxu0 %v2616
    %2644 = vmatmul.f32.gmra.mxu0 %v1781
    %v2645 = vpop.f32.mrf.mxu0
    %v2646 = vadd.f32 0.0, %v2645
    %2647 = vdwg.mxu0
    %v2651 = vsel %vm1783, %v2613, 0
    %2653 = vmatpush.msra.mxu0 0.0
    %2654 = vmatpush.msra.mxu0 0.0
    %2655 = vmatpush.msra.mxu0 0.0
    %2656 = vmatpush.msra.mxu0 0.0
    %2657 = vmatpush.msra.mxu0 0.0
    %2658 = vmatpush.msra.mxu0 0.0
    %2659 = vmatpush.msra.mxu0 0.0
    %2660 = vmatpush.msra.mxu0 0.0
    %2661 = vmatpush.msra.mxu0 0.0
    %2662 = vmatpush.msra.mxu0 0.0
    %2663 = vmatpush.msra.mxu0 0.0
    %2664 = vmatpush.msra.mxu0 0.0
    %2665 = vmatpush.msra.mxu0 %v2651
    %2666 = vmatpush.msra.mxu0 %v2614
    %2667 = vmatpush.msra.mxu0 %v2612
    %2668 = vmatpush.msra.mxu0 %v2610
    %2669 = vmatmul.f32.gmra.mxu0 %v1807
    %v2670 = vpop.f32.mrf.mxu0
    %v2671 = vadd.f32 %v2646, %v2670
    %2672 = vdwg.mxu0
    %2673 = vrot.lane.b32.xlu0 %v2610, 126
    %v2674 = vpop.permute.xlu0 %2673
    %2675 = vrot.lane.b32.xlu0 %v2612, 126
    %v2676 = vpop.permute.xlu0 %2675
    %2677 = vrot.lane.b32.xlu0 %v2614, 126
    %v2678 = vpop.permute.xlu0 %2677
    %2679 = vrot.lane.b32.xlu0 %v2613, 126
    %v2680 = vpop.permute.xlu0 %2679
    %v2684 = vsel %vm1783, %v2680, 0
    %2686 = vmatpush.msra.mxu0 0.0
    %2687 = vmatpush.msra.mxu0 0.0
    %2688 = vmatpush.msra.mxu0 0.0
    %2689 = vmatpush.msra.mxu0 0.0
    %2690 = vmatpush.msra.mxu0 0.0
    %2691 = vmatpush.msra.mxu0 0.0
    %2692 = vmatpush.msra.mxu0 0.0
    %2693 = vmatpush.msra.mxu0 0.0
    %2694 = vmatpush.msra.mxu0 0.0
    %2695 = vmatpush.msra.mxu0 0.0
    %2696 = vmatpush.msra.mxu0 0.0
    %2697 = vmatpush.msra.mxu0 0.0
    %2698 = vmatpush.msra.mxu0 %v2684
    %2699 = vmatpush.msra.mxu0 %v2678
    %2700 = vmatpush.msra.mxu0 %v2676
    %2701 = vmatpush.msra.mxu0 %v2674
    %2702 = vmatmul.f32.gmra.mxu0 %v1843
    %v2703 = vpop.f32.mrf.mxu0
    %v2704 = vadd.f32 0.0, %v2703
    %2705 = vdwg.mxu0
    %v2706 = vadd.f32 %v2671, %v2704
    %2707 = vrot.lane.b32.xlu0 %v2610, 125
    %v2708 = vpop.permute.xlu0 %2707
    %2709 = vrot.lane.b32.xlu0 %v2612, 125
    %v2710 = vpop.permute.xlu0 %2709
    %2711 = vrot.lane.b32.xlu0 %v2614, 125
    %v2712 = vpop.permute.xlu0 %2711
    %2713 = vrot.lane.b32.xlu0 %v2613, 125
    %v2714 = vpop.permute.xlu0 %2713
    %v2718 = vsel %vm1783, %v2714, 0
    %2720 = vmatpush.msra.mxu0 0.0
    %2721 = vmatpush.msra.mxu0 0.0
    %2722 = vmatpush.msra.mxu0 0.0
    %2723 = vmatpush.msra.mxu0 0.0
    %2724 = vmatpush.msra.mxu0 0.0
    %2725 = vmatpush.msra.mxu0 0.0
    %2726 = vmatpush.msra.mxu0 0.0
    %2727 = vmatpush.msra.mxu0 0.0
    %2728 = vmatpush.msra.mxu0 0.0
    %2729 = vmatpush.msra.mxu0 0.0
    %2730 = vmatpush.msra.mxu0 0.0
    %2731 = vmatpush.msra.mxu0 0.0
    %2732 = vmatpush.msra.mxu0 %v2718
    %2733 = vmatpush.msra.mxu0 %v2712
    %2734 = vmatpush.msra.mxu0 %v2710
    %2735 = vmatpush.msra.mxu0 %v2708
    %2736 = vmatmul.f32.gmra.mxu0 %v1880
    %v2737 = vpop.f32.mrf.mxu0
    %v2738 = vadd.f32 0.0, %v2737
    %2739 = vdwg.mxu0
    %v2740 = vadd.f32 %v2706, %v2738
    %2741 = vrot.lane.b32.xlu0 %v2610, 124
    %v2742 = vpop.permute.xlu0 %2741
    %2743 = vrot.lane.b32.xlu0 %v2612, 124
    %v2744 = vpop.permute.xlu0 %2743
    %2745 = vrot.lane.b32.xlu0 %v2614, 124
    %v2746 = vpop.permute.xlu0 %2745
    %2747 = vrot.lane.b32.xlu0 %v2613, 124
    %v2748 = vpop.permute.xlu0 %2747
    %v2752 = vsel %vm1783, %v2748, 0
    %2754 = vmatpush.msra.mxu0 0.0
    %2755 = vmatpush.msra.mxu0 0.0
    %2756 = vmatpush.msra.mxu0 0.0
    %2757 = vmatpush.msra.mxu0 0.0
    %2758 = vmatpush.msra.mxu0 0.0
    %2759 = vmatpush.msra.mxu0 0.0
    %2760 = vmatpush.msra.mxu0 0.0
    %2761 = vmatpush.msra.mxu0 0.0
    %2762 = vmatpush.msra.mxu0 0.0
    %2763 = vmatpush.msra.mxu0 0.0
    %2764 = vmatpush.msra.mxu0 0.0
    %2765 = vmatpush.msra.mxu0 0.0
    %2766 = vmatpush.msra.mxu0 %v2752
    %2767 = vmatpush.msra.mxu0 %v2746
    %2768 = vmatpush.msra.mxu0 %v2744
    %2769 = vmatpush.msra.mxu0 %v2742
    %2770 = vmatmul.f32.gmra.mxu0 %v1917
    %v2771 = vpop.f32.mrf.mxu0
    %v2772 = vadd.f32 0.0, %v2771
    %2773 = vdwg.mxu0
    %v2774 = vadd.f32 %v2740, %v2772
    %2775 = vrot.lane.b32.xlu0 %v2610, 123
    %v2776 = vpop.permute.xlu0 %2775
    %2777 = vrot.lane.b32.xlu0 %v2612, 123
    %v2778 = vpop.permute.xlu0 %2777
    %2779 = vrot.lane.b32.xlu0 %v2614, 123
    %v2780 = vpop.permute.xlu0 %2779
    %2781 = vrot.lane.b32.xlu0 %v2613, 123
    %v2782 = vpop.permute.xlu0 %2781
    %v2786 = vsel %vm1783, %v2782, 0
    %2788 = vmatpush.msra.mxu0 0.0
    %2789 = vmatpush.msra.mxu0 0.0
    %2790 = vmatpush.msra.mxu0 0.0
    %2791 = vmatpush.msra.mxu0 0.0
    %2792 = vmatpush.msra.mxu0 0.0
    %2793 = vmatpush.msra.mxu0 0.0
    %2794 = vmatpush.msra.mxu0 0.0
    %2795 = vmatpush.msra.mxu0 0.0
    %2796 = vmatpush.msra.mxu0 0.0
    %2797 = vmatpush.msra.mxu0 0.0
    %2798 = vmatpush.msra.mxu0 0.0
    %2799 = vmatpush.msra.mxu0 0.0
    %2800 = vmatpush.msra.mxu0 %v2786
    %2801 = vmatpush.msra.mxu0 %v2780
    %2802 = vmatpush.msra.mxu0 %v2778
    %2803 = vmatpush.msra.mxu0 %v2776
    %2804 = vmatmul.f32.gmra.mxu0 %v1954
    %v2805 = vpop.f32.mrf.mxu0
    %v2806 = vadd.f32 0.0, %v2805
    %2807 = vdwg.mxu0
    %v2808 = vadd.f32 %v2774, %v2806
    %2809 = vrot.lane.b32.xlu0 %v2610, 122
    %v2810 = vpop.permute.xlu0 %2809
    %2811 = vrot.lane.b32.xlu0 %v2612, 122
    %v2812 = vpop.permute.xlu0 %2811
    %2813 = vrot.lane.b32.xlu0 %v2614, 122
    %v2814 = vpop.permute.xlu0 %2813
    %2815 = vrot.lane.b32.xlu0 %v2613, 122
    %v2816 = vpop.permute.xlu0 %2815
    %v2820 = vsel %vm1783, %v2816, 0
    %2822 = vmatpush.msra.mxu0 0.0
    %2823 = vmatpush.msra.mxu0 0.0
    %2824 = vmatpush.msra.mxu0 0.0
    %2825 = vmatpush.msra.mxu0 0.0
    %2826 = vmatpush.msra.mxu0 0.0
    %2827 = vmatpush.msra.mxu0 0.0
    %2828 = vmatpush.msra.mxu0 0.0
    %2829 = vmatpush.msra.mxu0 0.0
    %2830 = vmatpush.msra.mxu0 0.0
    %2831 = vmatpush.msra.mxu0 0.0
    %2832 = vmatpush.msra.mxu0 0.0
    %2833 = vmatpush.msra.mxu0 0.0
    %2834 = vmatpush.msra.mxu0 %v2820
    %2835 = vmatpush.msra.mxu0 %v2814
    %2836 = vmatpush.msra.mxu0 %v2812
    %2837 = vmatpush.msra.mxu0 %v2810
    %2838 = vmatmul.f32.gmra.mxu0 %v1991
    %v2839 = vpop.f32.mrf.mxu0
    %v2840 = vadd.f32 0.0, %v2839
    %2841 = vdwg.mxu0
    %v2842 = vadd.f32 %v2808, %v2840
    %v2846 = vrot.slane %v1158, 4
    %v2847 = vrot.slane %v1159, 4
    %v2848 = vsel %vm1783, %v2846, %v2847
    %v2849 = vrot.slane %v1160, 4
    %v2850 = vsel %vm1783, %v2847, %v2849
    %v2851 = vrot.slane %v1161, 4
    %v2852 = vsel %vm1783, %v2849, %v2851
    %v2856 = vsel %vm1783, %v2851, 0
    %2858 = vmatpush.msra.mxu0 0.0
    %2859 = vmatpush.msra.mxu0 0.0
    %2860 = vmatpush.msra.mxu0 0.0
    %2861 = vmatpush.msra.mxu0 0.0
    %2862 = vmatpush.msra.mxu0 0.0
    %2863 = vmatpush.msra.mxu0 0.0
    %2864 = vmatpush.msra.mxu0 0.0
    %2865 = vmatpush.msra.mxu0 0.0
    %2866 = vmatpush.msra.mxu0 0.0
    %2867 = vmatpush.msra.mxu0 0.0
    %2868 = vmatpush.msra.mxu0 0.0
    %2869 = vmatpush.msra.mxu0 0.0
    %2870 = vmatpush.msra.mxu0 %v2856
    %2871 = vmatpush.msra.mxu0 %v2852
    %2872 = vmatpush.msra.mxu0 %v2850
    %2873 = vmatpush.msra.mxu0 %v2848
    %2874 = vmatmul.f32.gmra.mxu0 %v2017
    %v2875 = vpop.f32.mrf.mxu0
    %v2876 = vadd.f32 0.0, %v2875
    %2877 = vdwg.mxu0
    %v2878 = vadd.f32 %v2842, %v2876
    %2879 = vrot.lane.b32.xlu0 %v2848, 127
    %v2880 = vpop.permute.xlu0 %2879
    %2881 = vrot.lane.b32.xlu0 %v2850, 127
    %v2882 = vpop.permute.xlu0 %2881
    %2883 = vrot.lane.b32.xlu0 %v2852, 127
    %v2884 = vpop.permute.xlu0 %2883
    %2885 = vrot.lane.b32.xlu0 %v2851, 127
    %v2886 = vpop.permute.xlu0 %2885
    %v2890 = vsel %vm1783, %v2886, 0
    %2892 = vmatpush.msra.mxu0 0.0
    %2893 = vmatpush.msra.mxu0 0.0
    %2894 = vmatpush.msra.mxu0 0.0
    %2895 = vmatpush.msra.mxu0 0.0
    %2896 = vmatpush.msra.mxu0 0.0
    %2897 = vmatpush.msra.mxu0 0.0
    %2898 = vmatpush.msra.mxu0 0.0
    %2899 = vmatpush.msra.mxu0 0.0
    %2900 = vmatpush.msra.mxu0 0.0
    %2901 = vmatpush.msra.mxu0 0.0
    %2902 = vmatpush.msra.mxu0 0.0
    %2903 = vmatpush.msra.mxu0 0.0
    %2904 = vmatpush.msra.mxu0 %v2890
    %2905 = vmatpush.msra.mxu0 %v2884
    %2906 = vmatpush.msra.mxu0 %v2882
    %2907 = vmatpush.msra.mxu0 %v2880
    %2908 = vmatmul.f32.gmra.mxu0 %v2058
    %v2909 = vpop.f32.mrf.mxu0
    %v2910 = vadd.f32 0.0, %v2909
    %2911 = vdwg.mxu0
    %v2912 = vadd.f32 %v2878, %v2910
    %2913 = vrot.lane.b32.xlu0 %v2848, 126
    %v2914 = vpop.permute.xlu0 %2913
    %2915 = vrot.lane.b32.xlu0 %v2850, 126
    %v2916 = vpop.permute.xlu0 %2915
    %2917 = vrot.lane.b32.xlu0 %v2852, 126
    %v2918 = vpop.permute.xlu0 %2917
    %2919 = vrot.lane.b32.xlu0 %v2851, 126
    %v2920 = vpop.permute.xlu0 %2919
    %v2924 = vsel %vm1783, %v2920, 0
    %2926 = vmatpush.msra.mxu0 0.0
    %2927 = vmatpush.msra.mxu0 0.0
    %2928 = vmatpush.msra.mxu0 0.0
    %2929 = vmatpush.msra.mxu0 0.0
    %2930 = vmatpush.msra.mxu0 0.0
    %2931 = vmatpush.msra.mxu0 0.0
    %2932 = vmatpush.msra.mxu0 0.0
    %2933 = vmatpush.msra.mxu0 0.0
    %2934 = vmatpush.msra.mxu0 0.0
    %2935 = vmatpush.msra.mxu0 0.0
    %2936 = vmatpush.msra.mxu0 0.0
    %2937 = vmatpush.msra.mxu0 0.0
    %2938 = vmatpush.msra.mxu0 %v2924
    %2939 = vmatpush.msra.mxu0 %v2918
    %2940 = vmatpush.msra.mxu0 %v2916
    %2941 = vmatpush.msra.mxu0 %v2914
    %2942 = vmatmul.f32.gmra.mxu0 %v2095
    %v2943 = vpop.f32.mrf.mxu0
    %v2944 = vadd.f32 0.0, %v2943
    %2945 = vdwg.mxu0
    %v2946 = vadd.f32 %v2912, %v2944
    %2947 = vrot.lane.b32.xlu0 %v2848, 125
    %v2948 = vpop.permute.xlu0 %2947
    %2949 = vrot.lane.b32.xlu0 %v2850, 125
    %v2950 = vpop.permute.xlu0 %2949
    %2951 = vrot.lane.b32.xlu0 %v2852, 125
    %v2952 = vpop.permute.xlu0 %2951
    %2953 = vrot.lane.b32.xlu0 %v2851, 125
    %v2954 = vpop.permute.xlu0 %2953
    %v2958 = vsel %vm1783, %v2954, 0
    %2960 = vmatpush.msra.mxu0 0.0
    %2961 = vmatpush.msra.mxu0 0.0
    %2962 = vmatpush.msra.mxu0 0.0
    %2963 = vmatpush.msra.mxu0 0.0
    %2964 = vmatpush.msra.mxu0 0.0
    %2965 = vmatpush.msra.mxu0 0.0
    %2966 = vmatpush.msra.mxu0 0.0
    %2967 = vmatpush.msra.mxu0 0.0
    %2968 = vmatpush.msra.mxu0 0.0
    %2969 = vmatpush.msra.mxu0 0.0
    %2970 = vmatpush.msra.mxu0 0.0
    %2971 = vmatpush.msra.mxu0 0.0
    %2972 = vmatpush.msra.mxu0 %v2958
    %2973 = vmatpush.msra.mxu0 %v2952
    %2974 = vmatpush.msra.mxu0 %v2950
    %2975 = vmatpush.msra.mxu0 %v2948
    %2976 = vmatmul.f32.gmra.mxu0 %v2132
    %v2977 = vpop.f32.mrf.mxu0
    %v2978 = vadd.f32 0.0, %v2977
    %2979 = vdwg.mxu0
    %v2980 = vadd.f32 %v2946, %v2978
    %2981 = vrot.lane.b32.xlu0 %v2848, 124
    %v2982 = vpop.permute.xlu0 %2981
    %2983 = vrot.lane.b32.xlu0 %v2850, 124
    %v2984 = vpop.permute.xlu0 %2983
    %2985 = vrot.lane.b32.xlu0 %v2852, 124
    %v2986 = vpop.permute.xlu0 %2985
    %2987 = vrot.lane.b32.xlu0 %v2851, 124
    %v2988 = vpop.permute.xlu0 %2987
    %v2992 = vsel %vm1783, %v2988, 0
    %2994 = vmatpush.msra.mxu0 0.0
    %2995 = vmatpush.msra.mxu0 0.0
    %2996 = vmatpush.msra.mxu0 0.0
    %2997 = vmatpush.msra.mxu0 0.0
    %2998 = vmatpush.msra.mxu0 0.0
    %2999 = vmatpush.msra.mxu0 0.0
    %3000 = vmatpush.msra.mxu0 0.0
    %3001 = vmatpush.msra.mxu0 0.0
    %3002 = vmatpush.msra.mxu0 0.0
    %3003 = vmatpush.msra.mxu0 0.0
    %3004 = vmatpush.msra.mxu0 0.0
    %3005 = vmatpush.msra.mxu0 0.0
    %3006 = vmatpush.msra.mxu0 %v2992
    %3007 = vmatpush.msra.mxu0 %v2986
    %3008 = vmatpush.msra.mxu0 %v2984
    %3009 = vmatpush.msra.mxu0 %v2982
    %3010 = vmatmul.f32.gmra.mxu0 %v2169
    %v3011 = vpop.f32.mrf.mxu0
    %v3012 = vadd.f32 0.0, %v3011
    %3013 = vdwg.mxu0
    %v3014 = vadd.f32 %v2980, %v3012
    %3015 = vrot.lane.b32.xlu0 %v2848, 123
    %v3016 = vpop.permute.xlu0 %3015
    %3017 = vrot.lane.b32.xlu0 %v2850, 123
    %v3018 = vpop.permute.xlu0 %3017
    %3019 = vrot.lane.b32.xlu0 %v2852, 123
    %v3020 = vpop.permute.xlu0 %3019
    %3021 = vrot.lane.b32.xlu0 %v2851, 123
    %v3022 = vpop.permute.xlu0 %3021
    %v3026 = vsel %vm1783, %v3022, 0
    %3028 = vmatpush.msra.mxu0 0.0
    %3029 = vmatpush.msra.mxu0 0.0
    %3030 = vmatpush.msra.mxu0 0.0
    %3031 = vmatpush.msra.mxu0 0.0
    %3032 = vmatpush.msra.mxu0 0.0
    %3033 = vmatpush.msra.mxu0 0.0
    %3034 = vmatpush.msra.mxu0 0.0
    %3035 = vmatpush.msra.mxu0 0.0
    %3036 = vmatpush.msra.mxu0 0.0
    %3037 = vmatpush.msra.mxu0 0.0
    %3038 = vmatpush.msra.mxu0 0.0
    %3039 = vmatpush.msra.mxu0 0.0
    %3040 = vmatpush.msra.mxu0 %v3026
    %3041 = vmatpush.msra.mxu0 %v3020
    %3042 = vmatpush.msra.mxu0 %v3018
    %3043 = vmatpush.msra.mxu0 %v3016
    %3044 = vmatmul.f32.gmra.mxu0 %v2206
    %v3045 = vpop.f32.mrf.mxu0
    %v3046 = vadd.f32 0.0, %v3045
    %3047 = vdwg.mxu0
    %v3048 = vadd.f32 %v3014, %v3046
    %3049 = vrot.lane.b32.xlu0 %v2848, 122
    %v3050 = vpop.permute.xlu0 %3049
    %3051 = vrot.lane.b32.xlu0 %v2850, 122
    %v3052 = vpop.permute.xlu0 %3051
    %3053 = vrot.lane.b32.xlu0 %v2852, 122
    %v3054 = vpop.permute.xlu0 %3053
    %3055 = vrot.lane.b32.xlu0 %v2851, 122
    %v3056 = vpop.permute.xlu0 %3055
    %v3060 = vsel %vm1783, %v3056, 0
    %3062 = vmatpush.msra.mxu0 0.0
    %3063 = vmatpush.msra.mxu0 0.0
    %3064 = vmatpush.msra.mxu0 0.0
    %3065 = vmatpush.msra.mxu0 0.0
    %3066 = vmatpush.msra.mxu0 0.0
    %3067 = vmatpush.msra.mxu0 0.0
    %3068 = vmatpush.msra.mxu0 0.0
    %3069 = vmatpush.msra.mxu0 0.0
    %3070 = vmatpush.msra.mxu0 0.0
    %3071 = vmatpush.msra.mxu0 0.0
    %3072 = vmatpush.msra.mxu0 0.0
    %3073 = vmatpush.msra.mxu0 0.0
    %3074 = vmatpush.msra.mxu0 %v3060
    %3075 = vmatpush.msra.mxu0 %v3054
    %3076 = vmatpush.msra.mxu0 %v3052
    %3077 = vmatpush.msra.mxu0 %v3050
    %3078 = vmatmul.f32.gmra.mxu0 %v2243
    %v3079 = vpop.f32.mrf.mxu0
    %v3080 = vadd.f32 0.0, %v3079
    %3081 = vdwg.mxu0
    %v3082 = vadd.f32 %v3048, %v3080
    %v3086 = vrot.slane %v1704, 4
    %v3087 = vrot.slane %v1705, 4
    %v3088 = vsel %vm1783, %v3086, %v3087
    %v3089 = vrot.slane %v1706, 4
    %v3090 = vsel %vm1783, %v3087, %v3089
    %v3091 = vrot.slane %v1707, 4
    %v3092 = vsel %vm1783, %v3089, %v3091
    %v3096 = vsel %vm1783, %v3091, 0
    %3098 = vmatpush.msra.mxu0 0.0
    %3099 = vmatpush.msra.mxu0 0.0
    %3100 = vmatpush.msra.mxu0 0.0
    %3101 = vmatpush.msra.mxu0 0.0
    %3102 = vmatpush.msra.mxu0 0.0
    %3103 = vmatpush.msra.mxu0 0.0
    %3104 = vmatpush.msra.mxu0 0.0
    %3105 = vmatpush.msra.mxu0 0.0
    %3106 = vmatpush.msra.mxu0 0.0
    %3107 = vmatpush.msra.mxu0 0.0
    %3108 = vmatpush.msra.mxu0 0.0
    %3109 = vmatpush.msra.mxu0 0.0
    %3110 = vmatpush.msra.mxu0 %v3096
    %3111 = vmatpush.msra.mxu0 %v3092
    %3112 = vmatpush.msra.mxu0 %v3090
    %3113 = vmatpush.msra.mxu0 %v3088
    %3114 = vmatmul.f32.gmra.mxu0 %v2269
    %v3115 = vpop.f32.mrf.mxu0
    %v3116 = vadd.f32 0.0, %v3115
    %3117 = vdwg.mxu0
    %v3118 = vadd.f32 %v3082, %v3116
    %3119 = vrot.lane.b32.xlu0 %v3088, 127
    %v3120 = vpop.permute.xlu0 %3119
    %3121 = vrot.lane.b32.xlu0 %v3090, 127
    %v3122 = vpop.permute.xlu0 %3121
    %3123 = vrot.lane.b32.xlu0 %v3092, 127
    %v3124 = vpop.permute.xlu0 %3123
    %3125 = vrot.lane.b32.xlu0 %v3091, 127
    %v3126 = vpop.permute.xlu0 %3125
    %v3130 = vsel %vm1783, %v3126, 0
    %3132 = vmatpush.msra.mxu0 0.0
    %3133 = vmatpush.msra.mxu0 0.0
    %3134 = vmatpush.msra.mxu0 0.0
    %3135 = vmatpush.msra.mxu0 0.0
    %3136 = vmatpush.msra.mxu0 0.0
    %3137 = vmatpush.msra.mxu0 0.0
    %3138 = vmatpush.msra.mxu0 0.0
    %3139 = vmatpush.msra.mxu0 0.0
    %3140 = vmatpush.msra.mxu0 0.0
    %3141 = vmatpush.msra.mxu0 0.0
    %3142 = vmatpush.msra.mxu0 0.0
    %3143 = vmatpush.msra.mxu0 0.0
    %3144 = vmatpush.msra.mxu0 %v3130
    %3145 = vmatpush.msra.mxu0 %v3124
    %3146 = vmatpush.msra.mxu0 %v3122
    %3147 = vmatpush.msra.mxu0 %v3120
    %3148 = vmatmul.f32.gmra.mxu0 %v2310
    %v3149 = vpop.f32.mrf.mxu0
    %v3150 = vadd.f32 0.0, %v3149
    %3151 = vdwg.mxu0
    %v3152 = vadd.f32 %v3118, %v3150
    %3153 = vrot.lane.b32.xlu0 %v3088, 126
    %v3154 = vpop.permute.xlu0 %3153
    %3155 = vrot.lane.b32.xlu0 %v3090, 126
    %v3156 = vpop.permute.xlu0 %3155
    %3157 = vrot.lane.b32.xlu0 %v3092, 126
    %v3158 = vpop.permute.xlu0 %3157
    %3159 = vrot.lane.b32.xlu0 %v3091, 126
    %v3160 = vpop.permute.xlu0 %3159
    %v3164 = vsel %vm1783, %v3160, 0
    %3166 = vmatpush.msra.mxu0 0.0
    %3167 = vmatpush.msra.mxu0 0.0
    %3168 = vmatpush.msra.mxu0 0.0
    %3169 = vmatpush.msra.mxu0 0.0
    %3170 = vmatpush.msra.mxu0 0.0
    %3171 = vmatpush.msra.mxu0 0.0
    %3172 = vmatpush.msra.mxu0 0.0
    %3173 = vmatpush.msra.mxu0 0.0
    %3174 = vmatpush.msra.mxu0 0.0
    %3175 = vmatpush.msra.mxu0 0.0
    %3176 = vmatpush.msra.mxu0 0.0
    %3177 = vmatpush.msra.mxu0 0.0
    %3178 = vmatpush.msra.mxu0 %v3164
    %3179 = vmatpush.msra.mxu0 %v3158
    %3180 = vmatpush.msra.mxu0 %v3156
    %3181 = vmatpush.msra.mxu0 %v3154
    %3182 = vmatmul.f32.gmra.mxu0 %v2347
    %v3183 = vpop.f32.mrf.mxu0
    %v3184 = vadd.f32 0.0, %v3183
    %3185 = vdwg.mxu0
    %v3186 = vadd.f32 %v3152, %v3184
    %3187 = vrot.lane.b32.xlu0 %v3088, 125
    %v3188 = vpop.permute.xlu0 %3187
    %3189 = vrot.lane.b32.xlu0 %v3090, 125
    %v3190 = vpop.permute.xlu0 %3189
    %3191 = vrot.lane.b32.xlu0 %v3092, 125
    %v3192 = vpop.permute.xlu0 %3191
    %3193 = vrot.lane.b32.xlu0 %v3091, 125
    %v3194 = vpop.permute.xlu0 %3193
    %v3198 = vsel %vm1783, %v3194, 0
    %3200 = vmatpush.msra.mxu0 0.0
    %3201 = vmatpush.msra.mxu0 0.0
    %3202 = vmatpush.msra.mxu0 0.0
    %3203 = vmatpush.msra.mxu0 0.0
    %3204 = vmatpush.msra.mxu0 0.0
    %3205 = vmatpush.msra.mxu0 0.0
    %3206 = vmatpush.msra.mxu0 0.0
    %3207 = vmatpush.msra.mxu0 0.0
    %3208 = vmatpush.msra.mxu0 0.0
    %3209 = vmatpush.msra.mxu0 0.0
    %3210 = vmatpush.msra.mxu0 0.0
    %3211 = vmatpush.msra.mxu0 0.0
    %3212 = vmatpush.msra.mxu0 %v3198
    %3213 = vmatpush.msra.mxu0 %v3192
    %3214 = vmatpush.msra.mxu0 %v3190
    %3215 = vmatpush.msra.mxu0 %v3188
    %3216 = vmatmul.f32.gmra.mxu0 %v2384
    %v3217 = vpop.f32.mrf.mxu0
    %v3218 = vadd.f32 0.0, %v3217
    %3219 = vdwg.mxu0
    %v3220 = vadd.f32 %v3186, %v3218
    %3221 = vrot.lane.b32.xlu0 %v3088, 124
    %v3222 = vpop.permute.xlu0 %3221
    %3223 = vrot.lane.b32.xlu0 %v3090, 124
    %v3224 = vpop.permute.xlu0 %3223
    %3225 = vrot.lane.b32.xlu0 %v3092, 124
    %v3226 = vpop.permute.xlu0 %3225
    %3227 = vrot.lane.b32.xlu0 %v3091, 124
    %v3228 = vpop.permute.xlu0 %3227
    %v3232 = vsel %vm1783, %v3228, 0
    %3234 = vmatpush.msra.mxu0 0.0
    %3235 = vmatpush.msra.mxu0 0.0
    %3236 = vmatpush.msra.mxu0 0.0
    %3237 = vmatpush.msra.mxu0 0.0
    %3238 = vmatpush.msra.mxu0 0.0
    %3239 = vmatpush.msra.mxu0 0.0
    %3240 = vmatpush.msra.mxu0 0.0
    %3241 = vmatpush.msra.mxu0 0.0
    %3242 = vmatpush.msra.mxu0 0.0
    %3243 = vmatpush.msra.mxu0 0.0
    %3244 = vmatpush.msra.mxu0 0.0
    %3245 = vmatpush.msra.mxu0 0.0
    %3246 = vmatpush.msra.mxu0 %v3232
    %3247 = vmatpush.msra.mxu0 %v3226
    %3248 = vmatpush.msra.mxu0 %v3224
    %3249 = vmatpush.msra.mxu0 %v3222
    %3250 = vmatmul.f32.gmra.mxu0 %v2421
    %v3251 = vpop.f32.mrf.mxu0
    %v3252 = vadd.f32 0.0, %v3251
    %3253 = vdwg.mxu0
    %v3254 = vadd.f32 %v3220, %v3252
    %3255 = vrot.lane.b32.xlu0 %v3088, 123
    %v3256 = vpop.permute.xlu0 %3255
    %3257 = vrot.lane.b32.xlu0 %v3090, 123
    %v3258 = vpop.permute.xlu0 %3257
    %3259 = vrot.lane.b32.xlu0 %v3092, 123
    %v3260 = vpop.permute.xlu0 %3259
    %3261 = vrot.lane.b32.xlu0 %v3091, 123
    %v3262 = vpop.permute.xlu0 %3261
    %v3266 = vsel %vm1783, %v3262, 0
    %3268 = vmatpush.msra.mxu0 0.0
    %3269 = vmatpush.msra.mxu0 0.0
    %3270 = vmatpush.msra.mxu0 0.0
    %3271 = vmatpush.msra.mxu0 0.0
    %3272 = vmatpush.msra.mxu0 0.0
    %3273 = vmatpush.msra.mxu0 0.0
    %3274 = vmatpush.msra.mxu0 0.0
    %3275 = vmatpush.msra.mxu0 0.0
    %3276 = vmatpush.msra.mxu0 0.0
    %3277 = vmatpush.msra.mxu0 0.0
    %3278 = vmatpush.msra.mxu0 0.0
    %3279 = vmatpush.msra.mxu0 0.0
    %3280 = vmatpush.msra.mxu0 %v3266
    %3281 = vmatpush.msra.mxu0 %v3260
    %3282 = vmatpush.msra.mxu0 %v3258
    %3283 = vmatpush.msra.mxu0 %v3256
    %3284 = vmatmul.f32.gmra.mxu0 %v2458
    %v3285 = vpop.f32.mrf.mxu0
    %v3286 = vadd.f32 0.0, %v3285
    %3287 = vdwg.mxu0
    %v3288 = vadd.f32 %v3254, %v3286
    %3289 = vrot.lane.b32.xlu0 %v3088, 122
    %v3290 = vpop.permute.xlu0 %3289
    %3291 = vrot.lane.b32.xlu0 %v3090, 122
    %v3292 = vpop.permute.xlu0 %3291
    %3293 = vrot.lane.b32.xlu0 %v3092, 122
    %v3294 = vpop.permute.xlu0 %3293
    %3295 = vrot.lane.b32.xlu0 %v3091, 122
    %v3296 = vpop.permute.xlu0 %3295
    %v3300 = vsel %vm1783, %v3296, 0
    %3302 = vmatpush.msra.mxu0 0.0
    %3303 = vmatpush.msra.mxu0 0.0
    %3304 = vmatpush.msra.mxu0 0.0
    %3305 = vmatpush.msra.mxu0 0.0
    %3306 = vmatpush.msra.mxu0 0.0
    %3307 = vmatpush.msra.mxu0 0.0
    %3308 = vmatpush.msra.mxu0 0.0
    %3309 = vmatpush.msra.mxu0 0.0
    %3310 = vmatpush.msra.mxu0 0.0
    %3311 = vmatpush.msra.mxu0 0.0
    %3312 = vmatpush.msra.mxu0 0.0
    %3313 = vmatpush.msra.mxu0 0.0
    %3314 = vmatpush.msra.mxu0 %v3300
    %3315 = vmatpush.msra.mxu0 %v3294
    %3316 = vmatpush.msra.mxu0 %v3292
    %3317 = vmatpush.msra.mxu0 %v3290
    %3318 = vmatmul.f32.gmra.mxu0 %v2495
    %v3319 = vpop.f32.mrf.mxu0
    %v3320 = vadd.f32 0.0, %v3319
    %3321 = vdwg.mxu0
    %v3322 = vadd.f32 %v3288, %v3320
    %s3323 = sld [smem:[#allocation7]]
    %v3324 = vstv %s3323
    %v3325 = vadd.f32 %v3322, %v3324
    %v3327 = vsel %vm2523, %v3325, 0
    %3329 = vmatpush.msra.mxu0 0.0
    %3330 = vmatpush.msra.mxu0 0.0
    %3331 = vmatpush.msra.mxu0 0.0
    %3332 = vmatpush.msra.mxu0 0.0
    %3333 = vmatpush.msra.mxu0 0.0
    %3334 = vmatpush.msra.mxu0 0.0
    %3335 = vmatpush.msra.mxu0 0.0
    %3336 = vmatpush.msra.mxu0 0.0
    %3337 = vmatpush.msra.mxu0 0.0
    %3338 = vmatpush.msra.mxu0 0.0
    %3339 = vmatpush.msra.mxu0 0.0
    %3340 = vmatpush.msra.mxu0 0.0
    %3341 = vmatpush.msra.mxu0 %v1752
    %3342 = vmatpush.msra.mxu0 %v1751
    %3343 = vmatpush.msra.mxu0 %v1750
    %3344 = vmatpush.msra.mxu0 %v1749
    %3345 = vmatmul.f32.gmra.mxu0 %v3327
    %v3346 = vpop.f32.mrf.mxu0
    %v3347 = vadd.f32 0.0, %v3346
    %3348 = vdwg.mxu0
    %v3349 = vadd.f32 %v1763, %v3347
    %s3350 = sld [smem:[#allocation7 + $0x1]]
    %v3351 = vstv %s3350
    %v3352 = vadd.f32 %v3322, %v3351
    %v3354 = vrot.slane %v3352, 1
    %v3355 = vsel %vm2523, %v3354, 0
    %3357 = vmatpush.msra.mxu0 0.0
    %3358 = vmatpush.msra.mxu0 0.0
    %3359 = vmatpush.msra.mxu0 0.0
    %3360 = vmatpush.msra.mxu0 0.0
    %3361 = vmatpush.msra.mxu0 0.0
    %3362 = vmatpush.msra.mxu0 0.0
    %3363 = vmatpush.msra.mxu0 0.0
    %3364 = vmatpush.msra.mxu0 0.0
    %3365 = vmatpush.msra.mxu0 0.0
    %3366 = vmatpush.msra.mxu0 0.0
    %3367 = vmatpush.msra.mxu0 0.0
    %3368 = vmatpush.msra.mxu0 0.0
    %3369 = vmatpush.msra.mxu0 %v1757
    %3370 = vmatpush.msra.mxu0 %v1756
    %3371 = vmatpush.msra.mxu0 %v1755
    %3372 = vmatpush.msra.mxu0 %v1754
    %3373 = vmatmul.f32.gmra.mxu0 %v3355
    %v3374 = vpop.f32.mrf.mxu0
    %v3375 = vadd.f32 0.0, %v3374
    %3376 = vdwg.mxu0
    %v3377 = vadd.f32 %v3349, %v3375
    %s3378 = sld [smem:[#allocation7 + $0x2]]
    %v3379 = vstv %s3378
    %v3380 = vadd.f32 %v3322, %v3379
    %v3382 = vrot.slane %v3380, 2
    %v3383 = vsel %vm2523, %v3382, 0
    %3385 = vmatpush.msra.mxu0 0.0
    %3386 = vmatpush.msra.mxu0 0.0
    %3387 = vmatpush.msra.mxu0 0.0
    %3388 = vmatpush.msra.mxu0 0.0
    %3389 = vmatpush.msra.mxu0 0.0
    %3390 = vmatpush.msra.mxu0 0.0
    %3391 = vmatpush.msra.mxu0 0.0
    %3392 = vmatpush.msra.mxu0 0.0
    %3393 = vmatpush.msra.mxu0 0.0
    %3394 = vmatpush.msra.mxu0 0.0
    %3395 = vmatpush.msra.mxu0 0.0
    %3396 = vmatpush.msra.mxu0 0.0
    %3397 = vmatpush.msra.mxu0 %v1762
    %3398 = vmatpush.msra.mxu0 %v1761
    %3399 = vmatpush.msra.mxu0 %v1760
    %3400 = vmatpush.msra.mxu0 %v1759
    %3401 = vmatmul.f32.gmra.mxu0 %v3383
    %v3402 = vpop.f32.mrf.mxu0
    %v3403 = vadd.f32 0.0, %v3402
    %3404 = vdwg.mxu0
    %v3405 = vadd.f32 %v3377, %v3403
    %3406 = vst [vmem:[#allocation8 + $0x1] sm:$0x1] %v3405
    // Predicated region
    $region42: #{convnet3_forward.1} parent=1 // pred_check
      _
    $region43: #{convnet3_forward.1} parent=1 // pred_check_branch
      %3408 = sbr.rel (0) target = $region45
    $region44: #{convnet3_forward.1} parent=1 // pred_region
      %3410 = vsyncadd [#allocation3], 0
      %s3412 = sshll.u32 [#allocation8], 4
      %s3413 = int_to_ptr.vmem [resolvable:$true] %s3412
      %s3414 = sshll.u32 %s7, 4
      %s3415 = int_to_ptr.hbm [resolvable:$true] %s3414
      %3417 = dma.vmem_to_hbm [thread:$0]  %s3413, 32, %s3415, [#allocation3]
    $region45: #{convnet3_forward.1} parent=1 // pred_fallthru
      _
    // Predicated region
    $region46: #{convnet3_forward.1} parent=1 // pred_check
      _
    $region47: #{convnet3_forward.1} parent=1 // pred_check_branch
      %3419 = sbr.rel (0) target = $region49
    $region48: #{convnet3_forward.1} parent=1 // pred_region
      %3421 = dma.done [#allocation3], 32
    $region49: #{convnet3_forward.1} parent=1 // pred_fallthru
      _
    %3422 = vsyncpa [#allocation3], 1
    %3423 = vsyncpa [#allocation4], 1
    %3424 = vsyncpa [#allocation6], 1

</llo_original>
